<compile_context>
chip_gen: v6e
topology: v6e:2x2x1
jax: 0.10.0
libtpu: 0.0.40
codegen_flags: <defaults>
</compile_context>

<pallas_src>
import functools

import jax
import jax.numpy as jnp
from jax.experimental import pallas as pl
from jax.experimental.pallas import tpu as pltpu

IMAGENET_MEAN = (0.485, 0.456, 0.406)
IMAGENET_STD = (0.229, 0.224, 0.225)

COMPUTE_DTYPE = jnp.bfloat16        # MXU operand dtype (accumulation is f32)

# VGG16 `features` configuration (torchvision).
VGG16_CFG = [64, 64, "M", 128, 128, "M", 256, 256, 256, "M",
             512, 512, 512, "M", 512, 512, 512, "M"]


def build_vgg16_feature_layers(layer_idx):
    """Returns the first `layer_idx` feature-layer descriptors of VGG16."""
    layers = []
    in_c = 3
    for v in VGG16_CFG:
        if v == "M":
            layers.append(("maxpool",))
        else:
            layers.append(("conv", in_c, v))
            layers.append(("relu",))
            in_c = v
    return layers[:layer_idx]


# ----------------------------------------------------------------------------
# VMEM budget helpers
# ----------------------------------------------------------------------------
_VMEM_LIMIT_CACHE = []


def _vmem_limit_bytes():
    """Generation-aware scoped-VMEM limit (~75% of physical, capped)."""
    if _VMEM_LIMIT_CACHE:
        return _VMEM_LIMIT_CACHE[0]
    limit = 48 * 1024 * 1024            # safe on v5e / v6e / v7x
    try:
        info_fn = getattr(pltpu, "get_tpu_info", None)
        if info_fn is not None:
            cap = int(info_fn().vmem_capacity_bytes)
            limit = max(32 * 1024 * 1024,
                        min(int(cap * 0.75), 112 * 1024 * 1024))
    except Exception:
        pass
    _VMEM_LIMIT_CACHE.append(limit)
    return limit


def _pad128(c):
    return ((c + 127) // 128) * 128


def _pick_tile_h(h, *, pool, est_fn, budget, max_tile_h=None):
    """Largest H-tile that divides h (even if pooling) and fits the budget."""
    cands = [t for t in range(1, h + 1) if h % t == 0]
    if pool:
        cands = [t for t in cands if t % 2 == 0]
    if max_tile_h is not None:
        capped = [t for t in cands if t <= max_tile_h]
        if capped:
            cands = capped
    best = None
    for t in cands:                      # ascending -> keep largest that fits
        if est_fn(t) <= budget:
            best = t
    if best is None:
        best = cands[0]
    return best


# ----------------------------------------------------------------------------
# Fused 3x3 conv (+bias +ReLU +optional 2x2/s2 maxpool) Pallas kernel
# ----------------------------------------------------------------------------
def _conv3x3_kernel(x_ref, top_ref, bot_ref, w_ref, b_ref, o_ref, *,
                    hb, wd, cin, cout, relu, pool):
    # x_ref   : (1, hb, wd, cin)   bf16 body rows of this H tile
    # top_ref : (1, 1, wd, cin)    halo row above (clamped at image edge)
    # bot_ref : (1, 1, wd, cin)    halo row below (clamped at image edge)
    # w_ref   : (3, cin, 3*cout)   bf16; w_ref[kh][ci, kw*cout + co]
    # b_ref   : (1, 1, cout)       f32 bias
    # o_ref   : (1, hb/pf, wd/pf, cout)
    i = pl.program_id(1)
    nh = pl.num_programs(1)

    body = x_ref[0]                                          # (hb, wd, cin)
    # At the image edges the halo rows must be zero padding.
    top = top_ref[0] * (i > 0).astype(body.dtype)            # (1, wd, cin)
    bot = bot_ref[0] * (i < nh - 1).astype(body.dtype)       # (1, wd, cin)

    # LHS for tap row kh: rows shifted by (kh-1).  Pure major-dim concats —
    # no padded-slab scratch, no kw lane concatenation.
    lhs_rows = (
        jnp.concatenate([top, body[:hb - 1]], axis=0),       # x[r-1, c, :]
        body,                                                 # x[r,   c, :]
        jnp.concatenate([body[1:], bot], axis=0),             # x[r+1, c, :]
    )

    # acc[:, kw*cout:(kw+1)*cout] = P_kw = sum_kh x[r+kh-1, c] @ W[kh, :, kw]
    acc = None
    for kh in range(3):
        lhs = lhs_rows[kh].reshape(hb * wd, cin)
        term = jnp.dot(lhs, w_ref[kh], preferred_element_type=jnp.float32)
        acc = term if acc is None else acc + term

    # out[r, c] = P_0[r, c-1] + P_1[r, c] + P_2[r, c+1]   (zero at W edges)
    p0 = acc[:, 0 * cout:1 * cout].reshape(hb, wd, cout)
    p1 = acc[:, 1 * cout:2 * cout].reshape(hb, wd, cout)
    p2 = acc[:, 2 * cout:3 * cout].reshape(hb, wd, cout)
    zcol = jnp.zeros((hb, 1, cout), jnp.float32)
    out = (p1
           + jnp.concatenate([zcol, p0[:, :wd - 1, :]], axis=1)
           + jnp.concatenate([p2[:, 1:, :], zcol], axis=1))

    # f32 epilogue: bias + ReLU (+ fused 2x2 stride-2 maxpool).
    out = out + b_ref[...]
    if relu:
        out = jnp.maximum(out, 0.0)
    if pool:
        out = out.reshape(hb, wd // 2, 2, cout).max(axis=2)      # pool W
        out = out.reshape(hb // 2, 2, wd // 2, cout).max(axis=1)  # pool H

    o_ref[0] = out.astype(o_ref.dtype)


def conv3x3_block_pallas(x, w_torch, b, *, relu, pool,
                         out_dtype=COMPUTE_DTYPE, max_tile_h=None):
    """3x3/pad-1 conv with fused bias (+ReLU) (+2x2/s2 maxpool).

    x       : (N, H, W, cin) NHWC activations
    w_torch : (cout, cin, 3, 3) float32 weights (PyTorch OIHW layout)
    b       : (cout,) float32 bias
    """
    n, h, wd, cin = x.shape
    cout = w_torch.shape[0]
    if pool:
        assert h % 2 == 0 and wd % 2 == 0

    x = x.astype(COMPUTE_DTYPE)

    # (cout, cin, kh, kw) -> (kh, cin, kw, cout) -> (3, cin, 3*cout):
    # column index = kw*cout + co, so the kernel slices per-kw partial sums.
    wbig = jnp.transpose(w_torch, (2, 1, 3, 0)).reshape(3, cin, 3 * cout)
    wbig = wbig.astype(COMPUTE_DTYPE)
    bk = b.reshape(1, 1, cout).astype(jnp.float32)

    vmem_limit = _vmem_limit_bytes()
    out_bytes = jnp.dtype(out_dtype).itemsize

    def est(t):
        pf = 2 if pool else 1
        in_blk = t * wd * _pad128(cin) * 2
        halo = 2 * wd * _pad128(cin) * 2
        w_blk = 3 * cin * _pad128(3 * cout) * 2
        out_blk = (t // pf) * (wd // pf) * _pad128(cout) * out_bytes
        lhs = 3 * t * wd * _pad128(cin) * 2
        accb = t * wd * _pad128(3 * cout) * 4
        parts = 4 * t * wd * _pad128(cout) * 4
        return 2 * (in_blk + halo + w_blk + out_blk) + lhs + accb + parts

    hb = _pick_tile_h(h, pool=pool, est_fn=est,
                      budget=int(vmem_limit * 0.7), max_tile_h=max_tile_h)
    nh = h // hb
    pf = 2 if pool else 1
    h_out, w_out, hb_out = h // pf, wd // pf, hb // pf

    kernel = functools.partial(_conv3x3_kernel, hb=hb, wd=wd, cin=cin,
                               cout=cout, relu=relu, pool=pool)

    in_specs = [
        # body rows of the current H tile
        pl.BlockSpec((1, hb, wd, cin), lambda bn, i: (bn, i, 0, 0)),
        # single halo row above (clamped at top edge; zeroed in-kernel)
        pl.BlockSpec((1, 1, wd, cin),
                     lambda bn, i: (bn, jnp.maximum(i * hb - 1, 0), 0, 0)),
        # single halo row below (clamped at bottom edge; zeroed in-kernel)
        pl.BlockSpec((1, 1, wd, cin),
                     lambda bn, i: (bn, jnp.minimum((i + 1) * hb, h - 1), 0, 0)),
        # weights / bias: constant index map -> resident (fetched once)
        pl.BlockSpec((3, cin, 3 * cout), lambda bn, i: (0, 0, 0)),
        pl.BlockSpec((1, 1, cout), lambda bn, i: (0, 0, 0)),
    ]
    out_specs = pl.BlockSpec((1, hb_out, w_out, cout),
                             lambda bn, i: (bn, i, 0, 0))

    return pl.pallas_call(
        kernel,
        out_shape=jax.ShapeDtypeStruct((n, h_out, w_out, cout), out_dtype),
        grid=(n, nh),
        in_specs=in_specs,
        out_specs=out_specs,
        compiler_params=pltpu.CompilerParams(
            dimension_semantics=("parallel", "parallel"),
            vmem_limit_bytes=vmem_limit),
    )(x, x, x, wbig, bk)


# ----------------------------------------------------------------------------
# Per-pixel matmul kernel (used for conv1, whose 3x3 taps are im2col'd to K=27)
# ----------------------------------------------------------------------------
def _matmul_bias_act_kernel(x_ref, w_ref, b_ref, o_ref, *,
                            hb, wd, kdim, cout, relu, pool):
    lhs = x_ref[0].reshape(hb * wd, kdim)
    acc = jnp.dot(lhs, w_ref[...], preferred_element_type=jnp.float32)
    out = acc.reshape(hb, wd, cout) + b_ref[...]
    if relu:
        out = jnp.maximum(out, 0.0)
    if pool:
        out = out.reshape(hb, wd // 2, 2, cout).max(axis=2)
        out = out.reshape(hb // 2, 2, wd // 2, cout).max(axis=1)
    o_ref[0] = out.astype(o_ref.dtype)


def matmul_bias_act_pallas(x, wk, b, *, relu, pool,
                           out_dtype=COMPUTE_DTYPE, max_tile_h=None):
    """Per-pixel matmul (+bias, +ReLU, +2x2/s2 maxpool). x: (N, H, W, K)."""
    n, h, wd, kdim = x.shape
    cout = wk.shape[1]
    if pool:
        assert h % 2 == 0 and wd % 2 == 0

    bk = b.reshape(1, 1, cout).astype(jnp.float32)
    vmem_limit = _vmem_limit_bytes()
    out_bytes = jnp.dtype(out_dtype).itemsize

    def est(t):
        pf = 2 if pool else 1
        in_blk = t * wd * _pad128(kdim) * 2
        w_blk = kdim * _pad128(cout) * 2
        out_blk = (t // pf) * (wd // pf) * _pad128(cout) * out_bytes
        accb = t * wd * _pad128(cout) * 4
        trans = t * wd * _pad128(kdim) * 2 + 2 * accb
        return 2 * (in_blk + w_blk + out_blk) + trans

    hb = _pick_tile_h(h, pool=pool, est_fn=est,
                      budget=int(vmem_limit * 0.7), max_tile_h=max_tile_h)
    nh = h // hb
    pf = 2 if pool else 1
    h_out, w_out, hb_out = h // pf, wd // pf, hb // pf

    kernel = functools.partial(_matmul_bias_act_kernel, hb=hb, wd=wd,
                               kdim=kdim, cout=cout, relu=relu, pool=pool)

    return pl.pallas_call(
        kernel,
        out_shape=jax.ShapeDtypeStruct((n, h_out, w_out, cout), out_dtype),
        grid=(n, nh),
        in_specs=[
            pl.BlockSpec((1, hb, wd, kdim), lambda bn, i: (bn, i, 0, 0)),
            pl.BlockSpec((kdim, cout), lambda bn, i: (0, 0)),     # resident
            pl.BlockSpec((1, 1, cout), lambda bn, i: (0, 0, 0)),  # resident
        ],
        out_specs=pl.BlockSpec((1, hb_out, w_out, cout),
                               lambda bn, i: (bn, i, 0, 0)),
        compiler_params=pltpu.CompilerParams(
            dimension_semantics=("parallel", "parallel"),
            vmem_limit_bytes=vmem_limit),
    )(x.astype(COMPUTE_DTYPE), wk.astype(COMPUTE_DTYPE), bk)


def _im2col_3x3(x):
    """(N, H, W, C) -> (N, H, W, 9*C); tap order (kh, kw), zero 'same' pad."""
    n, h, w, c = x.shape
    xp = jnp.pad(x, ((0, 0), (1, 1), (1, 1), (0, 0)))
    taps = [xp[:, kh:kh + h, kw:kw + w, :]
            for kh in range(3) for kw in range(3)]
    return jnp.concatenate(taps, axis=-1)


# ----------------------------------------------------------------------------
# Model: parameters + forward
# ----------------------------------------------------------------------------
def init_params(layer_idx, key):
    """Deterministic synthetic weights for the truncated conv stack."""
    params = []
    conv_i = 0
    for layer in build_vgg16_feature_layers(layer_idx):
        if layer[0] == "conv":
            _, cin, cout = layer
            kw_, kb_ = jax.random.split(jax.random.fold_in(key, conv_i))
            w = 0.05 * jax.random.normal(kw_, (cout, cin, 3, 3), jnp.float32)
            b = 0.01 * jax.random.normal(kb_, (cout,), jnp.float32)
            params.append((w, b))
            conv_i += 1
    return params


def truncated_vgg16_forward(x_nchw, params, layer_idx, is_normalize,
                            max_tile_h=None):
    """Pallas forward. Input/output are NCHW float32 (PyTorch convention)."""
    layers = build_vgg16_feature_layers(layer_idx)
    x = jnp.transpose(x_nchw, (0, 2, 3, 1)).astype(jnp.float32)     # -> NHWC

    if is_normalize:
        # Explicit normalization (NOT folded into conv1 weights: with zero
        # 'same' padding that fold is wrong at the image border).  Cheap
        # elementwise op on the 3-channel input; fuses with conv1's im2col.
        mean = jnp.asarray(IMAGENET_MEAN, jnp.float32)
        std = jnp.asarray(IMAGENET_STD, jnp.float32)
        x = (x - mean) / std

    pi = 0
    i = 0
    nlayers = len(layers)
    while i < nlayers:
        kind = layers[i][0]
        if kind == "conv":
            _, cin, cout = layers[i]
            w, b = params[pi]
            pi += 1
            fuse_relu = i + 1 < nlayers and layers[i + 1][0] == "relu"
            fuse_pool = (fuse_relu and i + 2 < nlayers
                         and layers[i + 2][0] == "maxpool")
            consumed = 1 + int(fuse_relu) + int(fuse_pool)
            is_last = (i + consumed) >= nlayers
            odt = jnp.float32 if is_last else COMPUTE_DTYPE
            if cin == 3:
                # conv1_1: fold the 9 taps into K=27 via an XLA-side im2col on
                # the tiny 3-channel input -> plain matmul kernel, no lane-3
                # DMAs or in-kernel tap gathering.
                x27 = _im2col_3x3(x.astype(COMPUTE_DTYPE))
                wk = jnp.transpose(w, (2, 3, 1, 0)).reshape(9 * cin, cout)
                x = matmul_bias_act_pallas(x27, wk, b, relu=fuse_relu,
                                           pool=fuse_pool, out_dtype=odt,
                                           max_tile_h=max_tile_h)
            else:
                x = conv3x3_block_pallas(x, w, b, relu=fuse_relu,
                                         pool=fuse_pool, out_dtype=odt,
                                         max_tile_h=max_tile_h)
            i += consumed
        elif kind == "relu":
            # Unreachable for the VGG16 config (ReLU always fused into the
            # preceding conv); correct fallback kept for safety.
            x = jnp.maximum(x, 0.0)
            i += 1
        else:
            # "maxpool" not preceded by conv+relu: unreachable for VGG16.
            nb, hh, ww, cc = x.shape
            x = jnp.max(x.reshape(nb, hh // 2, 2, ww // 2, 2, cc), axis=(2, 4))
            i += 1

    return jnp.transpose(x, (0, 3, 1, 2)).astype(jnp.float32)       # -> NCHW


# ----------------------------------------------------------------------------
# Pure-JAX reference (for correctness check only)
# ----------------------------------------------------------------------------
def reference_forward(x_nchw, params, layer_idx, is_normalize):
    x = x_nchw
    if is_normalize:
        mean = jnp.asarray(IMAGENET_MEAN, jnp.float32).reshape(1, 3, 1, 1)
        std = jnp.asarray(IMAGENET_STD, jnp.float32).reshape(1, 3, 1, 1)
        x = (x - mean) / std
    pi = 0
    for layer in build_vgg16_feature_layers(layer_idx):
        if layer[0] == "conv":
            w, b = params[pi]
            pi += 1
            x = jax.lax.conv_general_dilated(
                x, w, window_strides=(1, 1), padding=((1, 1), (1, 1)),
                dimension_numbers=("NCHW", "OIHW", "NCHW"),
                precision=jax.lax.Precision.HIGHEST)
            x = x + b.reshape(1, -1, 1, 1)
        elif layer[0] == "relu":
            x = jnp.maximum(x, 0.0)
        else:  # maxpool 2x2 stride 2
            x = jax.lax.reduce_window(x, -jnp.inf, jax.lax.max,
                                      (1, 1, 2, 2), (1, 1, 2, 2), "VALID")
    return x


# ----------------------------------------------------------------------------
if __name__ == "__main__":
    LAYER_IDX = 5          # conv1_1 -> relu -> conv1_2 -> relu -> maxpool
    IS_NORMALIZE = True

    key = jax.random.PRNGKey(0)
    k_in, k_par = jax.random.split(key)

    N, C, H, W = 2, 3, 16, 16
    x = jax.random.uniform(k_in, (N, C, H, W), jnp.float32)   # image in [0, 1]

    params = init_params(LAYER_IDX, k_par)

    ref = jax.block_until_ready(
        reference_forward(x, params, LAYER_IDX, IS_NORMALIZE))

    # (a) default tiling (largest tiles that fit the VMEM budget).
    fwd = jax.jit(functools.partial(truncated_vgg16_forward,
                                    layer_idx=LAYER_IDX,
                                    is_normalize=IS_NORMALIZE))
    out = jax.block_until_ready(fwd(x, params))
    assert out.shape == (N, 64, H // 2, W // 2), out.shape
    max_err = float(jnp.max(jnp.abs(out - ref)))
    # bf16 MXU operands / inter-layer activations vs. f32 reference.
    assert jnp.allclose(out, ref, atol=3e-2, rtol=3e-2), max_err

    # (b) forced multi-H-tile run: exercises halo rows and edge-zero paths.
    fwd_tiled = jax.jit(functools.partial(truncated_vgg16_forward,
                                          layer_idx=LAYER_IDX,
                                          is_normalize=IS_NORMALIZE,
                                          max_tile_h=8))
    out_t = jax.block_until_ready(fwd_tiled(x, params))
    max_err_t = float(jnp.max(jnp.abs(out_t - ref)))
    assert jnp.allclose(out_t, ref, atol=3e-2, rtol=3e-2), max_err_t

    print("KERNEL_OK")
</pallas_src>

<mosaic_0001>
module attributes {stable_mosaic.version = 11 : i64} {
  func.func @_conv3x3_kernel(%arg0: i32, %arg1: i32, %arg2: memref<1x16x16x64xbf16, #tpu.memory_space<vmem>>, %arg3: memref<1x1x16x64xbf16, #tpu.memory_space<vmem>>, %arg4: memref<1x1x16x64xbf16, #tpu.memory_space<vmem>>, %arg5: memref<3x64x192xbf16, #tpu.memory_space<vmem>>, %arg6: memref<1x1x64xf32, #tpu.memory_space<vmem>>, %arg7: memref<1x8x8x64xf32, #tpu.memory_space<vmem>>) attributes {dimension_semantics = [#tpu.dimension_semantics<parallel>, #tpu.dimension_semantics<parallel>], iteration_bounds = array<i64: 2, 1>, scalar_prefetch = 0 : i64, scratch_operands = 0 : i64, tpu.core_type = #tpu.core_type<tc>, window_params = [{transform_indices = @transform_0, window_bounds = array<i64: 1, 16, 16, 64>}, {transform_indices = @transform_1, window_bounds = array<i64: 1, 1, 16, 64>}, {transform_indices = @transform_2, window_bounds = array<i64: 1, 1, 16, 64>}, {pipeline_mode = #tpu.pipeline_mode<synchronous>, transform_indices = @transform_3, window_bounds = array<i64: 3, 64, 192>}, {pipeline_mode = #tpu.pipeline_mode<synchronous>, transform_indices = @transform_4, window_bounds = array<i64: 1, 1, 64>}, {transform_indices = @transform_5, window_bounds = array<i64: 1, 8, 8, 64>}]} {
    %c0 = arith.constant 0 : index
    %c0_0 = arith.constant 0 : index
    %c0_1 = arith.constant 0 : index
    %c0_2 = arith.constant 0 : index
    %0 = vector.load %arg2[%c0, %c0_0, %c0_1, %c0_2] : memref<1x16x16x64xbf16, #tpu.memory_space<vmem>>, vector<1x16x16x64xbf16>
    %1 = vector.shape_cast %0 : vector<1x16x16x64xbf16> to vector<16x16x64xbf16>
    %c0_3 = arith.constant 0 : index
    %c0_4 = arith.constant 0 : index
    %c0_5 = arith.constant 0 : index
    %c0_6 = arith.constant 0 : index
    %2 = vector.load %arg3[%c0_3, %c0_4, %c0_5, %c0_6] : memref<1x1x16x64xbf16, #tpu.memory_space<vmem>>, vector<1x1x16x64xbf16>
    %3 = vector.shape_cast %2 : vector<1x1x16x64xbf16> to vector<1x16x64xbf16>
    %c0_i32 = arith.constant 0 : i32
    %4 = arith.cmpi sgt, %arg1, %c0_i32 : i32
    %5 = arith.extui %4 : i1 to i32
    %6 = arith.sitofp %5 : i32 to f32
    %7 = arith.truncf %6 : f32 to bf16
    %8 = vector.broadcast %7 : bf16 to vector<1x16x64xbf16>
    %9 = arith.mulf %3, %8 : vector<1x16x64xbf16>
    %c0_7 = arith.constant 0 : index
    %c0_8 = arith.constant 0 : index
    %c0_9 = arith.constant 0 : index
    %c0_10 = arith.constant 0 : index
    %10 = vector.load %arg4[%c0_7, %c0_8, %c0_9, %c0_10] : memref<1x1x16x64xbf16, #tpu.memory_space<vmem>>, vector<1x1x16x64xbf16>
    %11 = vector.shape_cast %10 : vector<1x1x16x64xbf16> to vector<1x16x64xbf16>
    %c0_i32_11 = arith.constant 0 : i32
    %12 = arith.cmpi slt, %arg1, %c0_i32_11 : i32
    %13 = arith.extui %12 : i1 to i32
    %14 = arith.sitofp %13 : i32 to f32
    %15 = arith.truncf %14 : f32 to bf16
    %16 = vector.broadcast %15 : bf16 to vector<1x16x64xbf16>
    %17 = arith.mulf %11, %16 : vector<1x16x64xbf16>
    %18 = vector.extract_strided_slice %1 {offsets = [0, 0, 0], sizes = [15, 16, 64], strides = [1, 1, 1]} : vector<16x16x64xbf16> to vector<15x16x64xbf16>
    %19 = tpu.concatenate %9, %18 in 0 : vector<1x16x64xbf16>, vector<15x16x64xbf16> -> vector<16x16x64xbf16>
    %20 = vector.extract_strided_slice %1 {offsets = [1, 0, 0], sizes = [15, 16, 64], strides = [1, 1, 1]} : vector<16x16x64xbf16> to vector<15x16x64xbf16>
    %21 = tpu.concatenate %20, %17 in 0 : vector<15x16x64xbf16>, vector<1x16x64xbf16> -> vector<16x16x64xbf16>
    %22 = vector.shape_cast %19 : vector<16x16x64xbf16> to vector<256x64xbf16>
    %c0_12 = arith.constant 0 : index
    %c0_13 = arith.constant 0 : index
    %c0_14 = arith.constant 0 : index
    %23 = vector.load %arg5[%c0_12, %c0_13, %c0_14] : memref<3x64x192xbf16, #tpu.memory_space<vmem>>, vector<1x64x192xbf16>
    %24 = vector.shape_cast %23 : vector<1x64x192xbf16> to vector<64x192xbf16>
    %cst = arith.constant dense<0.000000e+00> : vector<256x192xf32>
    %25 = tpu.matmul %22, %24, %cst {dimension_numbers = #tpu.dot_dimension_numbers<[1], [0], [0], [1], [0, 0, 1, 1], [], []>} : vector<256x64xbf16>, vector<64x192xbf16>, vector<256x192xf32> -> vector<256x192xf32>
    %26 = vector.shape_cast %1 : vector<16x16x64xbf16> to vector<256x64xbf16>
    %c1 = arith.constant 1 : index
    %c0_15 = arith.constant 0 : index
    %c0_16 = arith.constant 0 : index
    %27 = vector.load %arg5[%c1, %c0_15, %c0_16] : memref<3x64x192xbf16, #tpu.memory_space<vmem>>, vector<1x64x192xbf16>
    %28 = vector.shape_cast %27 : vector<1x64x192xbf16> to vector<64x192xbf16>
    %cst_17 = arith.constant dense<0.000000e+00> : vector<256x192xf32>
    %29 = tpu.matmul %26, %28, %cst_17 {dimension_numbers = #tpu.dot_dimension_numbers<[1], [0], [0], [1], [0, 0, 1, 1], [], []>} : vector<256x64xbf16>, vector<64x192xbf16>, vector<256x192xf32> -> vector<256x192xf32>
    %30 = arith.addf %25, %29 : vector<256x192xf32>
    %31 = vector.shape_cast %21 : vector<16x16x64xbf16> to vector<256x64xbf16>
    %c2 = arith.constant 2 : index
    %c0_18 = arith.constant 0 : index
    %c0_19 = arith.constant 0 : index
    %32 = vector.load %arg5[%c2, %c0_18, %c0_19] : memref<3x64x192xbf16, #tpu.memory_space<vmem>>, vector<1x64x192xbf16>
    %33 = vector.shape_cast %32 : vector<1x64x192xbf16> to vector<64x192xbf16>
    %cst_20 = arith.constant dense<0.000000e+00> : vector<256x192xf32>
    %34 = tpu.matmul %31, %33, %cst_20 {dimension_numbers = #tpu.dot_dimension_numbers<[1], [0], [0], [1], [0, 0, 1, 1], [], []>} : vector<256x64xbf16>, vector<64x192xbf16>, vector<256x192xf32> -> vector<256x192xf32>
    %35 = arith.addf %30, %34 : vector<256x192xf32>
    %36 = vector.extract_strided_slice %35 {offsets = [0, 0], sizes = [256, 64], strides = [1, 1]} : vector<256x192xf32> to vector<256x64xf32>
    %37 = vector.shape_cast %36 : vector<256x64xf32> to vector<16x16x64xf32>
    %38 = vector.extract_strided_slice %35 {offsets = [0, 64], sizes = [256, 64], strides = [1, 1]} : vector<256x192xf32> to vector<256x64xf32>
    %39 = vector.shape_cast %38 : vector<256x64xf32> to vector<16x16x64xf32>
    %40 = vector.extract_strided_slice %35 {offsets = [0, 128], sizes = [256, 64], strides = [1, 1]} : vector<256x192xf32> to vector<256x64xf32>
    %41 = vector.shape_cast %40 : vector<256x64xf32> to vector<16x16x64xf32>
    %cst_21 = arith.constant 0.000000e+00 : f32
    %42 = vector.broadcast %cst_21 : f32 to vector<16x1x64xf32>
    %43 = vector.extract_strided_slice %37 {offsets = [0, 0, 0], sizes = [16, 15, 64], strides = [1, 1, 1]} : vector<16x16x64xf32> to vector<16x15x64xf32>
    %44 = tpu.concatenate %42, %43 in 1 : vector<16x1x64xf32>, vector<16x15x64xf32> -> vector<16x16x64xf32>
    %45 = arith.addf %39, %44 : vector<16x16x64xf32>
    %46 = vector.extract_strided_slice %41 {offsets = [0, 1, 0], sizes = [16, 15, 64], strides = [1, 1, 1]} : vector<16x16x64xf32> to vector<16x15x64xf32>
    %47 = tpu.concatenate %46, %42 in 1 : vector<16x15x64xf32>, vector<16x1x64xf32> -> vector<16x16x64xf32>
    %48 = arith.addf %45, %47 : vector<16x16x64xf32>
    %c0_22 = arith.constant 0 : index
    %c0_23 = arith.constant 0 : index
    %c0_24 = arith.constant 0 : index
    %49 = vector.load %arg6[%c0_22, %c0_23, %c0_24] : memref<1x1x64xf32, #tpu.memory_space<vmem>>, vector<1x1x64xf32>
    %50 = vector.broadcast %49 : vector<1x1x64xf32> to vector<16x16x64xf32>
    %51 = arith.addf %48, %50 : vector<16x16x64xf32>
    %cst_25 = arith.constant 0.000000e+00 : f32
    %52 = vector.broadcast %cst_25 : f32 to vector<16x16x64xf32>
    %53 = arith.maximumf %51, %52 : vector<16x16x64xf32>
    %54 = vector.shape_cast %53 : vector<16x16x64xf32> to vector<16x8x2x64xf32>
    %cst_26 = arith.constant dense<0xFF800000> : vector<16x8x64xf32>
    %55 = vector.multi_reduction <maximumf>, %54, %cst_26 [2] : vector<16x8x2x64xf32> to vector<16x8x64xf32>
    %56 = vector.shape_cast %55 : vector<16x8x64xf32> to vector<8x2x8x64xf32>
    %cst_27 = arith.constant dense<0xFF800000> : vector<8x8x64xf32>
    %57 = vector.multi_reduction <maximumf>, %56, %cst_27 [1] : vector<8x2x8x64xf32> to vector<8x8x64xf32>
    %c0_28 = arith.constant 0 : index
    %c0_29 = arith.constant 0 : index
    %c0_30 = arith.constant 0 : index
    %c0_31 = arith.constant 0 : index
    %58 = vector.load %arg7[%c0_28, %c0_29, %c0_30, %c0_31] : memref<1x8x8x64xf32, #tpu.memory_space<vmem>>, vector<1x8x8x64xf32>
    %59 = vector.shape_cast %58 : vector<1x8x8x64xf32> to vector<8x8x64xf32>
    %60 = vector.shape_cast %57 : vector<8x8x64xf32> to vector<1x8x8x64xf32>
    tpu.vector_store %arg7[%c0_28, %c0_29, %c0_30, %c0_31], %60 {strides = array<i32>} : memref<1x8x8x64xf32, #tpu.memory_space<vmem>>, vector<1x8x8x64xf32>,
    return
  }
  func.func @transform_0(%arg0: i32, %arg1: i32) -> (i32, i32, i32, i32) {
    %c0_i32 = arith.constant 0 : i32
    %c0_i32_0 = arith.constant 0 : i32
    %c0_i32_1 = arith.constant 0 : i32
    return %arg0, %arg1, %c0_i32, %c0_i32_0 : i32, i32, i32, i32
  }
  func.func @transform_1(%arg0: i32, %arg1: i32) -> (i32, i32, i32, i32) {
    %c16_i32 = arith.constant 16 : i32
    %0 = arith.muli %arg1, %c16_i32 : i32
    %c1_i32 = arith.constant 1 : i32
    %1 = arith.subi %0, %c1_i32 : i32
    %c0_i32 = arith.constant 0 : i32
    %2 = arith.maxsi %1, %c0_i32 : i32
    %c0_i32_0 = arith.constant 0 : i32
    %c0_i32_1 = arith.constant 0 : i32
    %c0_i32_2 = arith.constant 0 : i32
    return %arg0, %2, %c0_i32_0, %c0_i32_1 : i32, i32, i32, i32
  }
  func.func @transform_2(%arg0: i32, %arg1: i32) -> (i32, i32, i32, i32) {
    %c1_i32 = arith.constant 1 : i32
    %0 = arith.addi %arg1, %c1_i32 : i32
    %c16_i32 = arith.constant 16 : i32
    %1 = arith.muli %0, %c16_i32 : i32
    %c15_i32 = arith.constant 15 : i32
    %2 = arith.minsi %1, %c15_i32 : i32
    %c0_i32 = arith.constant 0 : i32
    %c0_i32_0 = arith.constant 0 : i32
    %c0_i32_1 = arith.constant 0 : i32
    return %arg0, %2, %c0_i32, %c0_i32_0 : i32, i32, i32, i32
  }
  func.func @transform_3(%arg0: i32, %arg1: i32) -> (i32, i32, i32) {
    %c0_i32 = arith.constant 0 : i32
    %c0_i32_0 = arith.constant 0 : i32
    %c0_i32_1 = arith.constant 0 : i32
    %c0_i32_2 = arith.constant 0 : i32
    return %c0_i32, %c0_i32_0, %c0_i32_1 : i32, i32, i32
  }
  func.func @transform_4(%arg0: i32, %arg1: i32) -> (i32, i32, i32) {
    %c0_i32 = arith.constant 0 : i32
    %c0_i32_0 = arith.constant 0 : i32
    %c0_i32_1 = arith.constant 0 : i32
    %c0_i32_2 = arith.constant 0 : i32
    return %c0_i32, %c0_i32_0, %c0_i32_1 : i32, i32, i32
  }
  func.func @transform_5(%arg0: i32, %arg1: i32) -> (i32, i32, i32, i32) {
    %c0_i32 = arith.constant 0 : i32
    %c0_i32_0 = arith.constant 0 : i32
    %c0_i32_1 = arith.constant 0 : i32
    return %arg0, %arg1, %c0_i32, %c0_i32_0 : i32, i32, i32, i32
  }
}

module attributes {stable_mosaic.version = 11 : i64} {
  func.func @_matmul_bias_act_kernel(%arg0: i32, %arg1: i32, %arg2: memref<1x16x16x27xbf16, #tpu.memory_space<vmem>>, %arg3: memref<27x64xbf16, #tpu.memory_space<vmem>>, %arg4: memref<1x1x64xf32, #tpu.memory_space<vmem>>, %arg5: memref<1x16x16x64xbf16, #tpu.memory_space<vmem>>) attributes {dimension_semantics = [#tpu.dimension_semantics<parallel>, #tpu.dimension_semantics<parallel>], iteration_bounds = array<i64: 2, 1>, scalar_prefetch = 0 : i64, scratch_operands = 0 : i64, tpu.core_type = #tpu.core_type<tc>, window_params = [{transform_indices = @transform_0, window_bounds = array<i64: 1, 16, 16, 27>}, {pipeline_mode = #tpu.pipeline_mode<synchronous>, transform_indices = @transform_1, window_bounds = array<i64: 27, 64>}, {pipeline_mode = #tpu.pipeline_mode<synchronous>, transform_indices = @transform_2, window_bounds = array<i64: 1, 1, 64>}, {transform_indices = @transform_3, window_bounds = array<i64: 1, 16, 16, 64>}]} {
    %c0 = arith.constant 0 : index
    %c0_0 = arith.constant 0 : index
    %c0_1 = arith.constant 0 : index
    %c0_2 = arith.constant 0 : index
    %0 = vector.load %arg2[%c0, %c0_0, %c0_1, %c0_2] : memref<1x16x16x27xbf16, #tpu.memory_space<vmem>>, vector<1x16x16x27xbf16>
    %1 = vector.shape_cast %0 : vector<1x16x16x27xbf16> to vector<16x16x27xbf16>
    %2 = vector.shape_cast %1 : vector<16x16x27xbf16> to vector<256x27xbf16>
    %c0_3 = arith.constant 0 : index
    %c0_4 = arith.constant 0 : index
    %3 = vector.load %arg3[%c0_3, %c0_4] : memref<27x64xbf16, #tpu.memory_space<vmem>>, vector<27x64xbf16>
    %cst = arith.constant dense<0.000000e+00> : vector<256x64xf32>
    %4 = tpu.matmul %2, %3, %cst {dimension_numbers = #tpu.dot_dimension_numbers<[1], [0], [0], [1], [0, 0, 1, 1], [], []>} : vector<256x27xbf16>, vector<27x64xbf16>, vector<256x64xf32> -> vector<256x64xf32>
    %5 = vector.shape_cast %4 : vector<256x64xf32> to vector<16x16x64xf32>
    %c0_5 = arith.constant 0 : index
    %c0_6 = arith.constant 0 : index
    %c0_7 = arith.constant 0 : index
    %6 = vector.load %arg4[%c0_5, %c0_6, %c0_7] : memref<1x1x64xf32, #tpu.memory_space<vmem>>, vector<1x1x64xf32>
    %7 = vector.broadcast %6 : vector<1x1x64xf32> to vector<16x16x64xf32>
    %8 = arith.addf %5, %7 : vector<16x16x64xf32>
    %cst_8 = arith.constant 0.000000e+00 : f32
    %9 = vector.broadcast %cst_8 : f32 to vector<16x16x64xf32>
    %10 = arith.maximumf %8, %9 : vector<16x16x64xf32>
    %11 = arith.truncf %10 : vector<16x16x64xf32> to vector<16x16x64xbf16>
    %c0_9 = arith.constant 0 : index
    %c0_10 = arith.constant 0 : index
    %c0_11 = arith.constant 0 : index
    %c0_12 = arith.constant 0 : index
    %12 = vector.load %arg5[%c0_9, %c0_10, %c0_11, %c0_12] : memref<1x16x16x64xbf16, #tpu.memory_space<vmem>>, vector<1x16x16x64xbf16>
    %13 = vector.shape_cast %12 : vector<1x16x16x64xbf16> to vector<16x16x64xbf16>
    %14 = vector.shape_cast %11 : vector<16x16x64xbf16> to vector<1x16x16x64xbf16>
    tpu.vector_store %arg5[%c0_9, %c0_10, %c0_11, %c0_12], %14 {strides = array<i32>} : memref<1x16x16x64xbf16, #tpu.memory_space<vmem>>, vector<1x16x16x64xbf16>,
    return
  }
  func.func @transform_0(%arg0: i32, %arg1: i32) -> (i32, i32, i32, i32) {
    %c0_i32 = arith.constant 0 : i32
    %c0_i32_0 = arith.constant 0 : i32
    %c0_i32_1 = arith.constant 0 : i32
    return %arg0, %arg1, %c0_i32, %c0_i32_0 : i32, i32, i32, i32
  }
  func.func @transform_1(%arg0: i32, %arg1: i32) -> (i32, i32) {
    %c0_i32 = arith.constant 0 : i32
    %c0_i32_0 = arith.constant 0 : i32
    %c0_i32_1 = arith.constant 0 : i32
    return %c0_i32, %c0_i32_0 : i32, i32
  }
  func.func @transform_2(%arg0: i32, %arg1: i32) -> (i32, i32, i32) {
    %c0_i32 = arith.constant 0 : i32
    %c0_i32_0 = arith.constant 0 : i32
    %c0_i32_1 = arith.constant 0 : i32
    %c0_i32_2 = arith.constant 0 : i32
    return %c0_i32, %c0_i32_0, %c0_i32_1 : i32, i32, i32
  }
  func.func @transform_3(%arg0: i32, %arg1: i32) -> (i32, i32, i32, i32) {
    %c0_i32 = arith.constant 0 : i32
    %c0_i32_0 = arith.constant 0 : i32
    %c0_i32_1 = arith.constant 0 : i32
    return %arg0, %arg1, %c0_i32, %c0_i32_0 : i32, i32, i32, i32
  }
}

</mosaic_0001>

<llo_original>
// kernel: truncated_vgg16_forward.2
$region0: #{truncated_vgg16_forward.2}
  #allocation0 [shape = 'u32[]', space=smem, size = 0x4, offset = 0x4, fixed_abs, tag = 'smem constant byte address 0x4 - core index']
  #allocation1 [shape = 'u32[144,128]{1,0:T(1,128)}', space=vmem, size = 0x12000, scoped, tag = 'internal scratch']
  %s0 = inlined_call_operand.vmem [shape: bf16[2,16,16,27], index: 0, kind: input, shape index: {}]
  %s1 = inlined_call_operand.vmem [shape: bf16[27,64], index: 1, kind: input, shape index: {}]
  %s2 = inlined_call_operand.vmem [shape: f32[1,1,64], index: 2, kind: input, shape index: {}]
  %s3 = inlined_call_operand.vmem [shape: bf16[2,16,16,64], index: 3, kind: output, shape index: {}]
  %s4 = sld [smem:[#allocation0]]
  $region45: #{truncated_vgg16_forward.2} parent=0
    _
  %s6 = ssub.s32 1, %s4
  %s7 = scalar_select 0, %s6, %s4
  loop: start=0, step=1, limit=4
  $region2: #{truncated_vgg16_forward.2} parent=0 // loop_pre_header
    _
  $region3: #{truncated_vgg16_forward.2} parent=0 // loop_header
    %s9 = sphi 0, %s13
    %p10 = scmp.ge.s32.totalorder %s9, 4
    %s16 = sphi 0, %s28
    %s17 = sphi 0, %s24
    %s18 = sphi 0, %s16
    %s19 = sphi 0, %s17
    %s20 = sphi 0, %s18
    %s21 = sphi 0, %s19
    %s33 = sphi 0, %s35
    %s36 = sphi 0, %s33
    %s37 = sphi 0, %s36
    %s53 = sphi 0, %s37
    %s57 = sphi 0, %s57
    %s59 = sphi 0, %s57
    %s60 = sphi 0, %s59
    %s74 = sphi 0, %s60
    %s78 = sphi 0, %s78
    %s80 = sphi 0, %s78
    %s81 = sphi 0, %s80
    %s95 = sphi 0, %s81
    %s103 = sphi 0, %s105
    %s106 = sphi 0, %s103
    %s107 = sphi 0, %s106
    %s123 = sphi 0, %s107
  $region4: #{truncated_vgg16_forward.2} parent=0 // loop_header_branch
    %12 = sbr.rel (%p10) target = $region8
  $region5: #{truncated_vgg16_forward.2} parent=0 // loop_body
    %s14 = ssub.s32 %s9, 1
    %s15 = ssub.s32 %s9, 2
    %s22 = sadd.s32 1, %s17
    %p23 = scmp.ge.s32.totalorder %s22, 1
    %s24 = scalar_select %p23, 0, %s22
    %s25 = sadd.s32 1, %s16
    %s26 = scalar_select %p23, %s25, %s16
    %p27 = scmp.ge.s32.totalorder %s26, 2
    %s28 = scalar_select %p27, 0, %s26
    %s29 = ssub.s32 %s16, %s28
    %s30 = ssub.s32 %s17, %s24
    %s31 = sor.u32 %s29, %s30
    %p32 = scmp.eq.s32.totalorder %s31, 0
    %s34 = sadd.s32 %s33, 1
    %s35 = scalar_select %p32, %s33, %s34
    %p38 = pneg %p32
    %p39 = scmp.eq.s32.totalorder %s9, 1
    %p40 = por %p38, %p39
    %p41 = scmp.ne.s32.totalorder %s33, %s36
    %p42 = scmp.eq.s32.totalorder %s9, 0
    %p43 = por %p41, %p42
    %p44 = scmp.ne.s32.totalorder %s33, %s36
    %p45 = scmp.eq.s32.totalorder %s14, 1
    %p46 = por %p44, %p45
    %p47 = scmp.ne.s32.totalorder %s36, %s37
    %p48 = scmp.eq.s32.totalorder %s14, 0
    %p49 = por %p47, %p48
    %p50 = scmp.ne.s32.totalorder %s36, %s37
    %p51 = scmp.eq.s32.totalorder %s15, 1
    %p52 = por %p50, %p51
    %p54 = scmp.ne.s32.totalorder %s37, %s53
    %p55 = scmp.eq.s32.totalorder %s15, 0
    %p56 = por %p54, %p55
    %s58 = sadd.s32 %s57, 1
    %p61 = scmp.eq.s32.totalorder %s9, 1
    %p62 = scmp.ne.s32.totalorder %s57, %s59
    %p63 = scmp.eq.s32.totalorder %s9, 0
    %p64 = por %p62, %p63
    %p65 = scmp.ne.s32.totalorder %s57, %s59
    %p66 = scmp.eq.s32.totalorder %s14, 1
    %p67 = por %p65, %p66
    %p68 = scmp.ne.s32.totalorder %s59, %s60
    %p69 = scmp.eq.s32.totalorder %s14, 0
    %p70 = por %p68, %p69
    %p71 = scmp.ne.s32.totalorder %s59, %s60
    %p72 = scmp.eq.s32.totalorder %s15, 1
    %p73 = por %p71, %p72
    %p75 = scmp.ne.s32.totalorder %s60, %s74
    %p76 = scmp.eq.s32.totalorder %s15, 0
    %p77 = por %p75, %p76
    %s79 = sadd.s32 %s78, 1
    %p82 = scmp.eq.s32.totalorder %s9, 1
    %p83 = scmp.ne.s32.totalorder %s78, %s80
    %p84 = scmp.eq.s32.totalorder %s9, 0
    %p85 = por %p83, %p84
    %p86 = scmp.ne.s32.totalorder %s78, %s80
    %p87 = scmp.eq.s32.totalorder %s14, 1
    %p88 = por %p86, %p87
    %p89 = scmp.ne.s32.totalorder %s80, %s81
    %p90 = scmp.eq.s32.totalorder %s14, 0
    %p91 = por %p89, %p90
    %p92 = scmp.ne.s32.totalorder %s80, %s81
    %p93 = scmp.eq.s32.totalorder %s15, 1
    %p94 = por %p92, %p93
    %p96 = scmp.ne.s32.totalorder %s81, %s95
    %p97 = scmp.eq.s32.totalorder %s15, 0
    %p98 = por %p96, %p97
    %s99 = ssub.s32 %s16, %s28
    %s100 = ssub.s32 %s17, %s24
    %s101 = sor.u32 %s99, %s100
    %p102 = scmp.eq.s32.totalorder %s101, 0
    %s104 = sadd.s32 %s103, 1
    %s105 = scalar_select %p102, %s103, %s104
    %p108 = pneg %p102
    %p109 = scmp.eq.s32.totalorder %s9, 1
    %p110 = por %p108, %p109
    %p111 = scmp.ne.s32.totalorder %s103, %s106
    %p112 = scmp.eq.s32.totalorder %s9, 0
    %p113 = por %p111, %p112
    %p114 = scmp.ne.s32.totalorder %s103, %s106
    %p115 = scmp.eq.s32.totalorder %s14, 1
    %p116 = por %p114, %p115
    %p117 = scmp.ne.s32.totalorder %s106, %s107
    %p118 = scmp.eq.s32.totalorder %s14, 0
    %p119 = por %p117, %p118
    %p120 = scmp.ne.s32.totalorder %s106, %s107
    %p121 = scmp.eq.s32.totalorder %s15, 1
    %p122 = por %p120, %p121
    %p124 = scmp.ne.s32.totalorder %s107, %s123
    %p125 = scmp.eq.s32.totalorder %s15, 0
    %p126 = por %p124, %p125
    %p127 = scmp.le.s32.totalorder 1, %s9
    %p128 = scmp.lt.s32.totalorder %s9, 3
    %p129 = pnand %p127, %p128
    %p130 = pneg %p129
    // Predicated region
    $region9: #{truncated_vgg16_forward.2} parent=5 // pred_check
      _
    $region10: #{truncated_vgg16_forward.2} parent=5 // pred_check_branch
      %132 = sbr.rel (%p129) target = $region12
    $region11: #{truncated_vgg16_forward.2} parent=5 // pred_region
      %s133 = ssub.s32 %s9, 1
      // Predicated region
      $region13: #{truncated_vgg16_forward.2} parent=11 // pred_check
        %p134 = pneg %p70
      $region14: #{truncated_vgg16_forward.2} parent=11 // pred_check_branch
        %136 = sbr.rel (%p134) target = $region16
      $region15: #{truncated_vgg16_forward.2} parent=11 // pred_region
        _
      $region16: #{truncated_vgg16_forward.2} parent=11 // pred_fallthru
        _
      // Predicated region
      $region17: #{truncated_vgg16_forward.2} parent=11 // pred_check
        %p137 = pneg %p91
      $region18: #{truncated_vgg16_forward.2} parent=11 // pred_check_branch
        %139 = sbr.rel (%p137) target = $region20
      $region19: #{truncated_vgg16_forward.2} parent=11 // pred_region
        _
      $region20: #{truncated_vgg16_forward.2} parent=11 // pred_fallthru
        _
    $region12: #{truncated_vgg16_forward.2} parent=5 // pred_fallthru
      _
    %p140 = scmp.lt.s32.totalorder %s9, 2
    // Predicated region
    $region21: #{truncated_vgg16_forward.2} parent=5 // pred_check
      %p141 = pneg %p140
    $region22: #{truncated_vgg16_forward.2} parent=5 // pred_check_branch
      %143 = sbr.rel (%p141) target = $region24
    $region23: #{truncated_vgg16_forward.2} parent=5 // pred_region
      // Predicated region
      $region25: #{truncated_vgg16_forward.2} parent=23 // pred_check
        %p144 = pneg %p43
      $region26: #{truncated_vgg16_forward.2} parent=23 // pred_check_branch
        %146 = sbr.rel (%p144) target = $region28
      $region27: #{truncated_vgg16_forward.2} parent=23 // pred_region
        %s147 = smul.u32 16, %s17
        %p148 = scmp.lt.s32.totalorder %s16, 1
        %s149 = scalar_select %p148, %s16, 1
        %p150 = scmp.lt.s32.totalorder %s147, 15
        %s151 = scalar_select %p150, %s147, 15
        %s152 = smul.addr %s151, 2
        %s153 = smul.addr %s149, 32
        %s154 = sadd.s32 %s152, %s153
        %s155 = smul.addr %s154, 4
        %s156 = scalar_lea.vmem %s0, %s155
        %s157 = smul.u32 16, %s17
      $region28: #{truncated_vgg16_forward.2} parent=23 // pred_fallthru
        _
    $region24: #{truncated_vgg16_forward.2} parent=5 // pred_fallthru
      _
    %p158 = scmp.le.s32.totalorder 1, %s9
    %p159 = scmp.lt.s32.totalorder %s9, 3
    %p160 = pnand %p158, %p159
    %p161 = pneg %p160
    // Predicated region
    $region29: #{truncated_vgg16_forward.2} parent=5 // pred_check
      _
    $region30: #{truncated_vgg16_forward.2} parent=5 // pred_check_branch
      %163 = sbr.rel (%p160) target = $region32
    $region31: #{truncated_vgg16_forward.2} parent=5 // pred_region
      %s164 = ssub.s32 %s9, 1
      %s165 = smul.u32 16, %s19
      %p166 = scmp.lt.s32.totalorder %s18, 1
      %s167 = scalar_select %p166, %s18, 1
      %p168 = scmp.lt.s32.totalorder %s165, 15
      %s169 = scalar_select %p168, %s165, 15
      %s170 = smul.addr %s169, 2
      %s171 = smul.addr %s167, 32
      %s172 = sadd.s32 %s170, %s171
      %s173 = smul.addr %s172, 4
      %s174 = scalar_lea.vmem %s0, %s173
      %p175 = pneg %p49
      %p176 = pneg %p46
      %p177 = pneg %p70
      %p178 = pneg %p67
      %p179 = pneg %p91
      %p180 = pneg %p88
      %p181 = pneg %p119
      %p182 = pneg %p116
      %s183 = smul.u32 16, %s19
      %p184 = scmp.lt.s32.totalorder %s18, 1
      %s185 = scalar_select %p184, %s18, 1
      %p186 = scmp.lt.s32.totalorder %s183, 15
      %s187 = scalar_select %p186, %s183, 15
      %s188 = smul.addr %s187, 2
      %s189 = smul.addr %s185, 32
      %s190 = sadd.s32 %s188, %s189
      %s191 = smul.addr %s190, 4
      %s192 = scalar_lea.vmem %s3, %s191
      %s193 = smul.u32 16, %s19
      %p194 = scmp.lt.s32.totalorder %s18, 1
      %s195 = scalar_select %p194, %s18, 1
      %p196 = scmp.lt.s32.totalorder %s193, 15
      %s197 = scalar_select %p196, %s193, 15
      %s198 = smul.addr %s197, 2
      %s199 = smul.addr %s195, 32
      %s200 = sadd.s32 %s198, %s199
      %s201 = smul.addr %s200, 4
      %s202 = scalar_lea.vmem %s0, %s201
      %s203 = smul.u32 16, %s19
      %s204 = smul.u32 16, %s19
      %p205 = scmp.lt.s32.totalorder %s18, 1
      %s206 = scalar_select %p205, %s18, 1
      %p207 = scmp.lt.s32.totalorder %s204, 15
      %s208 = scalar_select %p207, %s204, 15
      %s209 = smul.addr %s208, 2
      %s210 = smul.addr %s206, 32
      %s211 = sadd.s32 %s209, %s210
      %s212 = smul.addr %s211, 4
      %s213 = scalar_lea.vmem %s3, %s212
      %s214 = smul.u32 16, %s19
      %v216 = vld [vmem:[%s202] sm:$0xf]
      %v217 = vld [vmem:[%s202 + $0x4] sm:$0xf]
      %v218 = vld [vmem:[%s202 + $0x8] sm:$0xf]
      %v219 = vld [vmem:[%s202 + $0xc] sm:$0xf]
      %v220 = vld [vmem:[%s202 + $0x10] sm:$0xf]
      %v221 = vld [vmem:[%s202 + $0x14] sm:$0xf]
      %v222 = vld [vmem:[%s202 + $0x18] sm:$0xf]
      %v223 = vld [vmem:[%s202 + $0x1c] sm:$0xf]
      %v224 = vld [vmem:[%s202 + $0x20] sm:$0xf]
      %v225 = vld [vmem:[%s202 + $0x24] sm:$0xf]
      %v226 = vld [vmem:[%s202 + $0x28] sm:$0xf]
      %v227 = vld [vmem:[%s202 + $0x2c] sm:$0xf]
      %v228 = vld [vmem:[%s202 + $0x30] sm:$0xf]
      %v229 = vld [vmem:[%s202 + $0x34] sm:$0xf]
      %v230 = vld [vmem:[%s202 + $0x38] sm:$0xf]
      %v231 = vld [vmem:[%s202 + $0x3c] sm:$0xf]
      %v232 = vld [vmem:[%s202 + $0x40] sm:$0xf]
      %v233 = vld [vmem:[%s202 + $0x44] sm:$0xf]
      %v234 = vld [vmem:[%s202 + $0x48] sm:$0xf]
      %v235 = vld [vmem:[%s202 + $0x4c] sm:$0xf]
      %v236 = vld [vmem:[%s202 + $0x50] sm:$0xf]
      %v237 = vld [vmem:[%s202 + $0x54] sm:$0xf]
      %v238 = vld [vmem:[%s202 + $0x58] sm:$0xf]
      %v239 = vld [vmem:[%s202 + $0x5c] sm:$0xf]
      %v240 = vld [vmem:[%s202 + $0x60] sm:$0xf]
      %v241 = vld [vmem:[%s202 + $0x64] sm:$0xf]
      %v242 = vld [vmem:[%s202 + $0x68] sm:$0xf]
      %v243 = vld [vmem:[%s202 + $0x6c] sm:$0xf]
      %v244 = vld [vmem:[%s202 + $0x70] sm:$0xf]
      %v245 = vld [vmem:[%s202 + $0x74] sm:$0xf]
      %v246 = vld [vmem:[%s202 + $0x78] sm:$0xf]
      %v247 = vld [vmem:[%s202 + $0x7c] sm:$0xf]
      %v248 = vld [vmem:[%s1] sm:$0xf]
      %v249 = vld [vmem:[%s1 + $0x4] sm:$0xf]
      %v250 = vld [vmem:[%s1 + $0x8] sm:$0xf]
      %v251 = vld [vmem:[%s1 + $0xc] sm:$0x3]
      %v284 = vunpack.c.l.b16 %v216
      %v285 = vunpack.c.l.b16 %v217
      %v286 = vunpack.c.l.b16 %v218
      %v287 = vunpack.c.l.b16 %v219
      %v288 = vunpack.c.l.b16 %v220
      %v289 = vunpack.c.l.b16 %v221
      %v290 = vunpack.c.l.b16 %v222
      %v291 = vunpack.c.l.b16 %v223
      %v292 = vunpack.c.l.b16 %v224
      %v293 = vunpack.c.l.b16 %v225
      %v294 = vunpack.c.l.b16 %v226
      %v295 = vunpack.c.l.b16 %v227
      %v296 = vunpack.c.l.b16 %v228
      %v297 = vunpack.c.l.b16 %v229
      %v298 = vunpack.c.l.b16 %v230
      %v299 = vunpack.c.l.b16 %v231
      %v300 = vunpack.c.l.b16 %v232
      %v301 = vunpack.c.l.b16 %v233
      %v302 = vunpack.c.l.b16 %v234
      %v303 = vunpack.c.l.b16 %v235
      %v304 = vunpack.c.l.b16 %v236
      %v305 = vunpack.c.l.b16 %v237
      %v306 = vunpack.c.l.b16 %v238
      %v307 = vunpack.c.l.b16 %v239
      %v308 = vunpack.c.l.b16 %v240
      %v309 = vunpack.c.l.b16 %v241
      %v310 = vunpack.c.l.b16 %v242
      %v311 = vunpack.c.l.b16 %v243
      %v312 = vunpack.c.l.b16 %v244
      %v313 = vunpack.c.l.b16 %v245
      %v314 = vunpack.c.l.b16 %v246
      %v315 = vunpack.c.l.b16 %v247
      %v316 = vpack.c.b16 %v285, %v284
      %v317 = vpack.c.b16 %v287, %v286
      %v318 = vpack.c.b16 %v289, %v288
      %v319 = vpack.c.b16 %v291, %v290
      %v320 = vpack.c.b16 %v293, %v292
      %v321 = vpack.c.b16 %v295, %v294
      %v322 = vpack.c.b16 %v297, %v296
      %v323 = vpack.c.b16 %v299, %v298
      %v324 = vpack.c.b16 %v301, %v300
      %v325 = vpack.c.b16 %v303, %v302
      %v326 = vpack.c.b16 %v305, %v304
      %v327 = vpack.c.b16 %v307, %v306
      %v328 = vpack.c.b16 %v309, %v308
      %v329 = vpack.c.b16 %v311, %v310
      %v330 = vpack.c.b16 %v313, %v312
      %v331 = vpack.c.b16 %v315, %v314
      %v336 = vunpack.c.l.b16 %v248
      %v337 = vunpack.c.l.b16 %v249
      %v338 = vunpack.c.l.b16 %v250
      %v339 = vunpack.c.l.b16 %v251
      %v340 = vpack.c.b16 %v337, %v336
      %v341 = vpack.c.b16 %v339, %v338
      %vm343 = vcmask 220160
      %v345 = vsel %vm343, %v316, 0
      %v348 = vsel %vm343, %v317, 0
      %v351 = vsel %vm343, %v318, 0
      %v354 = vsel %vm343, %v319, 0
      %v357 = vsel %vm343, %v320, 0
      %v360 = vsel %vm343, %v321, 0
      %v363 = vsel %vm343, %v322, 0
      %v366 = vsel %vm343, %v323, 0
      %v369 = vsel %vm343, %v324, 0
      %v372 = vsel %vm343, %v325, 0
      %v375 = vsel %vm343, %v326, 0
      %v378 = vsel %vm343, %v327, 0
      %v381 = vsel %vm343, %v328, 0
      %v384 = vsel %vm343, %v329, 0
      %v387 = vsel %vm343, %v330, 0
      %v390 = vsel %vm343, %v331, 0
      %vm392 = vcmask 1044480
      %vm393 = vcmask 1045504
      %v394 = vsel %vm392, 4294967295, 65535
      %v395 = vsel %vm393, %v394, 0
      %v397 = vand.u32 %v341, %v395
      %399 = vmatprep.subr.bf16.mxu0 0
      %400 = vmatpush1.bf16.msra.mxu0 0
      %401 = vmatprep.subr.bf16.mxu0 0
      %402 = vmatpush1.bf16.msra.mxu0 0
      %403 = vmatprep.subr.bf16.mxu0 0
      %404 = vmatpush1.bf16.msra.mxu0 0
      %405 = vmatprep.subr.bf16.mxu0 0
      %406 = vmatpush1.bf16.msra.mxu0 0
      %407 = vmatprep.subr.bf16.mxu0 0
      %408 = vmatpush1.bf16.msra.mxu0 0
      %409 = vmatprep.subr.bf16.mxu0 0
      %410 = vmatpush1.bf16.msra.mxu0 0
      %411 = vmatprep.subr.bf16.mxu0 0
      %412 = vmatpush1.bf16.msra.mxu0 %v397
      %413 = vmatprep.subr.bf16.mxu0 0
      %414 = vmatpush1.bf16.msra.mxu0 %v340
      %415 = vmatprep.subr.bf16.mxu0 0
      %416 = vmatpush2.bf16.msra.mxu0 0
      %417 = vmatprep.subr.bf16.mxu0 0
      %418 = vmatpush2.bf16.msra.mxu0 0
      %419 = vmatprep.subr.bf16.mxu0 0
      %420 = vmatpush2.bf16.msra.mxu0 0
      %421 = vmatprep.subr.bf16.mxu0 0
      %422 = vmatpush2.bf16.msra.mxu0 0
      %423 = vmatprep.subr.bf16.mxu0 0
      %424 = vmatpush2.bf16.msra.mxu0 0
      %425 = vmatprep.subr.bf16.mxu0 0
      %426 = vmatpush2.bf16.msra.mxu0 0
      %427 = vmatprep.subr.bf16.mxu0 0
      %428 = vmatpush2.bf16.msra.mxu0 0
      %429 = vmatprep.subr.bf16.mxu0 0
      %430 = vmatpush2.bf16.msra.mxu0 0
      %431 = vmatprep.mubr.bf16.mxu0 0
      %432 = vmatmul.mubr.bf16.gmra.mxu0 %v345
      %v433 = vpop.f32.mrf.mxu0
      %v434 = vadd.f32 0.0, %v433
      %v435 = vpop.f32.mrf.mxu0
      %v436 = vpop.f32.mrf.mxu0
      %v437 = vadd.f32 0.0, %v436
      %v438 = vpop.f32.mrf.mxu0
      %439 = vmatprep.mubr.bf16.mxu0 0
      %440 = vmatmul.mubr.bf16.gmra.mxu0 %v348
      %v441 = vpop.f32.mrf.mxu0
      %v442 = vadd.f32 0.0, %v441
      %v443 = vpop.f32.mrf.mxu0
      %v444 = vpop.f32.mrf.mxu0
      %v445 = vadd.f32 0.0, %v444
      %v446 = vpop.f32.mrf.mxu0
      %447 = vmatprep.mubr.bf16.mxu0 0
      %448 = vmatmul.mubr.bf16.gmra.mxu0 %v351
      %v449 = vpop.f32.mrf.mxu0
      %v450 = vadd.f32 0.0, %v449
      %v451 = vpop.f32.mrf.mxu0
      %v452 = vpop.f32.mrf.mxu0
      %v453 = vadd.f32 0.0, %v452
      %v454 = vpop.f32.mrf.mxu0
      %455 = vmatprep.mubr.bf16.mxu0 0
      %456 = vmatmul.mubr.bf16.gmra.mxu0 %v354
      %v457 = vpop.f32.mrf.mxu0
      %v458 = vadd.f32 0.0, %v457
      %v459 = vpop.f32.mrf.mxu0
      %v460 = vpop.f32.mrf.mxu0
      %v461 = vadd.f32 0.0, %v460
      %v462 = vpop.f32.mrf.mxu0
      %463 = vmatprep.mubr.bf16.mxu0 0
      %464 = vmatmul.mubr.bf16.gmra.mxu0 %v357
      %v465 = vpop.f32.mrf.mxu0
      %v466 = vadd.f32 0.0, %v465
      %v467 = vpop.f32.mrf.mxu0
      %v468 = vpop.f32.mrf.mxu0
      %v469 = vadd.f32 0.0, %v468
      %v470 = vpop.f32.mrf.mxu0
      %471 = vmatprep.mubr.bf16.mxu0 0
      %472 = vmatmul.mubr.bf16.gmra.mxu0 %v360
      %v473 = vpop.f32.mrf.mxu0
      %v474 = vadd.f32 0.0, %v473
      %v475 = vpop.f32.mrf.mxu0
      %v476 = vpop.f32.mrf.mxu0
      %v477 = vadd.f32 0.0, %v476
      %v478 = vpop.f32.mrf.mxu0
      %479 = vmatprep.mubr.bf16.mxu0 0
      %480 = vmatmul.mubr.bf16.gmra.mxu0 %v363
      %v481 = vpop.f32.mrf.mxu0
      %v482 = vadd.f32 0.0, %v481
      %v483 = vpop.f32.mrf.mxu0
      %v484 = vpop.f32.mrf.mxu0
      %v485 = vadd.f32 0.0, %v484
      %v486 = vpop.f32.mrf.mxu0
      %487 = vmatprep.mubr.bf16.mxu0 0
      %488 = vmatmul.mubr.bf16.gmra.mxu0 %v366
      %v489 = vpop.f32.mrf.mxu0
      %v490 = vadd.f32 0.0, %v489
      %v491 = vpop.f32.mrf.mxu0
      %v492 = vpop.f32.mrf.mxu0
      %v493 = vadd.f32 0.0, %v492
      %v494 = vpop.f32.mrf.mxu0
      %495 = vmatprep.mubr.bf16.mxu0 0
      %496 = vmatmul.mubr.bf16.gmra.mxu0 %v369
      %v497 = vpop.f32.mrf.mxu0
      %v498 = vadd.f32 0.0, %v497
      %v499 = vpop.f32.mrf.mxu0
      %v500 = vpop.f32.mrf.mxu0
      %v501 = vadd.f32 0.0, %v500
      %v502 = vpop.f32.mrf.mxu0
      %503 = vmatprep.mubr.bf16.mxu0 0
      %504 = vmatmul.mubr.bf16.gmra.mxu0 %v372
      %v505 = vpop.f32.mrf.mxu0
      %v506 = vadd.f32 0.0, %v505
      %v507 = vpop.f32.mrf.mxu0
      %v508 = vpop.f32.mrf.mxu0
      %v509 = vadd.f32 0.0, %v508
      %v510 = vpop.f32.mrf.mxu0
      %511 = vmatprep.mubr.bf16.mxu0 0
      %512 = vmatmul.mubr.bf16.gmra.mxu0 %v375
      %v513 = vpop.f32.mrf.mxu0
      %v514 = vadd.f32 0.0, %v513
      %v515 = vpop.f32.mrf.mxu0
      %v516 = vpop.f32.mrf.mxu0
      %v517 = vadd.f32 0.0, %v516
      %v518 = vpop.f32.mrf.mxu0
      %519 = vmatprep.mubr.bf16.mxu0 0
      %520 = vmatmul.mubr.bf16.gmra.mxu0 %v378
      %v521 = vpop.f32.mrf.mxu0
      %v522 = vadd.f32 0.0, %v521
      %v523 = vpop.f32.mrf.mxu0
      %v524 = vpop.f32.mrf.mxu0
      %v525 = vadd.f32 0.0, %v524
      %v526 = vpop.f32.mrf.mxu0
      %527 = vmatprep.mubr.bf16.mxu0 0
      %528 = vmatmul.mubr.bf16.gmra.mxu0 %v381
      %v529 = vpop.f32.mrf.mxu0
      %v530 = vadd.f32 0.0, %v529
      %v531 = vpop.f32.mrf.mxu0
      %v532 = vpop.f32.mrf.mxu0
      %v533 = vadd.f32 0.0, %v532
      %v534 = vpop.f32.mrf.mxu0
      %535 = vmatprep.mubr.bf16.mxu0 0
      %536 = vmatmul.mubr.bf16.gmra.mxu0 %v384
      %v537 = vpop.f32.mrf.mxu0
      %v538 = vadd.f32 0.0, %v537
      %v539 = vpop.f32.mrf.mxu0
      %v540 = vpop.f32.mrf.mxu0
      %v541 = vadd.f32 0.0, %v540
      %v542 = vpop.f32.mrf.mxu0
      %543 = vmatprep.mubr.bf16.mxu0 0
      %544 = vmatmul.mubr.bf16.gmra.mxu0 %v387
      %v545 = vpop.f32.mrf.mxu0
      %v546 = vadd.f32 0.0, %v545
      %v547 = vpop.f32.mrf.mxu0
      %v548 = vpop.f32.mrf.mxu0
      %v549 = vadd.f32 0.0, %v548
      %v550 = vpop.f32.mrf.mxu0
      %551 = vmatprep.mubr.bf16.mxu0 0
      %552 = vmatmul.mubr.bf16.gmra.mxu0 %v390
      %v553 = vpop.f32.mrf.mxu0
      %v554 = vadd.f32 0.0, %v553
      %v555 = vpop.f32.mrf.mxu0
      %v556 = vpop.f32.mrf.mxu0
      %v557 = vadd.f32 0.0, %v556
      %v558 = vpop.f32.mrf.mxu0
      %559 = vdwg.mxu0
      %v560 = vld [vmem:[%s2] sm:$0x1]
      %v562 = vlaneseq
      %v563 = vshrl.u32 %v562, 7
      %v564 = vsub.s32 0, %v563
      %v565 = vrot.slane %v560, %v564
      %v567 = vadd.f32 %v434, %v565
      %v568 = vadd.f32 %v437, %v565
      %v569 = vadd.f32 %v442, %v565
      %v570 = vadd.f32 %v445, %v565
      %v571 = vadd.f32 %v450, %v565
      %v572 = vadd.f32 %v453, %v565
      %v573 = vadd.f32 %v458, %v565
      %v574 = vadd.f32 %v461, %v565
      %v575 = vadd.f32 %v466, %v565
      %v576 = vadd.f32 %v469, %v565
      %v577 = vadd.f32 %v474, %v565
      %v578 = vadd.f32 %v477, %v565
      %v579 = vadd.f32 %v482, %v565
      %v580 = vadd.f32 %v485, %v565
      %v581 = vadd.f32 %v490, %v565
      %v582 = vadd.f32 %v493, %v565
      %v583 = vadd.f32 %v498, %v565
      %v584 = vadd.f32 %v501, %v565
      %v585 = vadd.f32 %v506, %v565
      %v586 = vadd.f32 %v509, %v565
      %v587 = vadd.f32 %v514, %v565
      %v588 = vadd.f32 %v517, %v565
      %v589 = vadd.f32 %v522, %v565
      %v590 = vadd.f32 %v525, %v565
      %v591 = vadd.f32 %v530, %v565
      %v592 = vadd.f32 %v533, %v565
      %v593 = vadd.f32 %v538, %v565
      %v594 = vadd.f32 %v541, %v565
      %v595 = vadd.f32 %v546, %v565
      %v596 = vadd.f32 %v549, %v565
      %v597 = vadd.f32 %v554, %v565
      %v598 = vadd.f32 %v557, %v565
      %v599 = vmax.f32 %v567, 0.0
      %v600 = vmax.f32 %v568, 0.0
      %v601 = vmax.f32 %v569, 0.0
      %v602 = vmax.f32 %v570, 0.0
      %v603 = vmax.f32 %v571, 0.0
      %v604 = vmax.f32 %v572, 0.0
      %v605 = vmax.f32 %v573, 0.0
      %v606 = vmax.f32 %v574, 0.0
      %v607 = vmax.f32 %v575, 0.0
      %v608 = vmax.f32 %v576, 0.0
      %v609 = vmax.f32 %v577, 0.0
      %v610 = vmax.f32 %v578, 0.0
      %v611 = vmax.f32 %v579, 0.0
      %v612 = vmax.f32 %v580, 0.0
      %v613 = vmax.f32 %v581, 0.0
      %v614 = vmax.f32 %v582, 0.0
      %v615 = vmax.f32 %v583, 0.0
      %v616 = vmax.f32 %v584, 0.0
      %v617 = vmax.f32 %v585, 0.0
      %v618 = vmax.f32 %v586, 0.0
      %v619 = vmax.f32 %v587, 0.0
      %v620 = vmax.f32 %v588, 0.0
      %v621 = vmax.f32 %v589, 0.0
      %v622 = vmax.f32 %v590, 0.0
      %v623 = vmax.f32 %v591, 0.0
      %v624 = vmax.f32 %v592, 0.0
      %v625 = vmax.f32 %v593, 0.0
      %v626 = vmax.f32 %v594, 0.0
      %v627 = vmax.f32 %v595, 0.0
      %v628 = vmax.f32 %v596, 0.0
      %v629 = vmax.f32 %v597, 0.0
      %v630 = vmax.f32 %v598, 0.0
      %v631 = vpack.c.bf16 %v600, %v599
      %v632 = vpack.c.bf16 %v602, %v601
      %v633 = vpack.c.bf16 %v604, %v603
      %v634 = vpack.c.bf16 %v606, %v605
      %v635 = vpack.c.bf16 %v608, %v607
      %v636 = vpack.c.bf16 %v610, %v609
      %v637 = vpack.c.bf16 %v612, %v611
      %v638 = vpack.c.bf16 %v614, %v613
      %v639 = vpack.c.bf16 %v616, %v615
      %v640 = vpack.c.bf16 %v618, %v617
      %v641 = vpack.c.bf16 %v620, %v619
      %v642 = vpack.c.bf16 %v622, %v621
      %v643 = vpack.c.bf16 %v624, %v623
      %v644 = vpack.c.bf16 %v626, %v625
      %v645 = vpack.c.bf16 %v628, %v627
      %v646 = vpack.c.bf16 %v630, %v629
      %v663 = vunpack.c.l.b16 %v631
      %v664 = vunpack.c.h.b16 %v631
      %v665 = vunpack.c.l.b16 %v632
      %v666 = vunpack.c.h.b16 %v632
      %v667 = vunpack.c.l.b16 %v633
      %v668 = vunpack.c.h.b16 %v633
      %v669 = vunpack.c.l.b16 %v634
      %v670 = vunpack.c.h.b16 %v634
      %v671 = vunpack.c.l.b16 %v635
      %v672 = vunpack.c.h.b16 %v635
      %v673 = vunpack.c.l.b16 %v636
      %v674 = vunpack.c.h.b16 %v636
      %v675 = vunpack.c.l.b16 %v637
      %v676 = vunpack.c.h.b16 %v637
      %v677 = vunpack.c.l.b16 %v638
      %v678 = vunpack.c.h.b16 %v638
      %v679 = vunpack.c.l.b16 %v639
      %v680 = vunpack.c.h.b16 %v639
      %v681 = vunpack.c.l.b16 %v640
      %v682 = vunpack.c.h.b16 %v640
      %v683 = vunpack.c.l.b16 %v641
      %v684 = vunpack.c.h.b16 %v641
      %v685 = vunpack.c.l.b16 %v642
      %v686 = vunpack.c.h.b16 %v642
      %v687 = vunpack.c.l.b16 %v643
      %v688 = vunpack.c.h.b16 %v643
      %v689 = vunpack.c.l.b16 %v644
      %v690 = vunpack.c.h.b16 %v644
      %v691 = vunpack.c.l.b16 %v645
      %v692 = vunpack.c.h.b16 %v645
      %v693 = vunpack.c.l.b16 %v646
      %v694 = vunpack.c.h.b16 %v646
      %v695 = vpack.c.b16 %v663, %v663
      %v696 = vpack.c.b16 %v664, %v664
      %v697 = vpack.c.b16 %v665, %v665
      %v698 = vpack.c.b16 %v666, %v666
      %v699 = vpack.c.b16 %v667, %v667
      %v700 = vpack.c.b16 %v668, %v668
      %v701 = vpack.c.b16 %v669, %v669
      %v702 = vpack.c.b16 %v670, %v670
      %v703 = vpack.c.b16 %v671, %v671
      %v704 = vpack.c.b16 %v672, %v672
      %v705 = vpack.c.b16 %v673, %v673
      %v706 = vpack.c.b16 %v674, %v674
      %v707 = vpack.c.b16 %v675, %v675
      %v708 = vpack.c.b16 %v676, %v676
      %v709 = vpack.c.b16 %v677, %v677
      %v710 = vpack.c.b16 %v678, %v678
      %v711 = vpack.c.b16 %v679, %v679
      %v712 = vpack.c.b16 %v680, %v680
      %v713 = vpack.c.b16 %v681, %v681
      %v714 = vpack.c.b16 %v682, %v682
      %v715 = vpack.c.b16 %v683, %v683
      %v716 = vpack.c.b16 %v684, %v684
      %v717 = vpack.c.b16 %v685, %v685
      %v718 = vpack.c.b16 %v686, %v686
      %v719 = vpack.c.b16 %v687, %v687
      %v720 = vpack.c.b16 %v688, %v688
      %v721 = vpack.c.b16 %v689, %v689
      %v722 = vpack.c.b16 %v690, %v690
      %v723 = vpack.c.b16 %v691, %v691
      %v724 = vpack.c.b16 %v692, %v692
      %v725 = vpack.c.b16 %v693, %v693
      %v726 = vpack.c.b16 %v694, %v694
      %vm759 = vcmask 519168
      %760 = vst.msk [vmem:[%s213] sm:$0xf] %vm759, %v695
      %761 = vst.msk [vmem:[%s213 + $0x4] sm:$0xf] %vm759, %v696
      %762 = vst.msk [vmem:[%s213 + $0x8] sm:$0xf] %vm759, %v697
      %763 = vst.msk [vmem:[%s213 + $0xc] sm:$0xf] %vm759, %v698
      %764 = vst.msk [vmem:[%s213 + $0x10] sm:$0xf] %vm759, %v699
      %765 = vst.msk [vmem:[%s213 + $0x14] sm:$0xf] %vm759, %v700
      %766 = vst.msk [vmem:[%s213 + $0x18] sm:$0xf] %vm759, %v701
      %767 = vst.msk [vmem:[%s213 + $0x1c] sm:$0xf] %vm759, %v702
      %768 = vst.msk [vmem:[%s213 + $0x20] sm:$0xf] %vm759, %v703
      %769 = vst.msk [vmem:[%s213 + $0x24] sm:$0xf] %vm759, %v704
      %770 = vst.msk [vmem:[%s213 + $0x28] sm:$0xf] %vm759, %v705
      %771 = vst.msk [vmem:[%s213 + $0x2c] sm:$0xf] %vm759, %v706
      %772 = vst.msk [vmem:[%s213 + $0x30] sm:$0xf] %vm759, %v707
      %773 = vst.msk [vmem:[%s213 + $0x34] sm:$0xf] %vm759, %v708
      %774 = vst.msk [vmem:[%s213 + $0x38] sm:$0xf] %vm759, %v709
      %775 = vst.msk [vmem:[%s213 + $0x3c] sm:$0xf] %vm759, %v710
      %776 = vst.msk [vmem:[%s213 + $0x40] sm:$0xf] %vm759, %v711
      %777 = vst.msk [vmem:[%s213 + $0x44] sm:$0xf] %vm759, %v712
      %778 = vst.msk [vmem:[%s213 + $0x48] sm:$0xf] %vm759, %v713
      %779 = vst.msk [vmem:[%s213 + $0x4c] sm:$0xf] %vm759, %v714
      %780 = vst.msk [vmem:[%s213 + $0x50] sm:$0xf] %vm759, %v715
      %781 = vst.msk [vmem:[%s213 + $0x54] sm:$0xf] %vm759, %v716
      %782 = vst.msk [vmem:[%s213 + $0x58] sm:$0xf] %vm759, %v717
      %783 = vst.msk [vmem:[%s213 + $0x5c] sm:$0xf] %vm759, %v718
      %784 = vst.msk [vmem:[%s213 + $0x60] sm:$0xf] %vm759, %v719
      %785 = vst.msk [vmem:[%s213 + $0x64] sm:$0xf] %vm759, %v720
      %786 = vst.msk [vmem:[%s213 + $0x68] sm:$0xf] %vm759, %v721
      %787 = vst.msk [vmem:[%s213 + $0x6c] sm:$0xf] %vm759, %v722
      %788 = vst.msk [vmem:[%s213 + $0x70] sm:$0xf] %vm759, %v723
      %789 = vst.msk [vmem:[%s213 + $0x74] sm:$0xf] %vm759, %v724
      %790 = vst.msk [vmem:[%s213 + $0x78] sm:$0xf] %vm759, %v725
      %791 = vst.msk [vmem:[%s213 + $0x7c] sm:$0xf] %vm759, %v726
      %s792 = smul.u32 16, %s19
      %p793 = scmp.lt.s32.totalorder %s18, 1
      %s794 = scalar_select %p793, %s18, 1
      %p795 = scmp.lt.s32.totalorder %s792, 15
      %s796 = scalar_select %p795, %s792, 15
      %s797 = smul.addr %s796, 2
      %s798 = smul.addr %s794, 32
      %s799 = sadd.s32 %s797, %s798
      %s800 = smul.addr %s799, 4
      %s801 = scalar_lea.vmem %s3, %s800
      // Predicated region
      $region33: #{truncated_vgg16_forward.2} parent=31 // pred_check
        %p802 = pneg %p116
      $region34: #{truncated_vgg16_forward.2} parent=31 // pred_check_branch
        %804 = sbr.rel (%p802) target = $region36
      $region35: #{truncated_vgg16_forward.2} parent=31 // pred_region
        %s805 = smul.u32 16, %s19
      $region36: #{truncated_vgg16_forward.2} parent=31 // pred_fallthru
        _
    $region32: #{truncated_vgg16_forward.2} parent=5 // pred_fallthru
      _
    %p806 = scmp.le.s32.totalorder 2, %s9
    // Predicated region
    $region37: #{truncated_vgg16_forward.2} parent=5 // pred_check
      %p807 = pneg %p806
    $region38: #{truncated_vgg16_forward.2} parent=5 // pred_check_branch
      %809 = sbr.rel (%p807) target = $region40
    $region39: #{truncated_vgg16_forward.2} parent=5 // pred_region
      %s810 = ssub.s32 %s9, 2
      // Predicated region
      $region41: #{truncated_vgg16_forward.2} parent=39 // pred_check
        %p811 = pneg %p122
      $region42: #{truncated_vgg16_forward.2} parent=39 // pred_check_branch
        %813 = sbr.rel (%p811) target = $region44
      $region43: #{truncated_vgg16_forward.2} parent=39 // pred_region
        %s814 = smul.u32 16, %s21
        %p815 = scmp.lt.s32.totalorder %s20, 1
        %s816 = scalar_select %p815, %s20, 1
        %p817 = scmp.lt.s32.totalorder %s814, 15
        %s818 = scalar_select %p817, %s814, 15
        %s819 = smul.addr %s818, 2
        %s820 = smul.addr %s816, 32
        %s821 = sadd.s32 %s819, %s820
        %s822 = smul.addr %s821, 4
        %s823 = scalar_lea.vmem %s3, %s822
      $region44: #{truncated_vgg16_forward.2} parent=39 // pred_fallthru
        _
    $region40: #{truncated_vgg16_forward.2} parent=5 // pred_fallthru
      _
  $region6: #{truncated_vgg16_forward.2} parent=0 // loop_footer
    %s13 = sadd.s32 1, %s9
  $region7: #{truncated_vgg16_forward.2} parent=0 // loop_footer_branch
    %8 = sbr.rel target = $region3
  $region8: #{truncated_vgg16_forward.2} parent=0 // loop_exit
    _

// kernel: truncated_vgg16_forward.3
$region0: #{truncated_vgg16_forward.3}
  #allocation0 [shape = 'u32[]', space=smem, size = 0x4, offset = 0x4, fixed_abs, tag = 'smem constant byte address 0x4 - core index']
  #allocation1 [shape = 'u32[144,128]{1,0:T(1,128)}', space=vmem, size = 0x12000, scoped, tag = 'internal scratch']
  %s0 = inlined_call_operand.vmem [shape: bf16[2,16,16,64], index: 0, kind: input, shape index: {}, may-alias: {0,1,2}]
  %s1 = inlined_call_operand.vmem [shape: bf16[2,16,16,64], index: 1, kind: input, shape index: {}, may-alias: {0,1,2}]
  %s2 = inlined_call_operand.vmem [shape: bf16[2,16,16,64], index: 2, kind: input, shape index: {}, may-alias: {0,1,2}]
  %s3 = inlined_call_operand.vmem [shape: bf16[3,64,192], index: 3, kind: input, shape index: {}]
  %s4 = inlined_call_operand.vmem [shape: f32[1,1,64], index: 4, kind: input, shape index: {}]
  %s5 = inlined_call_operand.hbm [shape: f32[2,8,8,64], index: 5, kind: output, shape index: {}]
  %s6 = sld [smem:[#allocation0]]
  $region53: #{truncated_vgg16_forward.3} parent=0
    _
  %s8 = ssub.s32 1, %s6
  %s9 = scalar_select 0, %s8, %s6
  $region1: #{truncated_vgg16_forward.3} parent=0
    #allocation2 [shape = 'u8[65536]{0}', space=vmem, size = 0x10000, scoped, tag = 'output window, operand 0']
    #allocation3 [shape = 's32[2]{0}', space=sflag, size = 0x8, scoped, tag = 'scoped memory for truncated_vgg16_forward.3']
    %10 = vsyncpa [#allocation3], 0
    %s11 = scalar_lea.sflag [#allocation3], 1
    %12 = vsyncpa %s11, 0
    loop: start=0, step=1, limit=4
    $region2: #{truncated_vgg16_forward.3} parent=1 // loop_pre_header
      _
    $region3: #{truncated_vgg16_forward.3} parent=1 // loop_header
      %s14 = sphi 0, %s18
      %p15 = scmp.ge.s32.totalorder %s14, 4
      %s21 = sphi 0, %s33
      %s22 = sphi 0, %s29
      %s23 = sphi 0, %s21
      %s24 = sphi 0, %s22
      %s25 = sphi 0, %s23
      %s26 = sphi 0, %s24
      %s38 = sphi 0, %s40
      %s41 = sphi 0, %s38
      %s42 = sphi 0, %s41
      %s58 = sphi 0, %s42
      %s74 = sphi 0, %s76
      %s77 = sphi 0, %s74
      %s78 = sphi 0, %s77
      %s94 = sphi 0, %s78
      %s110 = sphi 0, %s112
      %s113 = sphi 0, %s110
      %s114 = sphi 0, %s113
      %s130 = sphi 0, %s114
      %s134 = sphi 0, %s134
      %s136 = sphi 0, %s134
      %s137 = sphi 0, %s136
      %s151 = sphi 0, %s137
      %s155 = sphi 0, %s155
      %s157 = sphi 0, %s155
      %s158 = sphi 0, %s157
      %s172 = sphi 0, %s158
      %s180 = sphi 0, %s182
      %s183 = sphi 0, %s180
      %s184 = sphi 0, %s183
      %s200 = sphi 0, %s184
    $region4: #{truncated_vgg16_forward.3} parent=1 // loop_header_branch
      %17 = sbr.rel (%p15) target = $region8
    $region5: #{truncated_vgg16_forward.3} parent=1 // loop_body
      %s19 = ssub.s32 %s14, 1
      %s20 = ssub.s32 %s14, 2
      %s27 = sadd.s32 1, %s22
      %p28 = scmp.ge.s32.totalorder %s27, 1
      %s29 = scalar_select %p28, 0, %s27
      %s30 = sadd.s32 1, %s21
      %s31 = scalar_select %p28, %s30, %s21
      %p32 = scmp.ge.s32.totalorder %s31, 2
      %s33 = scalar_select %p32, 0, %s31
      %s34 = ssub.s32 %s21, %s33
      %s35 = ssub.s32 %s22, %s29
      %s36 = sor.u32 %s34, %s35
      %p37 = scmp.eq.s32.totalorder %s36, 0
      %s39 = sadd.s32 %s38, 1
      %s40 = scalar_select %p37, %s38, %s39
      %p43 = pneg %p37
      %p44 = scmp.eq.s32.totalorder %s14, 1
      %p45 = por %p43, %p44
      %p46 = scmp.ne.s32.totalorder %s38, %s41
      %p47 = scmp.eq.s32.totalorder %s14, 0
      %p48 = por %p46, %p47
      %p49 = scmp.ne.s32.totalorder %s38, %s41
      %p50 = scmp.eq.s32.totalorder %s19, 1
      %p51 = por %p49, %p50
      %p52 = scmp.ne.s32.totalorder %s41, %s42
      %p53 = scmp.eq.s32.totalorder %s19, 0
      %p54 = por %p52, %p53
      %p55 = scmp.ne.s32.totalorder %s41, %s42
      %p56 = scmp.eq.s32.totalorder %s20, 1
      %p57 = por %p55, %p56
      %p59 = scmp.ne.s32.totalorder %s42, %s58
      %p60 = scmp.eq.s32.totalorder %s20, 0
      %p61 = por %p59, %p60
      %s62 = smul.u32 %s22, 16
      %s63 = ssub.s32 %s62, 1
      %p64 = scmp.gt.s32.totalorder %s63, 0
      %s65 = scalar_select %p64, %s63, 0
      %s66 = smul.u32 %s29, 16
      %s67 = ssub.s32 %s66, 1
      %p68 = scmp.gt.s32.totalorder %s67, 0
      %s69 = scalar_select %p68, %s67, 0
      %s70 = ssub.s32 %s21, %s33
      %s71 = ssub.s32 %s65, %s69
      %s72 = sor.u32 %s70, %s71
      %p73 = scmp.eq.s32.totalorder %s72, 0
      %s75 = sadd.s32 %s74, 1
      %s76 = scalar_select %p73, %s74, %s75
      %p79 = pneg %p73
      %p80 = scmp.eq.s32.totalorder %s14, 1
      %p81 = por %p79, %p80
      %p82 = scmp.ne.s32.totalorder %s74, %s77
      %p83 = scmp.eq.s32.totalorder %s14, 0
      %p84 = por %p82, %p83
      %p85 = scmp.ne.s32.totalorder %s74, %s77
      %p86 = scmp.eq.s32.totalorder %s19, 1
      %p87 = por %p85, %p86
      %p88 = scmp.ne.s32.totalorder %s77, %s78
      %p89 = scmp.eq.s32.totalorder %s19, 0
      %p90 = por %p88, %p89
      %p91 = scmp.ne.s32.totalorder %s77, %s78
      %p92 = scmp.eq.s32.totalorder %s20, 1
      %p93 = por %p91, %p92
      %p95 = scmp.ne.s32.totalorder %s78, %s94
      %p96 = scmp.eq.s32.totalorder %s20, 0
      %p97 = por %p95, %p96
      %s98 = sadd.s32 %s22, 1
      %s99 = smul.u32 %s98, 16
      %p100 = scmp.lt.s32.totalorder %s99, 15
      %s101 = scalar_select %p100, %s99, 15
      %s102 = sadd.s32 %s29, 1
      %s103 = smul.u32 %s102, 16
      %p104 = scmp.lt.s32.totalorder %s103, 15
      %s105 = scalar_select %p104, %s103, 15
      %s106 = ssub.s32 %s21, %s33
      %s107 = ssub.s32 %s101, %s105
      %s108 = sor.u32 %s106, %s107
      %p109 = scmp.eq.s32.totalorder %s108, 0
      %s111 = sadd.s32 %s110, 1
      %s112 = scalar_select %p109, %s110, %s111
      %p115 = pneg %p109
      %p116 = scmp.eq.s32.totalorder %s14, 1
      %p117 = por %p115, %p116
      %p118 = scmp.ne.s32.totalorder %s110, %s113
      %p119 = scmp.eq.s32.totalorder %s14, 0
      %p120 = por %p118, %p119
      %p121 = scmp.ne.s32.totalorder %s110, %s113
      %p122 = scmp.eq.s32.totalorder %s19, 1
      %p123 = por %p121, %p122
      %p124 = scmp.ne.s32.totalorder %s113, %s114
      %p125 = scmp.eq.s32.totalorder %s19, 0
      %p126 = por %p124, %p125
      %p127 = scmp.ne.s32.totalorder %s113, %s114
      %p128 = scmp.eq.s32.totalorder %s20, 1
      %p129 = por %p127, %p128
      %p131 = scmp.ne.s32.totalorder %s114, %s130
      %p132 = scmp.eq.s32.totalorder %s20, 0
      %p133 = por %p131, %p132
      %s135 = sadd.s32 %s134, 1
      %p138 = scmp.eq.s32.totalorder %s14, 1
      %p139 = scmp.ne.s32.totalorder %s134, %s136
      %p140 = scmp.eq.s32.totalorder %s14, 0
      %p141 = por %p139, %p140
      %p142 = scmp.ne.s32.totalorder %s134, %s136
      %p143 = scmp.eq.s32.totalorder %s19, 1
      %p144 = por %p142, %p143
      %p145 = scmp.ne.s32.totalorder %s136, %s137
      %p146 = scmp.eq.s32.totalorder %s19, 0
      %p147 = por %p145, %p146
      %p148 = scmp.ne.s32.totalorder %s136, %s137
      %p149 = scmp.eq.s32.totalorder %s20, 1
      %p150 = por %p148, %p149
      %p152 = scmp.ne.s32.totalorder %s137, %s151
      %p153 = scmp.eq.s32.totalorder %s20, 0
      %p154 = por %p152, %p153
      %s156 = sadd.s32 %s155, 1
      %p159 = scmp.eq.s32.totalorder %s14, 1
      %p160 = scmp.ne.s32.totalorder %s155, %s157
      %p161 = scmp.eq.s32.totalorder %s14, 0
      %p162 = por %p160, %p161
      %p163 = scmp.ne.s32.totalorder %s155, %s157
      %p164 = scmp.eq.s32.totalorder %s19, 1
      %p165 = por %p163, %p164
      %p166 = scmp.ne.s32.totalorder %s157, %s158
      %p167 = scmp.eq.s32.totalorder %s19, 0
      %p168 = por %p166, %p167
      %p169 = scmp.ne.s32.totalorder %s157, %s158
      %p170 = scmp.eq.s32.totalorder %s20, 1
      %p171 = por %p169, %p170
      %p173 = scmp.ne.s32.totalorder %s158, %s172
      %p174 = scmp.eq.s32.totalorder %s20, 0
      %p175 = por %p173, %p174
      %s176 = ssub.s32 %s21, %s33
      %s177 = ssub.s32 %s22, %s29
      %s178 = sor.u32 %s176, %s177
      %p179 = scmp.eq.s32.totalorder %s178, 0
      %s181 = sadd.s32 %s180, 1
      %s182 = scalar_select %p179, %s180, %s181
      %p185 = pneg %p179
      %p186 = scmp.eq.s32.totalorder %s14, 1
      %p187 = por %p185, %p186
      %p188 = scmp.ne.s32.totalorder %s180, %s183
      %p189 = scmp.eq.s32.totalorder %s14, 0
      %p190 = por %p188, %p189
      %p191 = scmp.ne.s32.totalorder %s180, %s183
      %p192 = scmp.eq.s32.totalorder %s19, 1
      %p193 = por %p191, %p192
      %p194 = scmp.ne.s32.totalorder %s183, %s184
      %p195 = scmp.eq.s32.totalorder %s19, 0
      %p196 = por %p194, %p195
      %p197 = scmp.ne.s32.totalorder %s183, %s184
      %p198 = scmp.eq.s32.totalorder %s20, 1
      %p199 = por %p197, %p198
      %p201 = scmp.ne.s32.totalorder %s184, %s200
      %p202 = scmp.eq.s32.totalorder %s20, 0
      %p203 = por %p201, %p202
      %p204 = scmp.le.s32.totalorder 1, %s14
      %p205 = scmp.lt.s32.totalorder %s14, 3
      %p206 = pnand %p204, %p205
      %p207 = pneg %p206
      // Predicated region
      $region9: #{truncated_vgg16_forward.3} parent=5 // pred_check
        _
      $region10: #{truncated_vgg16_forward.3} parent=5 // pred_check_branch
        %209 = sbr.rel (%p206) target = $region12
      $region11: #{truncated_vgg16_forward.3} parent=5 // pred_region
        %s210 = ssub.s32 %s14, 1
        // Predicated region
        $region13: #{truncated_vgg16_forward.3} parent=11 // pred_check
          %p211 = pneg %p147
        $region14: #{truncated_vgg16_forward.3} parent=11 // pred_check_branch
          %213 = sbr.rel (%p211) target = $region16
        $region15: #{truncated_vgg16_forward.3} parent=11 // pred_region
          _
        $region16: #{truncated_vgg16_forward.3} parent=11 // pred_fallthru
          _
        // Predicated region
        $region17: #{truncated_vgg16_forward.3} parent=11 // pred_check
          %p214 = pneg %p168
        $region18: #{truncated_vgg16_forward.3} parent=11 // pred_check_branch
          %216 = sbr.rel (%p214) target = $region20
        $region19: #{truncated_vgg16_forward.3} parent=11 // pred_region
          _
        $region20: #{truncated_vgg16_forward.3} parent=11 // pred_fallthru
          _
      $region12: #{truncated_vgg16_forward.3} parent=5 // pred_fallthru
        _
      %p217 = scmp.lt.s32.totalorder %s14, 2
      // Predicated region
      $region21: #{truncated_vgg16_forward.3} parent=5 // pred_check
        %p218 = pneg %p217
      $region22: #{truncated_vgg16_forward.3} parent=5 // pred_check_branch
        %220 = sbr.rel (%p218) target = $region24
      $region23: #{truncated_vgg16_forward.3} parent=5 // pred_region
        // Predicated region
        $region25: #{truncated_vgg16_forward.3} parent=23 // pred_check
          %p221 = pneg %p48
        $region26: #{truncated_vgg16_forward.3} parent=23 // pred_check_branch
          %223 = sbr.rel (%p221) target = $region28
        $region27: #{truncated_vgg16_forward.3} parent=23 // pred_region
          %s224 = smul.u32 16, %s22
          %p225 = scmp.lt.s32.totalorder %s21, 1
          %s226 = scalar_select %p225, %s21, 1
          %p227 = scmp.lt.s32.totalorder %s224, 15
          %s228 = scalar_select %p227, %s224, 15
          %s229 = smul.addr %s228, 2
          %s230 = smul.addr %s226, 32
          %s231 = sadd.s32 %s229, %s230
          %s232 = smul.addr %s231, 4
          %s233 = scalar_lea.vmem %s0, %s232
          %s234 = smul.u32 16, %s22
        $region28: #{truncated_vgg16_forward.3} parent=23 // pred_fallthru
          _
        // Predicated region
        $region29: #{truncated_vgg16_forward.3} parent=23 // pred_check
          %p235 = pneg %p84
        $region30: #{truncated_vgg16_forward.3} parent=23 // pred_check_branch
          %237 = sbr.rel (%p235) target = $region32
        $region31: #{truncated_vgg16_forward.3} parent=23 // pred_region
          %s238 = smul.u32 %s22, 16
          %s239 = ssub.s32 %s238, 1
          %p240 = scmp.gt.s32.totalorder %s239, 0
          %s241 = scalar_select %p240, %s239, 0
          %p242 = scmp.lt.s32.totalorder %s21, 1
          %s243 = scalar_select %p242, %s21, 1
          %p244 = scmp.lt.s32.totalorder %s241, 15
          %s245 = scalar_select %p244, %s241, 15
          %s246 = smul.addr %s245, 2
          %s247 = smul.addr %s243, 32
          %s248 = sadd.s32 %s246, %s247
          %s249 = smul.addr %s248, 4
          %s250 = scalar_lea.vmem %s1, %s249
          %s251 = smul.u32 %s22, 16
          %s252 = ssub.s32 %s251, 1
          %p253 = scmp.gt.s32.totalorder %s252, 0
          %s254 = scalar_select %p253, %s252, 0
        $region32: #{truncated_vgg16_forward.3} parent=23 // pred_fallthru
          _
        // Predicated region
        $region33: #{truncated_vgg16_forward.3} parent=23 // pred_check
          %p255 = pneg %p120
        $region34: #{truncated_vgg16_forward.3} parent=23 // pred_check_branch
          %257 = sbr.rel (%p255) target = $region36
        $region35: #{truncated_vgg16_forward.3} parent=23 // pred_region
          %s258 = sadd.s32 %s22, 1
          %s259 = smul.u32 %s258, 16
          %p260 = scmp.lt.s32.totalorder %s259, 15
          %s261 = scalar_select %p260, %s259, 15
          %p262 = scmp.lt.s32.totalorder %s21, 1
          %s263 = scalar_select %p262, %s21, 1
          %p264 = scmp.lt.s32.totalorder %s261, 15
          %s265 = scalar_select %p264, %s261, 15
          %s266 = smul.addr %s265, 2
          %s267 = smul.addr %s263, 32
          %s268 = sadd.s32 %s266, %s267
          %s269 = smul.addr %s268, 4
          %s270 = scalar_lea.vmem %s2, %s269
          %s271 = sadd.s32 %s22, 1
          %s272 = smul.u32 %s271, 16
          %p273 = scmp.lt.s32.totalorder %s272, 15
          %s274 = scalar_select %p273, %s272, 15
        $region36: #{truncated_vgg16_forward.3} parent=23 // pred_fallthru
          _
      $region24: #{truncated_vgg16_forward.3} parent=5 // pred_fallthru
        _
      %p275 = scmp.le.s32.totalorder 1, %s14
      %p276 = scmp.lt.s32.totalorder %s14, 3
      %p277 = pnand %p275, %p276
      %p278 = pneg %p277
      // Predicated region
      $region37: #{truncated_vgg16_forward.3} parent=5 // pred_check
        _
      $region38: #{truncated_vgg16_forward.3} parent=5 // pred_check_branch
        %280 = sbr.rel (%p277) target = $region40
      $region39: #{truncated_vgg16_forward.3} parent=5 // pred_region
        %s281 = ssub.s32 %s14, 1
        %s282 = smul.u32 16, %s24
        %p283 = scmp.lt.s32.totalorder %s23, 1
        %s284 = scalar_select %p283, %s23, 1
        %p285 = scmp.lt.s32.totalorder %s282, 15
        %s286 = scalar_select %p285, %s282, 15
        %s287 = smul.addr %s286, 2
        %s288 = smul.addr %s284, 32
        %s289 = sadd.s32 %s287, %s288
        %s290 = smul.addr %s289, 4
        %s291 = scalar_lea.vmem %s0, %s290
        %p292 = pneg %p54
        %p293 = pneg %p51
        %s294 = smul.u32 %s24, 16
        %s295 = ssub.s32 %s294, 1
        %p296 = scmp.gt.s32.totalorder %s295, 0
        %s297 = scalar_select %p296, %s295, 0
        %p298 = scmp.lt.s32.totalorder %s23, 1
        %s299 = scalar_select %p298, %s23, 1
        %p300 = scmp.lt.s32.totalorder %s297, 15
        %s301 = scalar_select %p300, %s297, 15
        %s302 = smul.addr %s301, 2
        %s303 = smul.addr %s299, 32
        %s304 = sadd.s32 %s302, %s303
        %s305 = smul.addr %s304, 4
        %s306 = scalar_lea.vmem %s1, %s305
        %p307 = pneg %p90
        %p308 = pneg %p87
        %s309 = sadd.s32 %s24, 1
        %s310 = smul.u32 %s309, 16
        %p311 = scmp.lt.s32.totalorder %s310, 15
        %s312 = scalar_select %p311, %s310, 15
        %p313 = scmp.lt.s32.totalorder %s23, 1
        %s314 = scalar_select %p313, %s23, 1
        %p315 = scmp.lt.s32.totalorder %s312, 15
        %s316 = scalar_select %p315, %s312, 15
        %s317 = smul.addr %s316, 2
        %s318 = smul.addr %s314, 32
        %s319 = sadd.s32 %s317, %s318
        %s320 = smul.addr %s319, 4
        %s321 = scalar_lea.vmem %s2, %s320
        %p322 = pneg %p126
        %p323 = pneg %p123
        %p324 = pneg %p147
        %p325 = pneg %p144
        %p326 = pneg %p168
        %p327 = pneg %p165
        %p328 = pneg %p196
        %p329 = pneg %p193
        %s330 = sand.u32 %s183, 1
        %s331 = scalar_lea.sflag [#allocation3], %s330
        %s332 = sand.u32 %s183, 1
        %s333 = smul.addr %s332, 64
        %s334 = scalar_lea.vmem [#allocation2], %s333
        %s335 = smul.u32 16, %s24
        %p336 = scmp.lt.s32.totalorder %s23, 1
        %s337 = scalar_select %p336, %s23, 1
        %p338 = scmp.lt.s32.totalorder %s335, 15
        %s339 = scalar_select %p338, %s335, 15
        %s340 = smul.addr %s339, 2
        %s341 = smul.addr %s337, 32
        %s342 = sadd.s32 %s340, %s341
        %s343 = smul.addr %s342, 4
        %s344 = scalar_lea.vmem %s0, %s343
        %s345 = smul.u32 16, %s24
        %s346 = smul.u32 %s24, 16
        %s347 = ssub.s32 %s346, 1
        %p348 = scmp.gt.s32.totalorder %s347, 0
        %s349 = scalar_select %p348, %s347, 0
        %p350 = scmp.lt.s32.totalorder %s23, 1
        %s351 = scalar_select %p350, %s23, 1
        %p352 = scmp.lt.s32.totalorder %s349, 15
        %s353 = scalar_select %p352, %s349, 15
        %s354 = smul.addr %s353, 2
        %s355 = smul.addr %s351, 32
        %s356 = sadd.s32 %s354, %s355
        %s357 = smul.addr %s356, 4
        %s358 = scalar_lea.vmem %s1, %s357
        %s359 = smul.u32 %s24, 16
        %s360 = ssub.s32 %s359, 1
        %p361 = scmp.gt.s32.totalorder %s360, 0
        %s362 = scalar_select %p361, %s360, 0
        %s363 = sadd.s32 %s24, 1
        %s364 = smul.u32 %s363, 16
        %p365 = scmp.lt.s32.totalorder %s364, 15
        %s366 = scalar_select %p365, %s364, 15
        %p367 = scmp.lt.s32.totalorder %s23, 1
        %s368 = scalar_select %p367, %s23, 1
        %p369 = scmp.lt.s32.totalorder %s366, 15
        %s370 = scalar_select %p369, %s366, 15
        %s371 = smul.addr %s370, 2
        %s372 = smul.addr %s368, 32
        %s373 = sadd.s32 %s371, %s372
        %s374 = smul.addr %s373, 4
        %s375 = scalar_lea.vmem %s2, %s374
        %s376 = sadd.s32 %s24, 1
        %s377 = smul.u32 %s376, 16
        %p378 = scmp.lt.s32.totalorder %s377, 15
        %s379 = scalar_select %p378, %s377, 15
        %s380 = smul.u32 8, %s24
        %v382 = vld [vmem:[%s344] sm:$0xf]
        %v383 = vld [vmem:[%s344 + $0x4] sm:$0xf]
        %v384 = vld [vmem:[%s344 + $0x8] sm:$0xf]
        %v385 = vld [vmem:[%s344 + $0xc] sm:$0xf]
        %v386 = vld [vmem:[%s344 + $0x10] sm:$0xf]
        %v387 = vld [vmem:[%s344 + $0x14] sm:$0xf]
        %v388 = vld [vmem:[%s344 + $0x18] sm:$0xf]
        %v389 = vld [vmem:[%s344 + $0x1c] sm:$0xf]
        %v390 = vld [vmem:[%s344 + $0x20] sm:$0xf]
        %v391 = vld [vmem:[%s344 + $0x24] sm:$0xf]
        %v392 = vld [vmem:[%s344 + $0x28] sm:$0xf]
        %v393 = vld [vmem:[%s344 + $0x2c] sm:$0xf]
        %v394 = vld [vmem:[%s344 + $0x30] sm:$0xf]
        %v395 = vld [vmem:[%s344 + $0x34] sm:$0xf]
        %v396 = vld [vmem:[%s344 + $0x38] sm:$0xf]
        %v397 = vld [vmem:[%s344 + $0x3c] sm:$0xf]
        %v398 = vld [vmem:[%s344 + $0x40] sm:$0xf]
        %v399 = vld [vmem:[%s344 + $0x44] sm:$0xf]
        %v400 = vld [vmem:[%s344 + $0x48] sm:$0xf]
        %v401 = vld [vmem:[%s344 + $0x4c] sm:$0xf]
        %v402 = vld [vmem:[%s344 + $0x50] sm:$0xf]
        %v403 = vld [vmem:[%s344 + $0x54] sm:$0xf]
        %v404 = vld [vmem:[%s344 + $0x58] sm:$0xf]
        %v405 = vld [vmem:[%s344 + $0x5c] sm:$0xf]
        %v406 = vld [vmem:[%s344 + $0x60] sm:$0xf]
        %v407 = vld [vmem:[%s344 + $0x64] sm:$0xf]
        %v408 = vld [vmem:[%s344 + $0x68] sm:$0xf]
        %v409 = vld [vmem:[%s344 + $0x6c] sm:$0xf]
        %v410 = vld [vmem:[%s344 + $0x70] sm:$0xf]
        %v411 = vld [vmem:[%s344 + $0x74] sm:$0xf]
        %v412 = vld [vmem:[%s344 + $0x78] sm:$0xf]
        %v413 = vld [vmem:[%s344 + $0x7c] sm:$0xf]
        %v414 = vld [vmem:[%s358] sm:$0xf]
        %v415 = vld [vmem:[%s358 + $0x4] sm:$0xf]
        %p416 = scmp.gt.s32.totalorder %s24, 0
        %s417 = scalar_select %p416, 1, 0
        %s418 = scvt.s32.f32 %s417
        %p420 = scmp.ne.f32.partialorder %s418, %s418
        %s421 = sshrl.u32 %s418, 16
        %s422 = sand.u32 %s421, 1
        %s423 = sadd.s32 32767, %s422
        %s424 = sadd.s32 %s418, %s423
        %s425 = sand.u32 %s424, 4294901760
        %s426 = scalar_select %p420, 2143289344, %s425
        %s428 = sshrl.u32 %s426, 16
        %s429 = sshll.u32 %s428, 16
        %s430 = sor.u32 %s428, %s429
        %v431 = vstv %s430
        %v433 = vmul.bf16 %v414, %v431
        %v434 = vmul.bf16 %v415, %v431
        %v435 = vld [vmem:[%s375] sm:$0xf]
        %v436 = vld [vmem:[%s375 + $0x4] sm:$0xf]
        %p437 = scmp.lt.s32.totalorder %s24, 0
        %s438 = scalar_select %p437, 1, 0
        %s439 = scvt.s32.f32 %s438
        %p441 = scmp.ne.f32.partialorder %s439, %s439
        %s442 = sshrl.u32 %s439, 16
        %s443 = sand.u32 %s442, 1
        %s444 = sadd.s32 32767, %s443
        %s445 = sadd.s32 %s439, %s444
        %s446 = sand.u32 %s445, 4294901760
        %s447 = scalar_select %p441, 2143289344, %s446
        %s449 = sshrl.u32 %s447, 16
        %s450 = sshll.u32 %s449, 16
        %s451 = sor.u32 %s449, %s450
        %v452 = vstv %s451
        %v454 = vmul.bf16 %v435, %v452
        %v455 = vmul.bf16 %v436, %v452
        %v456 = vld [vmem:[%s3] sm:$0xff]
        %v457 = vld [vmem:[%s3 + $0x8] sm:$0xff]
        %v458 = vld [vmem:[%s3 + $0x10] sm:$0xff]
        %v459 = vld [vmem:[%s3 + $0x18] sm:$0xff]
        %v460 = vld [vmem:[%s3 + $0x20] sm:$0xff]
        %v461 = vld [vmem:[%s3 + $0x28] sm:$0xff]
        %v462 = vld [vmem:[%s3 + $0x30] sm:$0xff]
        %v463 = vld [vmem:[%s3 + $0x38] sm:$0xff]
        %s464 = scalar_lea.vmem %s3, 64
        %v465 = vld [vmem:[%s464] sm:$0xff]
        %v466 = vld [vmem:[%s464 + $0x8] sm:$0xff]
        %v467 = vld [vmem:[%s464 + $0x10] sm:$0xff]
        %v468 = vld [vmem:[%s464 + $0x18] sm:$0xff]
        %v469 = vld [vmem:[%s464 + $0x20] sm:$0xff]
        %v470 = vld [vmem:[%s464 + $0x28] sm:$0xff]
        %v471 = vld [vmem:[%s464 + $0x30] sm:$0xff]
        %v472 = vld [vmem:[%s464 + $0x38] sm:$0xff]
        %v505 = vunpack.c.l.b16 %v382
        %v506 = vunpack.c.l.b16 %v383
        %v507 = vunpack.c.l.b16 %v384
        %v508 = vunpack.c.l.b16 %v385
        %v509 = vunpack.c.l.b16 %v386
        %v510 = vunpack.c.l.b16 %v387
        %v511 = vunpack.c.l.b16 %v388
        %v512 = vunpack.c.l.b16 %v389
        %v513 = vunpack.c.l.b16 %v390
        %v514 = vunpack.c.l.b16 %v391
        %v515 = vunpack.c.l.b16 %v392
        %v516 = vunpack.c.l.b16 %v393
        %v517 = vunpack.c.l.b16 %v394
        %v518 = vunpack.c.l.b16 %v395
        %v519 = vunpack.c.l.b16 %v396
        %v520 = vunpack.c.l.b16 %v397
        %v521 = vunpack.c.l.b16 %v398
        %v522 = vunpack.c.l.b16 %v399
        %v523 = vunpack.c.l.b16 %v400
        %v524 = vunpack.c.l.b16 %v401
        %v525 = vunpack.c.l.b16 %v402
        %v526 = vunpack.c.l.b16 %v403
        %v527 = vunpack.c.l.b16 %v404
        %v528 = vunpack.c.l.b16 %v405
        %v529 = vunpack.c.l.b16 %v406
        %v530 = vunpack.c.l.b16 %v407
        %v531 = vunpack.c.l.b16 %v408
        %v532 = vunpack.c.l.b16 %v409
        %v533 = vunpack.c.l.b16 %v410
        %v534 = vunpack.c.l.b16 %v411
        %v535 = vunpack.c.l.b16 %v412
        %v536 = vunpack.c.l.b16 %v413
        %v537 = vpack.c.b16 %v506, %v505
        %v538 = vpack.c.b16 %v508, %v507
        %v539 = vpack.c.b16 %v510, %v509
        %v540 = vpack.c.b16 %v512, %v511
        %v541 = vpack.c.b16 %v514, %v513
        %v542 = vpack.c.b16 %v516, %v515
        %v543 = vpack.c.b16 %v518, %v517
        %v544 = vpack.c.b16 %v520, %v519
        %v545 = vpack.c.b16 %v522, %v521
        %v546 = vpack.c.b16 %v524, %v523
        %v547 = vpack.c.b16 %v526, %v525
        %v548 = vpack.c.b16 %v528, %v527
        %v549 = vpack.c.b16 %v530, %v529
        %v550 = vpack.c.b16 %v532, %v531
        %v551 = vpack.c.b16 %v534, %v533
        %v552 = vpack.c.b16 %v536, %v535
        %v561 = vunpack.c.l.b16 %v465
        %v562 = vunpack.c.h.b16 %v465
        %v563 = vunpack.c.l.b16 %v466
        %v564 = vunpack.c.h.b16 %v466
        %v565 = vunpack.c.l.b16 %v467
        %v566 = vunpack.c.h.b16 %v467
        %v567 = vunpack.c.l.b16 %v468
        %v568 = vunpack.c.h.b16 %v468
        %v569 = vunpack.c.l.b16 %v469
        %v570 = vunpack.c.h.b16 %v469
        %v571 = vunpack.c.l.b16 %v470
        %v572 = vunpack.c.h.b16 %v470
        %v573 = vunpack.c.l.b16 %v471
        %v574 = vunpack.c.h.b16 %v471
        %v575 = vunpack.c.l.b16 %v472
        %v576 = vunpack.c.h.b16 %v472
        %v577 = vpack.c.b16 %v563, %v561
        %v578 = vpack.c.b16 %v564, %v562
        %v579 = vpack.c.b16 %v567, %v565
        %v580 = vpack.c.b16 %v568, %v566
        %v581 = vpack.c.b16 %v571, %v569
        %v582 = vpack.c.b16 %v572, %v570
        %v583 = vpack.c.b16 %v575, %v573
        %v584 = vpack.c.b16 %v576, %v574
        %vm593 = vcmask 523264
        %v595 = vsel %vm593, %v537, 0
        %v598 = vsel %vm593, %v538, 0
        %v601 = vsel %vm593, %v539, 0
        %v604 = vsel %vm593, %v540, 0
        %v607 = vsel %vm593, %v541, 0
        %v610 = vsel %vm593, %v542, 0
        %v613 = vsel %vm593, %v543, 0
        %v616 = vsel %vm593, %v544, 0
        %v619 = vsel %vm593, %v545, 0
        %v622 = vsel %vm593, %v546, 0
        %v625 = vsel %vm593, %v547, 0
        %v628 = vsel %vm593, %v548, 0
        %v631 = vsel %vm593, %v549, 0
        %v634 = vsel %vm593, %v550, 0
        %v637 = vsel %vm593, %v551, 0
        %v640 = vsel %vm593, %v552, 0
        %642 = vmatprep.subr.bf16.mxu0 0
        %643 = vmatpush1.bf16.msra.mxu0 0
        %644 = vmatprep.subr.bf16.mxu0 0
        %645 = vmatpush1.bf16.msra.mxu0 0
        %646 = vmatprep.subr.bf16.mxu0 0
        %647 = vmatpush1.bf16.msra.mxu0 0
        %648 = vmatprep.subr.bf16.mxu0 0
        %649 = vmatpush1.bf16.msra.mxu0 0
        %650 = vmatprep.subr.bf16.mxu0 %v584
        %651 = vmatpush1.bf16.msra.mxu0 %v583
        %652 = vmatprep.subr.bf16.mxu0 %v582
        %653 = vmatpush1.bf16.msra.mxu0 %v581
        %654 = vmatprep.subr.bf16.mxu0 %v580
        %655 = vmatpush1.bf16.msra.mxu0 %v579
        %656 = vmatprep.subr.bf16.mxu0 %v578
        %657 = vmatpush1.bf16.msra.mxu0 %v577
        %658 = vmatprep.subr.bf16.mxu0 0
        %659 = vmatpush2.bf16.msra.mxu0 0
        %660 = vmatprep.subr.bf16.mxu0 0
        %661 = vmatpush2.bf16.msra.mxu0 0
        %662 = vmatprep.subr.bf16.mxu0 0
        %663 = vmatpush2.bf16.msra.mxu0 0
        %664 = vmatprep.subr.bf16.mxu0 0
        %665 = vmatpush2.bf16.msra.mxu0 0
        %666 = vmatprep.subr.bf16.mxu0 0
        %667 = vmatpush2.bf16.msra.mxu0 0
        %668 = vmatprep.subr.bf16.mxu0 0
        %669 = vmatpush2.bf16.msra.mxu0 0
        %670 = vmatprep.subr.bf16.mxu0 0
        %671 = vmatpush2.bf16.msra.mxu0 0
        %672 = vmatprep.subr.bf16.mxu0 0
        %673 = vmatpush2.bf16.msra.mxu0 0
        %674 = vmatprep.mubr.bf16.mxu0 0
        %675 = vmatmul.mubr.bf16.gmra.mxu0 %v595
        %v676 = vpop.f32.mrf.mxu0
        %v677 = vadd.f32 0.0, %v676
        %v678 = vpop.f32.mrf.mxu0
        %v679 = vadd.f32 0.0, %v678
        %v680 = vpop.f32.mrf.mxu0
        %v681 = vadd.f32 0.0, %v680
        %v682 = vpop.f32.mrf.mxu0
        %v683 = vadd.f32 0.0, %v682
        %684 = vmatprep.mubr.bf16.mxu0 0
        %685 = vmatmul.mubr.bf16.gmra.mxu0 %v598
        %v686 = vpop.f32.mrf.mxu0
        %v687 = vadd.f32 0.0, %v686
        %v688 = vpop.f32.mrf.mxu0
        %v689 = vadd.f32 0.0, %v688
        %v690 = vpop.f32.mrf.mxu0
        %v691 = vadd.f32 0.0, %v690
        %v692 = vpop.f32.mrf.mxu0
        %v693 = vadd.f32 0.0, %v692
        %694 = vmatprep.mubr.bf16.mxu0 0
        %695 = vmatmul.mubr.bf16.gmra.mxu0 %v601
        %v696 = vpop.f32.mrf.mxu0
        %v697 = vadd.f32 0.0, %v696
        %v698 = vpop.f32.mrf.mxu0
        %v699 = vadd.f32 0.0, %v698
        %v700 = vpop.f32.mrf.mxu0
        %v701 = vadd.f32 0.0, %v700
        %v702 = vpop.f32.mrf.mxu0
        %v703 = vadd.f32 0.0, %v702
        %704 = vmatprep.mubr.bf16.mxu0 0
        %705 = vmatmul.mubr.bf16.gmra.mxu0 %v604
        %v706 = vpop.f32.mrf.mxu0
        %v707 = vadd.f32 0.0, %v706
        %v708 = vpop.f32.mrf.mxu0
        %v709 = vadd.f32 0.0, %v708
        %v710 = vpop.f32.mrf.mxu0
        %v711 = vadd.f32 0.0, %v710
        %v712 = vpop.f32.mrf.mxu0
        %v713 = vadd.f32 0.0, %v712
        %714 = vmatprep.mubr.bf16.mxu0 0
        %715 = vmatmul.mubr.bf16.gmra.mxu0 %v607
        %v716 = vpop.f32.mrf.mxu0
        %v717 = vadd.f32 0.0, %v716
        %v718 = vpop.f32.mrf.mxu0
        %v719 = vadd.f32 0.0, %v718
        %v720 = vpop.f32.mrf.mxu0
        %v721 = vadd.f32 0.0, %v720
        %v722 = vpop.f32.mrf.mxu0
        %v723 = vadd.f32 0.0, %v722
        %724 = vmatprep.mubr.bf16.mxu0 0
        %725 = vmatmul.mubr.bf16.gmra.mxu0 %v610
        %v726 = vpop.f32.mrf.mxu0
        %v727 = vadd.f32 0.0, %v726
        %v728 = vpop.f32.mrf.mxu0
        %v729 = vadd.f32 0.0, %v728
        %v730 = vpop.f32.mrf.mxu0
        %v731 = vadd.f32 0.0, %v730
        %v732 = vpop.f32.mrf.mxu0
        %v733 = vadd.f32 0.0, %v732
        %734 = vmatprep.mubr.bf16.mxu0 0
        %735 = vmatmul.mubr.bf16.gmra.mxu0 %v613
        %v736 = vpop.f32.mrf.mxu0
        %v737 = vadd.f32 0.0, %v736
        %v738 = vpop.f32.mrf.mxu0
        %v739 = vadd.f32 0.0, %v738
        %v740 = vpop.f32.mrf.mxu0
        %v741 = vadd.f32 0.0, %v740
        %v742 = vpop.f32.mrf.mxu0
        %v743 = vadd.f32 0.0, %v742
        %744 = vmatprep.mubr.bf16.mxu0 0
        %745 = vmatmul.mubr.bf16.gmra.mxu0 %v616
        %v746 = vpop.f32.mrf.mxu0
        %v747 = vadd.f32 0.0, %v746
        %v748 = vpop.f32.mrf.mxu0
        %v749 = vadd.f32 0.0, %v748
        %v750 = vpop.f32.mrf.mxu0
        %v751 = vadd.f32 0.0, %v750
        %v752 = vpop.f32.mrf.mxu0
        %v753 = vadd.f32 0.0, %v752
        %754 = vmatprep.mubr.bf16.mxu0 0
        %755 = vmatmul.mubr.bf16.gmra.mxu0 %v619
        %v756 = vpop.f32.mrf.mxu0
        %v757 = vadd.f32 0.0, %v756
        %v758 = vpop.f32.mrf.mxu0
        %v759 = vadd.f32 0.0, %v758
        %v760 = vpop.f32.mrf.mxu0
        %v761 = vadd.f32 0.0, %v760
        %v762 = vpop.f32.mrf.mxu0
        %v763 = vadd.f32 0.0, %v762
        %764 = vmatprep.mubr.bf16.mxu0 0
        %765 = vmatmul.mubr.bf16.gmra.mxu0 %v622
        %v766 = vpop.f32.mrf.mxu0
        %v767 = vadd.f32 0.0, %v766
        %v768 = vpop.f32.mrf.mxu0
        %v769 = vadd.f32 0.0, %v768
        %v770 = vpop.f32.mrf.mxu0
        %v771 = vadd.f32 0.0, %v770
        %v772 = vpop.f32.mrf.mxu0
        %v773 = vadd.f32 0.0, %v772
        %774 = vmatprep.mubr.bf16.mxu0 0
        %775 = vmatmul.mubr.bf16.gmra.mxu0 %v625
        %v776 = vpop.f32.mrf.mxu0
        %v777 = vadd.f32 0.0, %v776
        %v778 = vpop.f32.mrf.mxu0
        %v779 = vadd.f32 0.0, %v778
        %v780 = vpop.f32.mrf.mxu0
        %v781 = vadd.f32 0.0, %v780
        %v782 = vpop.f32.mrf.mxu0
        %v783 = vadd.f32 0.0, %v782
        %784 = vmatprep.mubr.bf16.mxu0 0
        %785 = vmatmul.mubr.bf16.gmra.mxu0 %v628
        %v786 = vpop.f32.mrf.mxu0
        %v787 = vadd.f32 0.0, %v786
        %v788 = vpop.f32.mrf.mxu0
        %v789 = vadd.f32 0.0, %v788
        %v790 = vpop.f32.mrf.mxu0
        %v791 = vadd.f32 0.0, %v790
        %v792 = vpop.f32.mrf.mxu0
        %v793 = vadd.f32 0.0, %v792
        %794 = vmatprep.mubr.bf16.mxu0 0
        %795 = vmatmul.mubr.bf16.gmra.mxu0 %v631
        %v796 = vpop.f32.mrf.mxu0
        %v797 = vadd.f32 0.0, %v796
        %v798 = vpop.f32.mrf.mxu0
        %v799 = vadd.f32 0.0, %v798
        %v800 = vpop.f32.mrf.mxu0
        %v801 = vadd.f32 0.0, %v800
        %v802 = vpop.f32.mrf.mxu0
        %v803 = vadd.f32 0.0, %v802
        %804 = vmatprep.mubr.bf16.mxu0 0
        %805 = vmatmul.mubr.bf16.gmra.mxu0 %v634
        %v806 = vpop.f32.mrf.mxu0
        %v807 = vadd.f32 0.0, %v806
        %v808 = vpop.f32.mrf.mxu0
        %v809 = vadd.f32 0.0, %v808
        %v810 = vpop.f32.mrf.mxu0
        %v811 = vadd.f32 0.0, %v810
        %v812 = vpop.f32.mrf.mxu0
        %v813 = vadd.f32 0.0, %v812
        %814 = vmatprep.mubr.bf16.mxu0 0
        %815 = vmatmul.mubr.bf16.gmra.mxu0 %v637
        %v816 = vpop.f32.mrf.mxu0
        %v817 = vadd.f32 0.0, %v816
        %v818 = vpop.f32.mrf.mxu0
        %v819 = vadd.f32 0.0, %v818
        %v820 = vpop.f32.mrf.mxu0
        %v821 = vadd.f32 0.0, %v820
        %v822 = vpop.f32.mrf.mxu0
        %v823 = vadd.f32 0.0, %v822
        %824 = vmatprep.mubr.bf16.mxu0 0
        %825 = vmatmul.mubr.bf16.gmra.mxu0 %v640
        %v826 = vpop.f32.mrf.mxu0
        %v827 = vadd.f32 0.0, %v826
        %v828 = vpop.f32.mrf.mxu0
        %v829 = vadd.f32 0.0, %v828
        %v830 = vpop.f32.mrf.mxu0
        %v831 = vadd.f32 0.0, %v830
        %v832 = vpop.f32.mrf.mxu0
        %v833 = vadd.f32 0.0, %v832
        %834 = vdwg.mxu0
        %v837 = vunpack.c.l.b16 %v433
        %v838 = vunpack.c.l.b16 %v434
        %v839 = vpack.c.b16 %v838, %v837
        %v848 = vunpack.c.l.b16 %v456
        %v849 = vunpack.c.h.b16 %v456
        %v850 = vunpack.c.l.b16 %v457
        %v851 = vunpack.c.h.b16 %v457
        %v852 = vunpack.c.l.b16 %v458
        %v853 = vunpack.c.h.b16 %v458
        %v854 = vunpack.c.l.b16 %v459
        %v855 = vunpack.c.h.b16 %v459
        %v856 = vunpack.c.l.b16 %v460
        %v857 = vunpack.c.h.b16 %v460
        %v858 = vunpack.c.l.b16 %v461
        %v859 = vunpack.c.h.b16 %v461
        %v860 = vunpack.c.l.b16 %v462
        %v861 = vunpack.c.h.b16 %v462
        %v862 = vunpack.c.l.b16 %v463
        %v863 = vunpack.c.h.b16 %v463
        %v864 = vpack.c.b16 %v850, %v848
        %v865 = vpack.c.b16 %v851, %v849
        %v866 = vpack.c.b16 %v854, %v852
        %v867 = vpack.c.b16 %v855, %v853
        %v868 = vpack.c.b16 %v858, %v856
        %v869 = vpack.c.b16 %v859, %v857
        %v870 = vpack.c.b16 %v862, %v860
        %v871 = vpack.c.b16 %v863, %v861
        %v881 = vsel %vm593, %v839, 0
        %883 = vmatprep.subr.bf16.mxu0 0
        %884 = vmatpush1.bf16.msra.mxu0 0
        %885 = vmatprep.subr.bf16.mxu0 0
        %886 = vmatpush1.bf16.msra.mxu0 0
        %887 = vmatprep.subr.bf16.mxu0 0
        %888 = vmatpush1.bf16.msra.mxu0 0
        %889 = vmatprep.subr.bf16.mxu0 0
        %890 = vmatpush1.bf16.msra.mxu0 0
        %891 = vmatprep.subr.bf16.mxu0 %v871
        %892 = vmatpush1.bf16.msra.mxu0 %v870
        %893 = vmatprep.subr.bf16.mxu0 %v869
        %894 = vmatpush1.bf16.msra.mxu0 %v868
        %895 = vmatprep.subr.bf16.mxu0 %v867
        %896 = vmatpush1.bf16.msra.mxu0 %v866
        %897 = vmatprep.subr.bf16.mxu0 %v865
        %898 = vmatpush1.bf16.msra.mxu0 %v864
        %899 = vmatprep.subr.bf16.mxu0 0
        %900 = vmatpush2.bf16.msra.mxu0 0
        %901 = vmatprep.subr.bf16.mxu0 0
        %902 = vmatpush2.bf16.msra.mxu0 0
        %903 = vmatprep.subr.bf16.mxu0 0
        %904 = vmatpush2.bf16.msra.mxu0 0
        %905 = vmatprep.subr.bf16.mxu0 0
        %906 = vmatpush2.bf16.msra.mxu0 0
        %907 = vmatprep.subr.bf16.mxu0 0
        %908 = vmatpush2.bf16.msra.mxu0 0
        %909 = vmatprep.subr.bf16.mxu0 0
        %910 = vmatpush2.bf16.msra.mxu0 0
        %911 = vmatprep.subr.bf16.mxu0 0
        %912 = vmatpush2.bf16.msra.mxu0 0
        %913 = vmatprep.subr.bf16.mxu0 0
        %914 = vmatpush2.bf16.msra.mxu0 0
        %915 = vmatprep.mubr.bf16.mxu0 0
        %916 = vmatmul.mubr.bf16.gmra.mxu0 %v881
        %v917 = vpop.f32.mrf.mxu0
        %v918 = vadd.f32 %v677, %v917
        %v919 = vpop.f32.mrf.mxu0
        %v920 = vadd.f32 %v679, %v919
        %v921 = vpop.f32.mrf.mxu0
        %v922 = vadd.f32 %v681, %v921
        %v923 = vpop.f32.mrf.mxu0
        %v924 = vadd.f32 %v683, %v923
        %925 = vmatprep.mubr.bf16.mxu0 0
        %926 = vmatmul.mubr.bf16.gmra.mxu0 %v595
        %v927 = vpop.f32.mrf.mxu0
        %v928 = vadd.f32 %v687, %v927
        %v929 = vpop.f32.mrf.mxu0
        %v930 = vadd.f32 %v689, %v929
        %v931 = vpop.f32.mrf.mxu0
        %v932 = vadd.f32 %v691, %v931
        %v933 = vpop.f32.mrf.mxu0
        %v934 = vadd.f32 %v693, %v933
        %935 = vmatprep.mubr.bf16.mxu0 0
        %936 = vmatmul.mubr.bf16.gmra.mxu0 %v598
        %v937 = vpop.f32.mrf.mxu0
        %v938 = vadd.f32 %v697, %v937
        %v939 = vpop.f32.mrf.mxu0
        %v940 = vadd.f32 %v699, %v939
        %v941 = vpop.f32.mrf.mxu0
        %v942 = vadd.f32 %v701, %v941
        %v943 = vpop.f32.mrf.mxu0
        %v944 = vadd.f32 %v703, %v943
        %945 = vmatprep.mubr.bf16.mxu0 0
        %946 = vmatmul.mubr.bf16.gmra.mxu0 %v601
        %v947 = vpop.f32.mrf.mxu0
        %v948 = vadd.f32 %v707, %v947
        %v949 = vpop.f32.mrf.mxu0
        %v950 = vadd.f32 %v709, %v949
        %v951 = vpop.f32.mrf.mxu0
        %v952 = vadd.f32 %v711, %v951
        %v953 = vpop.f32.mrf.mxu0
        %v954 = vadd.f32 %v713, %v953
        %955 = vmatprep.mubr.bf16.mxu0 0
        %956 = vmatmul.mubr.bf16.gmra.mxu0 %v604
        %v957 = vpop.f32.mrf.mxu0
        %v958 = vadd.f32 %v717, %v957
        %v959 = vpop.f32.mrf.mxu0
        %v960 = vadd.f32 %v719, %v959
        %v961 = vpop.f32.mrf.mxu0
        %v962 = vadd.f32 %v721, %v961
        %v963 = vpop.f32.mrf.mxu0
        %v964 = vadd.f32 %v723, %v963
        %965 = vmatprep.mubr.bf16.mxu0 0
        %966 = vmatmul.mubr.bf16.gmra.mxu0 %v607
        %v967 = vpop.f32.mrf.mxu0
        %v968 = vadd.f32 %v727, %v967
        %v969 = vpop.f32.mrf.mxu0
        %v970 = vadd.f32 %v729, %v969
        %v971 = vpop.f32.mrf.mxu0
        %v972 = vadd.f32 %v731, %v971
        %v973 = vpop.f32.mrf.mxu0
        %v974 = vadd.f32 %v733, %v973
        %975 = vmatprep.mubr.bf16.mxu0 0
        %976 = vmatmul.mubr.bf16.gmra.mxu0 %v610
        %v977 = vpop.f32.mrf.mxu0
        %v978 = vadd.f32 %v737, %v977
        %v979 = vpop.f32.mrf.mxu0
        %v980 = vadd.f32 %v739, %v979
        %v981 = vpop.f32.mrf.mxu0
        %v982 = vadd.f32 %v741, %v981
        %v983 = vpop.f32.mrf.mxu0
        %v984 = vadd.f32 %v743, %v983
        %985 = vmatprep.mubr.bf16.mxu0 0
        %986 = vmatmul.mubr.bf16.gmra.mxu0 %v613
        %v987 = vpop.f32.mrf.mxu0
        %v988 = vadd.f32 %v747, %v987
        %v989 = vpop.f32.mrf.mxu0
        %v990 = vadd.f32 %v749, %v989
        %v991 = vpop.f32.mrf.mxu0
        %v992 = vadd.f32 %v751, %v991
        %v993 = vpop.f32.mrf.mxu0
        %v994 = vadd.f32 %v753, %v993
        %995 = vmatprep.mubr.bf16.mxu0 0
        %996 = vmatmul.mubr.bf16.gmra.mxu0 %v616
        %v997 = vpop.f32.mrf.mxu0
        %v998 = vadd.f32 %v757, %v997
        %v999 = vpop.f32.mrf.mxu0
        %v1000 = vadd.f32 %v759, %v999
        %v1001 = vpop.f32.mrf.mxu0
        %v1002 = vadd.f32 %v761, %v1001
        %v1003 = vpop.f32.mrf.mxu0
        %v1004 = vadd.f32 %v763, %v1003
        %1005 = vmatprep.mubr.bf16.mxu0 0
        %1006 = vmatmul.mubr.bf16.gmra.mxu0 %v619
        %v1007 = vpop.f32.mrf.mxu0
        %v1008 = vadd.f32 %v767, %v1007
        %v1009 = vpop.f32.mrf.mxu0
        %v1010 = vadd.f32 %v769, %v1009
        %v1011 = vpop.f32.mrf.mxu0
        %v1012 = vadd.f32 %v771, %v1011
        %v1013 = vpop.f32.mrf.mxu0
        %v1014 = vadd.f32 %v773, %v1013
        %1015 = vmatprep.mubr.bf16.mxu0 0
        %1016 = vmatmul.mubr.bf16.gmra.mxu0 %v622
        %v1017 = vpop.f32.mrf.mxu0
        %v1018 = vadd.f32 %v777, %v1017
        %v1019 = vpop.f32.mrf.mxu0
        %v1020 = vadd.f32 %v779, %v1019
        %v1021 = vpop.f32.mrf.mxu0
        %v1022 = vadd.f32 %v781, %v1021
        %v1023 = vpop.f32.mrf.mxu0
        %v1024 = vadd.f32 %v783, %v1023
        %1025 = vmatprep.mubr.bf16.mxu0 0
        %1026 = vmatmul.mubr.bf16.gmra.mxu0 %v625
        %v1027 = vpop.f32.mrf.mxu0
        %v1028 = vadd.f32 %v787, %v1027
        %v1029 = vpop.f32.mrf.mxu0
        %v1030 = vadd.f32 %v789, %v1029
        %v1031 = vpop.f32.mrf.mxu0
        %v1032 = vadd.f32 %v791, %v1031
        %v1033 = vpop.f32.mrf.mxu0
        %v1034 = vadd.f32 %v793, %v1033
        %1035 = vmatprep.mubr.bf16.mxu0 0
        %1036 = vmatmul.mubr.bf16.gmra.mxu0 %v628
        %v1037 = vpop.f32.mrf.mxu0
        %v1038 = vadd.f32 %v797, %v1037
        %v1039 = vpop.f32.mrf.mxu0
        %v1040 = vadd.f32 %v799, %v1039
        %v1041 = vpop.f32.mrf.mxu0
        %v1042 = vadd.f32 %v801, %v1041
        %v1043 = vpop.f32.mrf.mxu0
        %v1044 = vadd.f32 %v803, %v1043
        %1045 = vmatprep.mubr.bf16.mxu0 0
        %1046 = vmatmul.mubr.bf16.gmra.mxu0 %v631
        %v1047 = vpop.f32.mrf.mxu0
        %v1048 = vadd.f32 %v807, %v1047
        %v1049 = vpop.f32.mrf.mxu0
        %v1050 = vadd.f32 %v809, %v1049
        %v1051 = vpop.f32.mrf.mxu0
        %v1052 = vadd.f32 %v811, %v1051
        %v1053 = vpop.f32.mrf.mxu0
        %v1054 = vadd.f32 %v813, %v1053
        %1055 = vmatprep.mubr.bf16.mxu0 0
        %1056 = vmatmul.mubr.bf16.gmra.mxu0 %v634
        %v1057 = vpop.f32.mrf.mxu0
        %v1058 = vadd.f32 %v817, %v1057
        %v1059 = vpop.f32.mrf.mxu0
        %v1060 = vadd.f32 %v819, %v1059
        %v1061 = vpop.f32.mrf.mxu0
        %v1062 = vadd.f32 %v821, %v1061
        %v1063 = vpop.f32.mrf.mxu0
        %v1064 = vadd.f32 %v823, %v1063
        %1065 = vmatprep.mubr.bf16.mxu0 0
        %1066 = vmatmul.mubr.bf16.gmra.mxu0 %v637
        %v1067 = vpop.f32.mrf.mxu0
        %v1068 = vadd.f32 %v827, %v1067
        %v1069 = vpop.f32.mrf.mxu0
        %v1070 = vadd.f32 %v829, %v1069
        %v1071 = vpop.f32.mrf.mxu0
        %v1072 = vadd.f32 %v831, %v1071
        %v1073 = vpop.f32.mrf.mxu0
        %v1074 = vadd.f32 %v833, %v1073
        %1075 = vdwg.mxu0
        %s1076 = scalar_lea.vmem %s3, 128
        %v1077 = vld [vmem:[%s1076] sm:$0xff]
        %v1078 = vld [vmem:[%s1076 + $0x8] sm:$0xff]
        %v1079 = vld [vmem:[%s1076 + $0x10] sm:$0xff]
        %v1080 = vld [vmem:[%s1076 + $0x18] sm:$0xff]
        %v1081 = vld [vmem:[%s1076 + $0x20] sm:$0xff]
        %v1082 = vld [vmem:[%s1076 + $0x28] sm:$0xff]
        %v1083 = vld [vmem:[%s1076 + $0x30] sm:$0xff]
        %v1084 = vld [vmem:[%s1076 + $0x38] sm:$0xff]
        %v1087 = vunpack.c.l.b16 %v454
        %v1088 = vunpack.c.l.b16 %v455
        %v1089 = vpack.c.b16 %v1088, %v1087
        %v1098 = vunpack.c.l.b16 %v1077
        %v1099 = vunpack.c.h.b16 %v1077
        %v1100 = vunpack.c.l.b16 %v1078
        %v1101 = vunpack.c.h.b16 %v1078
        %v1102 = vunpack.c.l.b16 %v1079
        %v1103 = vunpack.c.h.b16 %v1079
        %v1104 = vunpack.c.l.b16 %v1080
        %v1105 = vunpack.c.h.b16 %v1080
        %v1106 = vunpack.c.l.b16 %v1081
        %v1107 = vunpack.c.h.b16 %v1081
        %v1108 = vunpack.c.l.b16 %v1082
        %v1109 = vunpack.c.h.b16 %v1082
        %v1110 = vunpack.c.l.b16 %v1083
        %v1111 = vunpack.c.h.b16 %v1083
        %v1112 = vunpack.c.l.b16 %v1084
        %v1113 = vunpack.c.h.b16 %v1084
        %v1114 = vpack.c.b16 %v1100, %v1098
        %v1115 = vpack.c.b16 %v1101, %v1099
        %v1116 = vpack.c.b16 %v1104, %v1102
        %v1117 = vpack.c.b16 %v1105, %v1103
        %v1118 = vpack.c.b16 %v1108, %v1106
        %v1119 = vpack.c.b16 %v1109, %v1107
        %v1120 = vpack.c.b16 %v1112, %v1110
        %v1121 = vpack.c.b16 %v1113, %v1111
        %v1131 = vsel %vm593, %v1089, 0
        %1133 = vmatprep.subr.bf16.mxu0 0
        %1134 = vmatpush1.bf16.msra.mxu0 0
        %1135 = vmatprep.subr.bf16.mxu0 0
        %1136 = vmatpush1.bf16.msra.mxu0 0
        %1137 = vmatprep.subr.bf16.mxu0 0
        %1138 = vmatpush1.bf16.msra.mxu0 0
        %1139 = vmatprep.subr.bf16.mxu0 0
        %1140 = vmatpush1.bf16.msra.mxu0 0
        %1141 = vmatprep.subr.bf16.mxu0 %v1121
        %1142 = vmatpush1.bf16.msra.mxu0 %v1120
        %1143 = vmatprep.subr.bf16.mxu0 %v1119
        %1144 = vmatpush1.bf16.msra.mxu0 %v1118
        %1145 = vmatprep.subr.bf16.mxu0 %v1117
        %1146 = vmatpush1.bf16.msra.mxu0 %v1116
        %1147 = vmatprep.subr.bf16.mxu0 %v1115
        %1148 = vmatpush1.bf16.msra.mxu0 %v1114
        %1149 = vmatprep.subr.bf16.mxu0 0
        %1150 = vmatpush2.bf16.msra.mxu0 0
        %1151 = vmatprep.subr.bf16.mxu0 0
        %1152 = vmatpush2.bf16.msra.mxu0 0
        %1153 = vmatprep.subr.bf16.mxu0 0
        %1154 = vmatpush2.bf16.msra.mxu0 0
        %1155 = vmatprep.subr.bf16.mxu0 0
        %1156 = vmatpush2.bf16.msra.mxu0 0
        %1157 = vmatprep.subr.bf16.mxu0 0
        %1158 = vmatpush2.bf16.msra.mxu0 0
        %1159 = vmatprep.subr.bf16.mxu0 0
        %1160 = vmatpush2.bf16.msra.mxu0 0
        %1161 = vmatprep.subr.bf16.mxu0 0
        %1162 = vmatpush2.bf16.msra.mxu0 0
        %1163 = vmatprep.subr.bf16.mxu0 0
        %1164 = vmatpush2.bf16.msra.mxu0 0
        %1165 = vmatprep.mubr.bf16.mxu0 0
        %1166 = vmatmul.mubr.bf16.gmra.mxu0 %v598
        %v1167 = vpop.f32.mrf.mxu0
        %v1168 = vadd.f32 0.0, %v1167
        %v1169 = vpop.f32.mrf.mxu0
        %v1170 = vadd.f32 0.0, %v1169
        %v1171 = vpop.f32.mrf.mxu0
        %v1172 = vadd.f32 0.0, %v1171
        %v1173 = vpop.f32.mrf.mxu0
        %v1174 = vadd.f32 0.0, %v1173
        %1175 = vmatprep.mubr.bf16.mxu0 0
        %1176 = vmatmul.mubr.bf16.gmra.mxu0 %v601
        %v1177 = vpop.f32.mrf.mxu0
        %v1178 = vadd.f32 0.0, %v1177
        %v1179 = vpop.f32.mrf.mxu0
        %v1180 = vadd.f32 0.0, %v1179
        %v1181 = vpop.f32.mrf.mxu0
        %v1182 = vadd.f32 0.0, %v1181
        %v1183 = vpop.f32.mrf.mxu0
        %v1184 = vadd.f32 0.0, %v1183
        %1185 = vmatprep.mubr.bf16.mxu0 0
        %1186 = vmatmul.mubr.bf16.gmra.mxu0 %v604
        %v1187 = vpop.f32.mrf.mxu0
        %v1188 = vadd.f32 0.0, %v1187
        %v1189 = vpop.f32.mrf.mxu0
        %v1190 = vadd.f32 0.0, %v1189
        %v1191 = vpop.f32.mrf.mxu0
        %v1192 = vadd.f32 0.0, %v1191
        %v1193 = vpop.f32.mrf.mxu0
        %v1194 = vadd.f32 0.0, %v1193
        %1195 = vmatprep.mubr.bf16.mxu0 0
        %1196 = vmatmul.mubr.bf16.gmra.mxu0 %v607
        %v1197 = vpop.f32.mrf.mxu0
        %v1198 = vadd.f32 0.0, %v1197
        %v1199 = vpop.f32.mrf.mxu0
        %v1200 = vadd.f32 0.0, %v1199
        %v1201 = vpop.f32.mrf.mxu0
        %v1202 = vadd.f32 0.0, %v1201
        %v1203 = vpop.f32.mrf.mxu0
        %v1204 = vadd.f32 0.0, %v1203
        %1205 = vmatprep.mubr.bf16.mxu0 0
        %1206 = vmatmul.mubr.bf16.gmra.mxu0 %v610
        %v1207 = vpop.f32.mrf.mxu0
        %v1208 = vadd.f32 0.0, %v1207
        %v1209 = vpop.f32.mrf.mxu0
        %v1210 = vadd.f32 0.0, %v1209
        %v1211 = vpop.f32.mrf.mxu0
        %v1212 = vadd.f32 0.0, %v1211
        %v1213 = vpop.f32.mrf.mxu0
        %v1214 = vadd.f32 0.0, %v1213
        %1215 = vmatprep.mubr.bf16.mxu0 0
        %1216 = vmatmul.mubr.bf16.gmra.mxu0 %v613
        %v1217 = vpop.f32.mrf.mxu0
        %v1218 = vadd.f32 0.0, %v1217
        %v1219 = vpop.f32.mrf.mxu0
        %v1220 = vadd.f32 0.0, %v1219
        %v1221 = vpop.f32.mrf.mxu0
        %v1222 = vadd.f32 0.0, %v1221
        %v1223 = vpop.f32.mrf.mxu0
        %v1224 = vadd.f32 0.0, %v1223
        %1225 = vmatprep.mubr.bf16.mxu0 0
        %1226 = vmatmul.mubr.bf16.gmra.mxu0 %v616
        %v1227 = vpop.f32.mrf.mxu0
        %v1228 = vadd.f32 0.0, %v1227
        %v1229 = vpop.f32.mrf.mxu0
        %v1230 = vadd.f32 0.0, %v1229
        %v1231 = vpop.f32.mrf.mxu0
        %v1232 = vadd.f32 0.0, %v1231
        %v1233 = vpop.f32.mrf.mxu0
        %v1234 = vadd.f32 0.0, %v1233
        %1235 = vmatprep.mubr.bf16.mxu0 0
        %1236 = vmatmul.mubr.bf16.gmra.mxu0 %v619
        %v1237 = vpop.f32.mrf.mxu0
        %v1238 = vadd.f32 0.0, %v1237
        %v1239 = vpop.f32.mrf.mxu0
        %v1240 = vadd.f32 0.0, %v1239
        %v1241 = vpop.f32.mrf.mxu0
        %v1242 = vadd.f32 0.0, %v1241
        %v1243 = vpop.f32.mrf.mxu0
        %v1244 = vadd.f32 0.0, %v1243
        %1245 = vmatprep.mubr.bf16.mxu0 0
        %1246 = vmatmul.mubr.bf16.gmra.mxu0 %v622
        %v1247 = vpop.f32.mrf.mxu0
        %v1248 = vadd.f32 0.0, %v1247
        %v1249 = vpop.f32.mrf.mxu0
        %v1250 = vadd.f32 0.0, %v1249
        %v1251 = vpop.f32.mrf.mxu0
        %v1252 = vadd.f32 0.0, %v1251
        %v1253 = vpop.f32.mrf.mxu0
        %v1254 = vadd.f32 0.0, %v1253
        %1255 = vmatprep.mubr.bf16.mxu0 0
        %1256 = vmatmul.mubr.bf16.gmra.mxu0 %v625
        %v1257 = vpop.f32.mrf.mxu0
        %v1258 = vadd.f32 0.0, %v1257
        %v1259 = vpop.f32.mrf.mxu0
        %v1260 = vadd.f32 0.0, %v1259
        %v1261 = vpop.f32.mrf.mxu0
        %v1262 = vadd.f32 0.0, %v1261
        %v1263 = vpop.f32.mrf.mxu0
        %v1264 = vadd.f32 0.0, %v1263
        %1265 = vmatprep.mubr.bf16.mxu0 0
        %1266 = vmatmul.mubr.bf16.gmra.mxu0 %v628
        %v1267 = vpop.f32.mrf.mxu0
        %v1268 = vadd.f32 0.0, %v1267
        %v1269 = vpop.f32.mrf.mxu0
        %v1270 = vadd.f32 0.0, %v1269
        %v1271 = vpop.f32.mrf.mxu0
        %v1272 = vadd.f32 0.0, %v1271
        %v1273 = vpop.f32.mrf.mxu0
        %v1274 = vadd.f32 0.0, %v1273
        %1275 = vmatprep.mubr.bf16.mxu0 0
        %1276 = vmatmul.mubr.bf16.gmra.mxu0 %v631
        %v1277 = vpop.f32.mrf.mxu0
        %v1278 = vadd.f32 0.0, %v1277
        %v1279 = vpop.f32.mrf.mxu0
        %v1280 = vadd.f32 0.0, %v1279
        %v1281 = vpop.f32.mrf.mxu0
        %v1282 = vadd.f32 0.0, %v1281
        %v1283 = vpop.f32.mrf.mxu0
        %v1284 = vadd.f32 0.0, %v1283
        %1285 = vmatprep.mubr.bf16.mxu0 0
        %1286 = vmatmul.mubr.bf16.gmra.mxu0 %v634
        %v1287 = vpop.f32.mrf.mxu0
        %v1288 = vadd.f32 0.0, %v1287
        %v1289 = vpop.f32.mrf.mxu0
        %v1290 = vadd.f32 0.0, %v1289
        %v1291 = vpop.f32.mrf.mxu0
        %v1292 = vadd.f32 0.0, %v1291
        %v1293 = vpop.f32.mrf.mxu0
        %v1294 = vadd.f32 0.0, %v1293
        %1295 = vmatprep.mubr.bf16.mxu0 0
        %1296 = vmatmul.mubr.bf16.gmra.mxu0 %v637
        %v1297 = vpop.f32.mrf.mxu0
        %v1298 = vadd.f32 0.0, %v1297
        %v1299 = vpop.f32.mrf.mxu0
        %v1300 = vadd.f32 0.0, %v1299
        %v1301 = vpop.f32.mrf.mxu0
        %v1302 = vadd.f32 0.0, %v1301
        %v1303 = vpop.f32.mrf.mxu0
        %v1304 = vadd.f32 0.0, %v1303
        %1305 = vmatprep.mubr.bf16.mxu0 0
        %1306 = vmatmul.mubr.bf16.gmra.mxu0 %v640
        %v1307 = vpop.f32.mrf.mxu0
        %v1308 = vadd.f32 0.0, %v1307
        %v1309 = vpop.f32.mrf.mxu0
        %v1310 = vadd.f32 0.0, %v1309
        %v1311 = vpop.f32.mrf.mxu0
        %v1312 = vadd.f32 0.0, %v1311
        %v1313 = vpop.f32.mrf.mxu0
        %v1314 = vadd.f32 0.0, %v1313
        %1315 = vmatprep.mubr.bf16.mxu0 0
        %1316 = vmatmul.mubr.bf16.gmra.mxu0 %v1131
        %v1317 = vpop.f32.mrf.mxu0
        %v1318 = vadd.f32 0.0, %v1317
        %v1319 = vpop.f32.mrf.mxu0
        %v1320 = vadd.f32 0.0, %v1319
        %v1321 = vpop.f32.mrf.mxu0
        %v1322 = vadd.f32 0.0, %v1321
        %v1323 = vpop.f32.mrf.mxu0
        %v1324 = vadd.f32 0.0, %v1323
        %1325 = vdwg.mxu0
        %v1326 = vadd.f32 %v918, %v1168
        %v1327 = vadd.f32 %v920, %v1170
        %v1328 = vadd.f32 %v922, %v1172
        %v1329 = vadd.f32 %v924, %v1174
        %v1330 = vadd.f32 %v928, %v1178
        %v1331 = vadd.f32 %v930, %v1180
        %v1332 = vadd.f32 %v932, %v1182
        %v1333 = vadd.f32 %v934, %v1184
        %v1334 = vadd.f32 %v938, %v1188
        %v1335 = vadd.f32 %v940, %v1190
        %v1336 = vadd.f32 %v942, %v1192
        %v1337 = vadd.f32 %v944, %v1194
        %v1338 = vadd.f32 %v948, %v1198
        %v1339 = vadd.f32 %v950, %v1200
        %v1340 = vadd.f32 %v952, %v1202
        %v1341 = vadd.f32 %v954, %v1204
        %v1342 = vadd.f32 %v958, %v1208
        %v1343 = vadd.f32 %v960, %v1210
        %v1344 = vadd.f32 %v962, %v1212
        %v1345 = vadd.f32 %v964, %v1214
        %v1346 = vadd.f32 %v968, %v1218
        %v1347 = vadd.f32 %v970, %v1220
        %v1348 = vadd.f32 %v972, %v1222
        %v1349 = vadd.f32 %v974, %v1224
        %v1350 = vadd.f32 %v978, %v1228
        %v1351 = vadd.f32 %v980, %v1230
        %v1352 = vadd.f32 %v982, %v1232
        %v1353 = vadd.f32 %v984, %v1234
        %v1354 = vadd.f32 %v988, %v1238
        %v1355 = vadd.f32 %v990, %v1240
        %v1356 = vadd.f32 %v992, %v1242
        %v1357 = vadd.f32 %v994, %v1244
        %v1358 = vadd.f32 %v998, %v1248
        %v1359 = vadd.f32 %v1000, %v1250
        %v1360 = vadd.f32 %v1002, %v1252
        %v1361 = vadd.f32 %v1004, %v1254
        %v1362 = vadd.f32 %v1008, %v1258
        %v1363 = vadd.f32 %v1010, %v1260
        %v1364 = vadd.f32 %v1012, %v1262
        %v1365 = vadd.f32 %v1014, %v1264
        %v1366 = vadd.f32 %v1018, %v1268
        %v1367 = vadd.f32 %v1020, %v1270
        %v1368 = vadd.f32 %v1022, %v1272
        %v1369 = vadd.f32 %v1024, %v1274
        %v1370 = vadd.f32 %v1028, %v1278
        %v1371 = vadd.f32 %v1030, %v1280
        %v1372 = vadd.f32 %v1032, %v1282
        %v1373 = vadd.f32 %v1034, %v1284
        %v1374 = vadd.f32 %v1038, %v1288
        %v1375 = vadd.f32 %v1040, %v1290
        %v1376 = vadd.f32 %v1042, %v1292
        %v1377 = vadd.f32 %v1044, %v1294
        %v1378 = vadd.f32 %v1048, %v1298
        %v1379 = vadd.f32 %v1050, %v1300
        %v1380 = vadd.f32 %v1052, %v1302
        %v1381 = vadd.f32 %v1054, %v1304
        %v1382 = vadd.f32 %v1058, %v1308
        %v1383 = vadd.f32 %v1060, %v1310
        %v1384 = vadd.f32 %v1062, %v1312
        %v1385 = vadd.f32 %v1064, %v1314
        %v1386 = vadd.f32 %v1068, %v1318
        %v1387 = vadd.f32 %v1070, %v1320
        %v1388 = vadd.f32 %v1072, %v1322
        %v1389 = vadd.f32 %v1074, %v1324
        %vm1422 = vcmask 1040384
        %v1423 = vrot.slane %v1326, 7
        %v1424 = vrot.slane %v1328, 7
        %v1425 = vsel %vm1422, %v1423, %v1424
        %v1426 = vrot.slane %v1330, 7
        %v1427 = vrot.slane %v1332, 7
        %v1428 = vsel %vm1422, %v1426, %v1427
        %v1429 = vrot.slane %v1334, 7
        %v1430 = vrot.slane %v1336, 7
        %v1431 = vsel %vm1422, %v1429, %v1430
        %v1432 = vrot.slane %v1338, 7
        %v1433 = vrot.slane %v1340, 7
        %v1434 = vsel %vm1422, %v1432, %v1433
        %v1435 = vrot.slane %v1342, 7
        %v1436 = vrot.slane %v1344, 7
        %v1437 = vsel %vm1422, %v1435, %v1436
        %v1438 = vrot.slane %v1346, 7
        %v1439 = vrot.slane %v1348, 7
        %v1440 = vsel %vm1422, %v1438, %v1439
        %v1441 = vrot.slane %v1350, 7
        %v1442 = vrot.slane %v1352, 7
        %v1443 = vsel %vm1422, %v1441, %v1442
        %v1444 = vrot.slane %v1354, 7
        %v1445 = vrot.slane %v1356, 7
        %v1446 = vsel %vm1422, %v1444, %v1445
        %v1447 = vrot.slane %v1358, 7
        %v1448 = vrot.slane %v1360, 7
        %v1449 = vsel %vm1422, %v1447, %v1448
        %v1450 = vrot.slane %v1362, 7
        %v1451 = vrot.slane %v1364, 7
        %v1452 = vsel %vm1422, %v1450, %v1451
        %v1453 = vrot.slane %v1366, 7
        %v1454 = vrot.slane %v1368, 7
        %v1455 = vsel %vm1422, %v1453, %v1454
        %v1456 = vrot.slane %v1370, 7
        %v1457 = vrot.slane %v1372, 7
        %v1458 = vsel %vm1422, %v1456, %v1457
        %v1459 = vrot.slane %v1374, 7
        %v1460 = vrot.slane %v1376, 7
        %v1461 = vsel %vm1422, %v1459, %v1460
        %v1462 = vrot.slane %v1378, 7
        %v1463 = vrot.slane %v1380, 7
        %v1464 = vsel %vm1422, %v1462, %v1463
        %v1465 = vrot.slane %v1382, 7
        %v1466 = vrot.slane %v1384, 7
        %v1467 = vsel %vm1422, %v1465, %v1466
        %v1468 = vrot.slane %v1386, 7
        %v1469 = vrot.slane %v1388, 7
        %v1470 = vsel %vm1422, %v1468, %v1469
        %v1487 = vsel %vm1422, 0.0, %v1423
        %v1488 = vsel %vm1422, 0.0, %v1426
        %v1489 = vsel %vm1422, 0.0, %v1429
        %v1490 = vsel %vm1422, 0.0, %v1432
        %v1491 = vsel %vm1422, 0.0, %v1435
        %v1492 = vsel %vm1422, 0.0, %v1438
        %v1493 = vsel %vm1422, 0.0, %v1441
        %v1494 = vsel %vm1422, 0.0, %v1444
        %v1495 = vsel %vm1422, 0.0, %v1447
        %v1496 = vsel %vm1422, 0.0, %v1450
        %v1497 = vsel %vm1422, 0.0, %v1453
        %v1498 = vsel %vm1422, 0.0, %v1456
        %v1499 = vsel %vm1422, 0.0, %v1459
        %v1500 = vsel %vm1422, 0.0, %v1462
        %v1501 = vsel %vm1422, 0.0, %v1465
        %v1502 = vsel %vm1422, 0.0, %v1468
        %1519 = vrot.lane.b32.xlu0 %v1487, 64
        %v1520 = vpop.permute.xlu0 %1519
        %1521 = vrot.lane.b32.xlu0 %v1425, 64
        %v1522 = vpop.permute.xlu0 %1521
        %1523 = vrot.lane.b32.xlu0 %v1488, 64
        %v1524 = vpop.permute.xlu0 %1523
        %1525 = vrot.lane.b32.xlu0 %v1428, 64
        %v1526 = vpop.permute.xlu0 %1525
        %1527 = vrot.lane.b32.xlu0 %v1489, 64
        %v1528 = vpop.permute.xlu0 %1527
        %1529 = vrot.lane.b32.xlu0 %v1431, 64
        %v1530 = vpop.permute.xlu0 %1529
        %1531 = vrot.lane.b32.xlu0 %v1490, 64
        %v1532 = vpop.permute.xlu0 %1531
        %1533 = vrot.lane.b32.xlu0 %v1434, 64
        %v1534 = vpop.permute.xlu0 %1533
        %1535 = vrot.lane.b32.xlu0 %v1491, 64
        %v1536 = vpop.permute.xlu0 %1535
        %1537 = vrot.lane.b32.xlu0 %v1437, 64
        %v1538 = vpop.permute.xlu0 %1537
        %1539 = vrot.lane.b32.xlu0 %v1492, 64
        %v1540 = vpop.permute.xlu0 %1539
        %1541 = vrot.lane.b32.xlu0 %v1440, 64
        %v1542 = vpop.permute.xlu0 %1541
        %1543 = vrot.lane.b32.xlu0 %v1493, 64
        %v1544 = vpop.permute.xlu0 %1543
        %1545 = vrot.lane.b32.xlu0 %v1443, 64
        %v1546 = vpop.permute.xlu0 %1545
        %1547 = vrot.lane.b32.xlu0 %v1494, 64
        %v1548 = vpop.permute.xlu0 %1547
        %1549 = vrot.lane.b32.xlu0 %v1446, 64
        %v1550 = vpop.permute.xlu0 %1549
        %1551 = vrot.lane.b32.xlu0 %v1495, 64
        %v1552 = vpop.permute.xlu0 %1551
        %1553 = vrot.lane.b32.xlu0 %v1449, 64
        %v1554 = vpop.permute.xlu0 %1553
        %1555 = vrot.lane.b32.xlu0 %v1496, 64
        %v1556 = vpop.permute.xlu0 %1555
        %1557 = vrot.lane.b32.xlu0 %v1452, 64
        %v1558 = vpop.permute.xlu0 %1557
        %1559 = vrot.lane.b32.xlu0 %v1497, 64
        %v1560 = vpop.permute.xlu0 %1559
        %1561 = vrot.lane.b32.xlu0 %v1455, 64
        %v1562 = vpop.permute.xlu0 %1561
        %1563 = vrot.lane.b32.xlu0 %v1498, 64
        %v1564 = vpop.permute.xlu0 %1563
        %1565 = vrot.lane.b32.xlu0 %v1458, 64
        %v1566 = vpop.permute.xlu0 %1565
        %1567 = vrot.lane.b32.xlu0 %v1499, 64
        %v1568 = vpop.permute.xlu0 %1567
        %1569 = vrot.lane.b32.xlu0 %v1461, 64
        %v1570 = vpop.permute.xlu0 %1569
        %1571 = vrot.lane.b32.xlu0 %v1500, 64
        %v1572 = vpop.permute.xlu0 %1571
        %1573 = vrot.lane.b32.xlu0 %v1464, 64
        %v1574 = vpop.permute.xlu0 %1573
        %1575 = vrot.lane.b32.xlu0 %v1501, 64
        %v1576 = vpop.permute.xlu0 %1575
        %1577 = vrot.lane.b32.xlu0 %v1467, 64
        %v1578 = vpop.permute.xlu0 %1577
        %1579 = vrot.lane.b32.xlu0 %v1502, 64
        %v1580 = vpop.permute.xlu0 %1579
        %1581 = vrot.lane.b32.xlu0 %v1470, 64
        %v1582 = vpop.permute.xlu0 %1581
        %v1615 = vadd.f32 %v1326, %v1520
        %v1616 = vadd.f32 %v1328, %v1522
        %v1617 = vadd.f32 %v1330, %v1524
        %v1618 = vadd.f32 %v1332, %v1526
        %v1619 = vadd.f32 %v1334, %v1528
        %v1620 = vadd.f32 %v1336, %v1530
        %v1621 = vadd.f32 %v1338, %v1532
        %v1622 = vadd.f32 %v1340, %v1534
        %v1623 = vadd.f32 %v1342, %v1536
        %v1624 = vadd.f32 %v1344, %v1538
        %v1625 = vadd.f32 %v1346, %v1540
        %v1626 = vadd.f32 %v1348, %v1542
        %v1627 = vadd.f32 %v1350, %v1544
        %v1628 = vadd.f32 %v1352, %v1546
        %v1629 = vadd.f32 %v1354, %v1548
        %v1630 = vadd.f32 %v1356, %v1550
        %v1631 = vadd.f32 %v1358, %v1552
        %v1632 = vadd.f32 %v1360, %v1554
        %v1633 = vadd.f32 %v1362, %v1556
        %v1634 = vadd.f32 %v1364, %v1558
        %v1635 = vadd.f32 %v1366, %v1560
        %v1636 = vadd.f32 %v1368, %v1562
        %v1637 = vadd.f32 %v1370, %v1564
        %v1638 = vadd.f32 %v1372, %v1566
        %v1639 = vadd.f32 %v1374, %v1568
        %v1640 = vadd.f32 %v1376, %v1570
        %v1641 = vadd.f32 %v1378, %v1572
        %v1642 = vadd.f32 %v1380, %v1574
        %v1643 = vadd.f32 %v1382, %v1576
        %v1644 = vadd.f32 %v1384, %v1578
        %v1645 = vadd.f32 %v1386, %v1580
        %v1646 = vadd.f32 %v1388, %v1582
        %vm1679 = vcmask 1046528
        %v1680 = vrot.slane %v1327, 1
        %v1681 = vrot.slane %v1329, 1
        %v1682 = vsel %vm1679, %v1680, %v1681
        %v1683 = vrot.slane %v1331, 1
        %v1684 = vrot.slane %v1333, 1
        %v1685 = vsel %vm1679, %v1683, %v1684
        %v1686 = vrot.slane %v1335, 1
        %v1687 = vrot.slane %v1337, 1
        %v1688 = vsel %vm1679, %v1686, %v1687
        %v1689 = vrot.slane %v1339, 1
        %v1690 = vrot.slane %v1341, 1
        %v1691 = vsel %vm1679, %v1689, %v1690
        %v1692 = vrot.slane %v1343, 1
        %v1693 = vrot.slane %v1345, 1
        %v1694 = vsel %vm1679, %v1692, %v1693
        %v1695 = vrot.slane %v1347, 1
        %v1696 = vrot.slane %v1349, 1
        %v1697 = vsel %vm1679, %v1695, %v1696
        %v1698 = vrot.slane %v1351, 1
        %v1699 = vrot.slane %v1353, 1
        %v1700 = vsel %vm1679, %v1698, %v1699
        %v1701 = vrot.slane %v1355, 1
        %v1702 = vrot.slane %v1357, 1
        %v1703 = vsel %vm1679, %v1701, %v1702
        %v1704 = vrot.slane %v1359, 1
        %v1705 = vrot.slane %v1361, 1
        %v1706 = vsel %vm1679, %v1704, %v1705
        %v1707 = vrot.slane %v1363, 1
        %v1708 = vrot.slane %v1365, 1
        %v1709 = vsel %vm1679, %v1707, %v1708
        %v1710 = vrot.slane %v1367, 1
        %v1711 = vrot.slane %v1369, 1
        %v1712 = vsel %vm1679, %v1710, %v1711
        %v1713 = vrot.slane %v1371, 1
        %v1714 = vrot.slane %v1373, 1
        %v1715 = vsel %vm1679, %v1713, %v1714
        %v1716 = vrot.slane %v1375, 1
        %v1717 = vrot.slane %v1377, 1
        %v1718 = vsel %vm1679, %v1716, %v1717
        %v1719 = vrot.slane %v1379, 1
        %v1720 = vrot.slane %v1381, 1
        %v1721 = vsel %vm1679, %v1719, %v1720
        %v1722 = vrot.slane %v1383, 1
        %v1723 = vrot.slane %v1385, 1
        %v1724 = vsel %vm1679, %v1722, %v1723
        %v1725 = vrot.slane %v1387, 1
        %v1726 = vrot.slane %v1389, 1
        %v1727 = vsel %vm1679, %v1725, %v1726
        %v1744 = vsel %vm1679, %v1681, 0.0
        %v1745 = vsel %vm1679, %v1684, 0.0
        %v1746 = vsel %vm1679, %v1687, 0.0
        %v1747 = vsel %vm1679, %v1690, 0.0
        %v1748 = vsel %vm1679, %v1693, 0.0
        %v1749 = vsel %vm1679, %v1696, 0.0
        %v1750 = vsel %vm1679, %v1699, 0.0
        %v1751 = vsel %vm1679, %v1702, 0.0
        %v1752 = vsel %vm1679, %v1705, 0.0
        %v1753 = vsel %vm1679, %v1708, 0.0
        %v1754 = vsel %vm1679, %v1711, 0.0
        %v1755 = vsel %vm1679, %v1714, 0.0
        %v1756 = vsel %vm1679, %v1717, 0.0
        %v1757 = vsel %vm1679, %v1720, 0.0
        %v1758 = vsel %vm1679, %v1723, 0.0
        %v1759 = vsel %vm1679, %v1726, 0.0
        %1776 = vrot.lane.b32.xlu0 %v1682, 64
        %v1777 = vpop.permute.xlu0 %1776
        %1778 = vrot.lane.b32.xlu0 %v1744, 64
        %v1779 = vpop.permute.xlu0 %1778
        %1780 = vrot.lane.b32.xlu0 %v1685, 64
        %v1781 = vpop.permute.xlu0 %1780
        %1782 = vrot.lane.b32.xlu0 %v1745, 64
        %v1783 = vpop.permute.xlu0 %1782
        %1784 = vrot.lane.b32.xlu0 %v1688, 64
        %v1785 = vpop.permute.xlu0 %1784
        %1786 = vrot.lane.b32.xlu0 %v1746, 64
        %v1787 = vpop.permute.xlu0 %1786
        %1788 = vrot.lane.b32.xlu0 %v1691, 64
        %v1789 = vpop.permute.xlu0 %1788
        %1790 = vrot.lane.b32.xlu0 %v1747, 64
        %v1791 = vpop.permute.xlu0 %1790
        %1792 = vrot.lane.b32.xlu0 %v1694, 64
        %v1793 = vpop.permute.xlu0 %1792
        %1794 = vrot.lane.b32.xlu0 %v1748, 64
        %v1795 = vpop.permute.xlu0 %1794
        %1796 = vrot.lane.b32.xlu0 %v1697, 64
        %v1797 = vpop.permute.xlu0 %1796
        %1798 = vrot.lane.b32.xlu0 %v1749, 64
        %v1799 = vpop.permute.xlu0 %1798
        %1800 = vrot.lane.b32.xlu0 %v1700, 64
        %v1801 = vpop.permute.xlu0 %1800
        %1802 = vrot.lane.b32.xlu0 %v1750, 64
        %v1803 = vpop.permute.xlu0 %1802
        %1804 = vrot.lane.b32.xlu0 %v1703, 64
        %v1805 = vpop.permute.xlu0 %1804
        %1806 = vrot.lane.b32.xlu0 %v1751, 64
        %v1807 = vpop.permute.xlu0 %1806
        %1808 = vrot.lane.b32.xlu0 %v1706, 64
        %v1809 = vpop.permute.xlu0 %1808
        %1810 = vrot.lane.b32.xlu0 %v1752, 64
        %v1811 = vpop.permute.xlu0 %1810
        %1812 = vrot.lane.b32.xlu0 %v1709, 64
        %v1813 = vpop.permute.xlu0 %1812
        %1814 = vrot.lane.b32.xlu0 %v1753, 64
        %v1815 = vpop.permute.xlu0 %1814
        %1816 = vrot.lane.b32.xlu0 %v1712, 64
        %v1817 = vpop.permute.xlu0 %1816
        %1818 = vrot.lane.b32.xlu0 %v1754, 64
        %v1819 = vpop.permute.xlu0 %1818
        %1820 = vrot.lane.b32.xlu0 %v1715, 64
        %v1821 = vpop.permute.xlu0 %1820
        %1822 = vrot.lane.b32.xlu0 %v1755, 64
        %v1823 = vpop.permute.xlu0 %1822
        %1824 = vrot.lane.b32.xlu0 %v1718, 64
        %v1825 = vpop.permute.xlu0 %1824
        %1826 = vrot.lane.b32.xlu0 %v1756, 64
        %v1827 = vpop.permute.xlu0 %1826
        %1828 = vrot.lane.b32.xlu0 %v1721, 64
        %v1829 = vpop.permute.xlu0 %1828
        %1830 = vrot.lane.b32.xlu0 %v1757, 64
        %v1831 = vpop.permute.xlu0 %1830
        %1832 = vrot.lane.b32.xlu0 %v1724, 64
        %v1833 = vpop.permute.xlu0 %1832
        %1834 = vrot.lane.b32.xlu0 %v1758, 64
        %v1835 = vpop.permute.xlu0 %1834
        %1836 = vrot.lane.b32.xlu0 %v1727, 64
        %v1837 = vpop.permute.xlu0 %1836
        %1838 = vrot.lane.b32.xlu0 %v1759, 64
        %v1839 = vpop.permute.xlu0 %1838
        %v1872 = vadd.f32 %v1615, %v1777
        %v1873 = vadd.f32 %v1616, %v1779
        %v1874 = vadd.f32 %v1617, %v1781
        %v1875 = vadd.f32 %v1618, %v1783
        %v1876 = vadd.f32 %v1619, %v1785
        %v1877 = vadd.f32 %v1620, %v1787
        %v1878 = vadd.f32 %v1621, %v1789
        %v1879 = vadd.f32 %v1622, %v1791
        %v1880 = vadd.f32 %v1623, %v1793
        %v1881 = vadd.f32 %v1624, %v1795
        %v1882 = vadd.f32 %v1625, %v1797
        %v1883 = vadd.f32 %v1626, %v1799
        %v1884 = vadd.f32 %v1627, %v1801
        %v1885 = vadd.f32 %v1628, %v1803
        %v1886 = vadd.f32 %v1629, %v1805
        %v1887 = vadd.f32 %v1630, %v1807
        %v1888 = vadd.f32 %v1631, %v1809
        %v1889 = vadd.f32 %v1632, %v1811
        %v1890 = vadd.f32 %v1633, %v1813
        %v1891 = vadd.f32 %v1634, %v1815
        %v1892 = vadd.f32 %v1635, %v1817
        %v1893 = vadd.f32 %v1636, %v1819
        %v1894 = vadd.f32 %v1637, %v1821
        %v1895 = vadd.f32 %v1638, %v1823
        %v1896 = vadd.f32 %v1639, %v1825
        %v1897 = vadd.f32 %v1640, %v1827
        %v1898 = vadd.f32 %v1641, %v1829
        %v1899 = vadd.f32 %v1642, %v1831
        %v1900 = vadd.f32 %v1643, %v1833
        %v1901 = vadd.f32 %v1644, %v1835
        %v1902 = vadd.f32 %v1645, %v1837
        %v1903 = vadd.f32 %v1646, %v1839
        %v1904 = vld [vmem:[%s4] sm:$0x1]
        %v1906 = vlaneseq
        %v1907 = vshrl.u32 %v1906, 7
        %v1908 = vsub.s32 0, %v1907
        %v1909 = vrot.slane %v1904, %v1908
        %1910 = vrot.lane.b32.xlu0 %v1909, 64
        %v1911 = vpop.permute.xlu0 %1910
        %v1913 = vadd.f32 %v1872, %v1911
        %v1914 = vadd.f32 %v1873, %v1911
        %v1915 = vadd.f32 %v1874, %v1911
        %v1916 = vadd.f32 %v1875, %v1911
        %v1917 = vadd.f32 %v1876, %v1911
        %v1918 = vadd.f32 %v1877, %v1911
        %v1919 = vadd.f32 %v1878, %v1911
        %v1920 = vadd.f32 %v1879, %v1911
        %v1921 = vadd.f32 %v1880, %v1911
        %v1922 = vadd.f32 %v1881, %v1911
        %v1923 = vadd.f32 %v1882, %v1911
        %v1924 = vadd.f32 %v1883, %v1911
        %v1925 = vadd.f32 %v1884, %v1911
        %v1926 = vadd.f32 %v1885, %v1911
        %v1927 = vadd.f32 %v1886, %v1911
        %v1928 = vadd.f32 %v1887, %v1911
        %v1929 = vadd.f32 %v1888, %v1911
        %v1930 = vadd.f32 %v1889, %v1911
        %v1931 = vadd.f32 %v1890, %v1911
        %v1932 = vadd.f32 %v1891, %v1911
        %v1933 = vadd.f32 %v1892, %v1911
        %v1934 = vadd.f32 %v1893, %v1911
        %v1935 = vadd.f32 %v1894, %v1911
        %v1936 = vadd.f32 %v1895, %v1911
        %v1937 = vadd.f32 %v1896, %v1911
        %v1938 = vadd.f32 %v1897, %v1911
        %v1939 = vadd.f32 %v1898, %v1911
        %v1940 = vadd.f32 %v1899, %v1911
        %v1941 = vadd.f32 %v1900, %v1911
        %v1942 = vadd.f32 %v1901, %v1911
        %v1943 = vadd.f32 %v1902, %v1911
        %v1944 = vadd.f32 %v1903, %v1911
        %v1945 = vmax.f32 %v1913, 0.0
        %v1946 = vmax.f32 %v1914, 0.0
        %v1947 = vmax.f32 %v1915, 0.0
        %v1948 = vmax.f32 %v1916, 0.0
        %v1949 = vmax.f32 %v1917, 0.0
        %v1950 = vmax.f32 %v1918, 0.0
        %v1951 = vmax.f32 %v1919, 0.0
        %v1952 = vmax.f32 %v1920, 0.0
        %v1953 = vmax.f32 %v1921, 0.0
        %v1954 = vmax.f32 %v1922, 0.0
        %v1955 = vmax.f32 %v1923, 0.0
        %v1956 = vmax.f32 %v1924, 0.0
        %v1957 = vmax.f32 %v1925, 0.0
        %v1958 = vmax.f32 %v1926, 0.0
        %v1959 = vmax.f32 %v1927, 0.0
        %v1960 = vmax.f32 %v1928, 0.0
        %v1961 = vmax.f32 %v1929, 0.0
        %v1962 = vmax.f32 %v1930, 0.0
        %v1963 = vmax.f32 %v1931, 0.0
        %v1964 = vmax.f32 %v1932, 0.0
        %v1965 = vmax.f32 %v1933, 0.0
        %v1966 = vmax.f32 %v1934, 0.0
        %v1967 = vmax.f32 %v1935, 0.0
        %v1968 = vmax.f32 %v1936, 0.0
        %v1969 = vmax.f32 %v1937, 0.0
        %v1970 = vmax.f32 %v1938, 0.0
        %v1971 = vmax.f32 %v1939, 0.0
        %v1972 = vmax.f32 %v1940, 0.0
        %v1973 = vmax.f32 %v1941, 0.0
        %v1974 = vmax.f32 %v1942, 0.0
        %v1975 = vmax.f32 %v1943, 0.0
        %v1976 = vmax.f32 %v1944, 0.0
        %v2009 = vcombine.high %v1945, %v1945
        %v2011 = vunpack.c.l.s4 1983009808
        %v2012 = vunpack.c.0.s8 %v2011
        %v2013 = vlaneseq
        %v2014 = vshrl.u32 %v2013, 7
        %v2015 = vsub.s32 %v2012, %v2014
        %v2016 = vrot.slane %v1945, %v2015
        %v2018 = vunpack.c.l.s4 1983009808
        %v2019 = vunpack.c.0.s8 %v2018
        %v2020 = vlaneseq
        %v2021 = vshrl.u32 %v2020, 7
        %v2022 = vsub.s32 %v2019, %v2021
        %v2023 = vrot.slane %v2009, %v2022
        %v2024 = vcombine.high %v2016, %v2016
        %v2025 = vcombine.high %v2023, %v2023
        %v2026 = vcombine.high %v1946, %v1946
        %v2028 = vunpack.c.l.s4 1983009808
        %v2029 = vunpack.c.0.s8 %v2028
        %v2030 = vlaneseq
        %v2031 = vshrl.u32 %v2030, 7
        %v2032 = vsub.s32 %v2029, %v2031
        %v2033 = vrot.slane %v1946, %v2032
        %v2035 = vunpack.c.l.s4 1983009808
        %v2036 = vunpack.c.0.s8 %v2035
        %v2037 = vlaneseq
        %v2038 = vshrl.u32 %v2037, 7
        %v2039 = vsub.s32 %v2036, %v2038
        %v2040 = vrot.slane %v2026, %v2039
        %v2041 = vcombine.high %v2033, %v2033
        %v2042 = vcombine.high %v2040, %v2040
        %v2043 = vcombine.high %v1947, %v1947
        %v2045 = vunpack.c.l.s4 1983009808
        %v2046 = vunpack.c.0.s8 %v2045
        %v2047 = vlaneseq
        %v2048 = vshrl.u32 %v2047, 7
        %v2049 = vsub.s32 %v2046, %v2048
        %v2050 = vrot.slane %v1947, %v2049
        %v2052 = vunpack.c.l.s4 1983009808
        %v2053 = vunpack.c.0.s8 %v2052
        %v2054 = vlaneseq
        %v2055 = vshrl.u32 %v2054, 7
        %v2056 = vsub.s32 %v2053, %v2055
        %v2057 = vrot.slane %v2043, %v2056
        %v2058 = vcombine.high %v2050, %v2050
        %v2059 = vcombine.high %v2057, %v2057
        %v2060 = vcombine.high %v1948, %v1948
        %v2062 = vunpack.c.l.s4 1983009808
        %v2063 = vunpack.c.0.s8 %v2062
        %v2064 = vlaneseq
        %v2065 = vshrl.u32 %v2064, 7
        %v2066 = vsub.s32 %v2063, %v2065
        %v2067 = vrot.slane %v1948, %v2066
        %v2069 = vunpack.c.l.s4 1983009808
        %v2070 = vunpack.c.0.s8 %v2069
        %v2071 = vlaneseq
        %v2072 = vshrl.u32 %v2071, 7
        %v2073 = vsub.s32 %v2070, %v2072
        %v2074 = vrot.slane %v2060, %v2073
        %v2075 = vcombine.high %v2067, %v2067
        %v2076 = vcombine.high %v2074, %v2074
        %v2077 = vcombine.high %v1949, %v1949
        %v2079 = vunpack.c.l.s4 1983009808
        %v2080 = vunpack.c.0.s8 %v2079
        %v2081 = vlaneseq
        %v2082 = vshrl.u32 %v2081, 7
        %v2083 = vsub.s32 %v2080, %v2082
        %v2084 = vrot.slane %v1949, %v2083
        %v2086 = vunpack.c.l.s4 1983009808
        %v2087 = vunpack.c.0.s8 %v2086
        %v2088 = vlaneseq
        %v2089 = vshrl.u32 %v2088, 7
        %v2090 = vsub.s32 %v2087, %v2089
        %v2091 = vrot.slane %v2077, %v2090
        %v2092 = vcombine.high %v2084, %v2084
        %v2093 = vcombine.high %v2091, %v2091
        %v2094 = vcombine.high %v1950, %v1950
        %v2096 = vunpack.c.l.s4 1983009808
        %v2097 = vunpack.c.0.s8 %v2096
        %v2098 = vlaneseq
        %v2099 = vshrl.u32 %v2098, 7
        %v2100 = vsub.s32 %v2097, %v2099
        %v2101 = vrot.slane %v1950, %v2100
        %v2103 = vunpack.c.l.s4 1983009808
        %v2104 = vunpack.c.0.s8 %v2103
        %v2105 = vlaneseq
        %v2106 = vshrl.u32 %v2105, 7
        %v2107 = vsub.s32 %v2104, %v2106
        %v2108 = vrot.slane %v2094, %v2107
        %v2109 = vcombine.high %v2101, %v2101
        %v2110 = vcombine.high %v2108, %v2108
        %v2111 = vcombine.high %v1951, %v1951
        %v2113 = vunpack.c.l.s4 1983009808
        %v2114 = vunpack.c.0.s8 %v2113
        %v2115 = vlaneseq
        %v2116 = vshrl.u32 %v2115, 7
        %v2117 = vsub.s32 %v2114, %v2116
        %v2118 = vrot.slane %v1951, %v2117
        %v2120 = vunpack.c.l.s4 1983009808
        %v2121 = vunpack.c.0.s8 %v2120
        %v2122 = vlaneseq
        %v2123 = vshrl.u32 %v2122, 7
        %v2124 = vsub.s32 %v2121, %v2123
        %v2125 = vrot.slane %v2111, %v2124
        %v2126 = vcombine.high %v2118, %v2118
        %v2127 = vcombine.high %v2125, %v2125
        %v2128 = vcombine.high %v1952, %v1952
        %v2130 = vunpack.c.l.s4 1983009808
        %v2131 = vunpack.c.0.s8 %v2130
        %v2132 = vlaneseq
        %v2133 = vshrl.u32 %v2132, 7
        %v2134 = vsub.s32 %v2131, %v2133
        %v2135 = vrot.slane %v1952, %v2134
        %v2137 = vunpack.c.l.s4 1983009808
        %v2138 = vunpack.c.0.s8 %v2137
        %v2139 = vlaneseq
        %v2140 = vshrl.u32 %v2139, 7
        %v2141 = vsub.s32 %v2138, %v2140
        %v2142 = vrot.slane %v2128, %v2141
        %v2143 = vcombine.high %v2135, %v2135
        %v2144 = vcombine.high %v2142, %v2142
        %v2145 = vcombine.high %v1953, %v1953
        %v2147 = vunpack.c.l.s4 1983009808
        %v2148 = vunpack.c.0.s8 %v2147
        %v2149 = vlaneseq
        %v2150 = vshrl.u32 %v2149, 7
        %v2151 = vsub.s32 %v2148, %v2150
        %v2152 = vrot.slane %v1953, %v2151
        %v2154 = vunpack.c.l.s4 1983009808
        %v2155 = vunpack.c.0.s8 %v2154
        %v2156 = vlaneseq
        %v2157 = vshrl.u32 %v2156, 7
        %v2158 = vsub.s32 %v2155, %v2157
        %v2159 = vrot.slane %v2145, %v2158
        %v2160 = vcombine.high %v2152, %v2152
        %v2161 = vcombine.high %v2159, %v2159
        %v2162 = vcombine.high %v1954, %v1954
        %v2164 = vunpack.c.l.s4 1983009808
        %v2165 = vunpack.c.0.s8 %v2164
        %v2166 = vlaneseq
        %v2167 = vshrl.u32 %v2166, 7
        %v2168 = vsub.s32 %v2165, %v2167
        %v2169 = vrot.slane %v1954, %v2168
        %v2171 = vunpack.c.l.s4 1983009808
        %v2172 = vunpack.c.0.s8 %v2171
        %v2173 = vlaneseq
        %v2174 = vshrl.u32 %v2173, 7
        %v2175 = vsub.s32 %v2172, %v2174
        %v2176 = vrot.slane %v2162, %v2175
        %v2177 = vcombine.high %v2169, %v2169
        %v2178 = vcombine.high %v2176, %v2176
        %v2179 = vcombine.high %v1955, %v1955
        %v2181 = vunpack.c.l.s4 1983009808
        %v2182 = vunpack.c.0.s8 %v2181
        %v2183 = vlaneseq
        %v2184 = vshrl.u32 %v2183, 7
        %v2185 = vsub.s32 %v2182, %v2184
        %v2186 = vrot.slane %v1955, %v2185
        %v2188 = vunpack.c.l.s4 1983009808
        %v2189 = vunpack.c.0.s8 %v2188
        %v2190 = vlaneseq
        %v2191 = vshrl.u32 %v2190, 7
        %v2192 = vsub.s32 %v2189, %v2191
        %v2193 = vrot.slane %v2179, %v2192
        %v2194 = vcombine.high %v2186, %v2186
        %v2195 = vcombine.high %v2193, %v2193
        %v2196 = vcombine.high %v1956, %v1956
        %v2198 = vunpack.c.l.s4 1983009808
        %v2199 = vunpack.c.0.s8 %v2198
        %v2200 = vlaneseq
        %v2201 = vshrl.u32 %v2200, 7
        %v2202 = vsub.s32 %v2199, %v2201
        %v2203 = vrot.slane %v1956, %v2202
        %v2205 = vunpack.c.l.s4 1983009808
        %v2206 = vunpack.c.0.s8 %v2205
        %v2207 = vlaneseq
        %v2208 = vshrl.u32 %v2207, 7
        %v2209 = vsub.s32 %v2206, %v2208
        %v2210 = vrot.slane %v2196, %v2209
        %v2211 = vcombine.high %v2203, %v2203
        %v2212 = vcombine.high %v2210, %v2210
        %v2213 = vcombine.high %v1957, %v1957
        %v2215 = vunpack.c.l.s4 1983009808
        %v2216 = vunpack.c.0.s8 %v2215
        %v2217 = vlaneseq
        %v2218 = vshrl.u32 %v2217, 7
        %v2219 = vsub.s32 %v2216, %v2218
        %v2220 = vrot.slane %v1957, %v2219
        %v2222 = vunpack.c.l.s4 1983009808
        %v2223 = vunpack.c.0.s8 %v2222
        %v2224 = vlaneseq
        %v2225 = vshrl.u32 %v2224, 7
        %v2226 = vsub.s32 %v2223, %v2225
        %v2227 = vrot.slane %v2213, %v2226
        %v2228 = vcombine.high %v2220, %v2220
        %v2229 = vcombine.high %v2227, %v2227
        %v2230 = vcombine.high %v1958, %v1958
        %v2232 = vunpack.c.l.s4 1983009808
        %v2233 = vunpack.c.0.s8 %v2232
        %v2234 = vlaneseq
        %v2235 = vshrl.u32 %v2234, 7
        %v2236 = vsub.s32 %v2233, %v2235
        %v2237 = vrot.slane %v1958, %v2236
        %v2239 = vunpack.c.l.s4 1983009808
        %v2240 = vunpack.c.0.s8 %v2239
        %v2241 = vlaneseq
        %v2242 = vshrl.u32 %v2241, 7
        %v2243 = vsub.s32 %v2240, %v2242
        %v2244 = vrot.slane %v2230, %v2243
        %v2245 = vcombine.high %v2237, %v2237
        %v2246 = vcombine.high %v2244, %v2244
        %v2247 = vcombine.high %v1959, %v1959
        %v2249 = vunpack.c.l.s4 1983009808
        %v2250 = vunpack.c.0.s8 %v2249
        %v2251 = vlaneseq
        %v2252 = vshrl.u32 %v2251, 7
        %v2253 = vsub.s32 %v2250, %v2252
        %v2254 = vrot.slane %v1959, %v2253
        %v2256 = vunpack.c.l.s4 1983009808
        %v2257 = vunpack.c.0.s8 %v2256
        %v2258 = vlaneseq
        %v2259 = vshrl.u32 %v2258, 7
        %v2260 = vsub.s32 %v2257, %v2259
        %v2261 = vrot.slane %v2247, %v2260
        %v2262 = vcombine.high %v2254, %v2254
        %v2263 = vcombine.high %v2261, %v2261
        %v2264 = vcombine.high %v1960, %v1960
        %v2266 = vunpack.c.l.s4 1983009808
        %v2267 = vunpack.c.0.s8 %v2266
        %v2268 = vlaneseq
        %v2269 = vshrl.u32 %v2268, 7
        %v2270 = vsub.s32 %v2267, %v2269
        %v2271 = vrot.slane %v1960, %v2270
        %v2273 = vunpack.c.l.s4 1983009808
        %v2274 = vunpack.c.0.s8 %v2273
        %v2275 = vlaneseq
        %v2276 = vshrl.u32 %v2275, 7
        %v2277 = vsub.s32 %v2274, %v2276
        %v2278 = vrot.slane %v2264, %v2277
        %v2279 = vcombine.high %v2271, %v2271
        %v2280 = vcombine.high %v2278, %v2278
        %v2281 = vcombine.high %v1961, %v1961
        %v2283 = vunpack.c.l.s4 1983009808
        %v2284 = vunpack.c.0.s8 %v2283
        %v2285 = vlaneseq
        %v2286 = vshrl.u32 %v2285, 7
        %v2287 = vsub.s32 %v2284, %v2286
        %v2288 = vrot.slane %v1961, %v2287
        %v2290 = vunpack.c.l.s4 1983009808
        %v2291 = vunpack.c.0.s8 %v2290
        %v2292 = vlaneseq
        %v2293 = vshrl.u32 %v2292, 7
        %v2294 = vsub.s32 %v2291, %v2293
        %v2295 = vrot.slane %v2281, %v2294
        %v2296 = vcombine.high %v2288, %v2288
        %v2297 = vcombine.high %v2295, %v2295
        %v2298 = vcombine.high %v1962, %v1962
        %v2300 = vunpack.c.l.s4 1983009808
        %v2301 = vunpack.c.0.s8 %v2300
        %v2302 = vlaneseq
        %v2303 = vshrl.u32 %v2302, 7
        %v2304 = vsub.s32 %v2301, %v2303
        %v2305 = vrot.slane %v1962, %v2304
        %v2307 = vunpack.c.l.s4 1983009808
        %v2308 = vunpack.c.0.s8 %v2307
        %v2309 = vlaneseq
        %v2310 = vshrl.u32 %v2309, 7
        %v2311 = vsub.s32 %v2308, %v2310
        %v2312 = vrot.slane %v2298, %v2311
        %v2313 = vcombine.high %v2305, %v2305
        %v2314 = vcombine.high %v2312, %v2312
        %v2315 = vcombine.high %v1963, %v1963
        %v2317 = vunpack.c.l.s4 1983009808
        %v2318 = vunpack.c.0.s8 %v2317
        %v2319 = vlaneseq
        %v2320 = vshrl.u32 %v2319, 7
        %v2321 = vsub.s32 %v2318, %v2320
        %v2322 = vrot.slane %v1963, %v2321
        %v2324 = vunpack.c.l.s4 1983009808
        %v2325 = vunpack.c.0.s8 %v2324
        %v2326 = vlaneseq
        %v2327 = vshrl.u32 %v2326, 7
        %v2328 = vsub.s32 %v2325, %v2327
        %v2329 = vrot.slane %v2315, %v2328
        %v2330 = vcombine.high %v2322, %v2322
        %v2331 = vcombine.high %v2329, %v2329
        %v2332 = vcombine.high %v1964, %v1964
        %v2334 = vunpack.c.l.s4 1983009808
        %v2335 = vunpack.c.0.s8 %v2334
        %v2336 = vlaneseq
        %v2337 = vshrl.u32 %v2336, 7
        %v2338 = vsub.s32 %v2335, %v2337
        %v2339 = vrot.slane %v1964, %v2338
        %v2341 = vunpack.c.l.s4 1983009808
        %v2342 = vunpack.c.0.s8 %v2341
        %v2343 = vlaneseq
        %v2344 = vshrl.u32 %v2343, 7
        %v2345 = vsub.s32 %v2342, %v2344
        %v2346 = vrot.slane %v2332, %v2345
        %v2347 = vcombine.high %v2339, %v2339
        %v2348 = vcombine.high %v2346, %v2346
        %v2349 = vcombine.high %v1965, %v1965
        %v2351 = vunpack.c.l.s4 1983009808
        %v2352 = vunpack.c.0.s8 %v2351
        %v2353 = vlaneseq
        %v2354 = vshrl.u32 %v2353, 7
        %v2355 = vsub.s32 %v2352, %v2354
        %v2356 = vrot.slane %v1965, %v2355
        %v2358 = vunpack.c.l.s4 1983009808
        %v2359 = vunpack.c.0.s8 %v2358
        %v2360 = vlaneseq
        %v2361 = vshrl.u32 %v2360, 7
        %v2362 = vsub.s32 %v2359, %v2361
        %v2363 = vrot.slane %v2349, %v2362
        %v2364 = vcombine.high %v2356, %v2356
        %v2365 = vcombine.high %v2363, %v2363
        %v2366 = vcombine.high %v1966, %v1966
        %v2368 = vunpack.c.l.s4 1983009808
        %v2369 = vunpack.c.0.s8 %v2368
        %v2370 = vlaneseq
        %v2371 = vshrl.u32 %v2370, 7
        %v2372 = vsub.s32 %v2369, %v2371
        %v2373 = vrot.slane %v1966, %v2372
        %v2375 = vunpack.c.l.s4 1983009808
        %v2376 = vunpack.c.0.s8 %v2375
        %v2377 = vlaneseq
        %v2378 = vshrl.u32 %v2377, 7
        %v2379 = vsub.s32 %v2376, %v2378
        %v2380 = vrot.slane %v2366, %v2379
        %v2381 = vcombine.high %v2373, %v2373
        %v2382 = vcombine.high %v2380, %v2380
        %v2383 = vcombine.high %v1967, %v1967
        %v2385 = vunpack.c.l.s4 1983009808
        %v2386 = vunpack.c.0.s8 %v2385
        %v2387 = vlaneseq
        %v2388 = vshrl.u32 %v2387, 7
        %v2389 = vsub.s32 %v2386, %v2388
        %v2390 = vrot.slane %v1967, %v2389
        %v2392 = vunpack.c.l.s4 1983009808
        %v2393 = vunpack.c.0.s8 %v2392
        %v2394 = vlaneseq
        %v2395 = vshrl.u32 %v2394, 7
        %v2396 = vsub.s32 %v2393, %v2395
        %v2397 = vrot.slane %v2383, %v2396
        %v2398 = vcombine.high %v2390, %v2390
        %v2399 = vcombine.high %v2397, %v2397
        %v2400 = vcombine.high %v1968, %v1968
        %v2402 = vunpack.c.l.s4 1983009808
        %v2403 = vunpack.c.0.s8 %v2402
        %v2404 = vlaneseq
        %v2405 = vshrl.u32 %v2404, 7
        %v2406 = vsub.s32 %v2403, %v2405
        %v2407 = vrot.slane %v1968, %v2406
        %v2409 = vunpack.c.l.s4 1983009808
        %v2410 = vunpack.c.0.s8 %v2409
        %v2411 = vlaneseq
        %v2412 = vshrl.u32 %v2411, 7
        %v2413 = vsub.s32 %v2410, %v2412
        %v2414 = vrot.slane %v2400, %v2413
        %v2415 = vcombine.high %v2407, %v2407
        %v2416 = vcombine.high %v2414, %v2414
        %v2417 = vcombine.high %v1969, %v1969
        %v2419 = vunpack.c.l.s4 1983009808
        %v2420 = vunpack.c.0.s8 %v2419
        %v2421 = vlaneseq
        %v2422 = vshrl.u32 %v2421, 7
        %v2423 = vsub.s32 %v2420, %v2422
        %v2424 = vrot.slane %v1969, %v2423
        %v2426 = vunpack.c.l.s4 1983009808
        %v2427 = vunpack.c.0.s8 %v2426
        %v2428 = vlaneseq
        %v2429 = vshrl.u32 %v2428, 7
        %v2430 = vsub.s32 %v2427, %v2429
        %v2431 = vrot.slane %v2417, %v2430
        %v2432 = vcombine.high %v2424, %v2424
        %v2433 = vcombine.high %v2431, %v2431
        %v2434 = vcombine.high %v1970, %v1970
        %v2436 = vunpack.c.l.s4 1983009808
        %v2437 = vunpack.c.0.s8 %v2436
        %v2438 = vlaneseq
        %v2439 = vshrl.u32 %v2438, 7
        %v2440 = vsub.s32 %v2437, %v2439
        %v2441 = vrot.slane %v1970, %v2440
        %v2443 = vunpack.c.l.s4 1983009808
        %v2444 = vunpack.c.0.s8 %v2443
        %v2445 = vlaneseq
        %v2446 = vshrl.u32 %v2445, 7
        %v2447 = vsub.s32 %v2444, %v2446
        %v2448 = vrot.slane %v2434, %v2447
        %v2449 = vcombine.high %v2441, %v2441
        %v2450 = vcombine.high %v2448, %v2448
        %v2451 = vcombine.high %v1971, %v1971
        %v2453 = vunpack.c.l.s4 1983009808
        %v2454 = vunpack.c.0.s8 %v2453
        %v2455 = vlaneseq
        %v2456 = vshrl.u32 %v2455, 7
        %v2457 = vsub.s32 %v2454, %v2456
        %v2458 = vrot.slane %v1971, %v2457
        %v2460 = vunpack.c.l.s4 1983009808
        %v2461 = vunpack.c.0.s8 %v2460
        %v2462 = vlaneseq
        %v2463 = vshrl.u32 %v2462, 7
        %v2464 = vsub.s32 %v2461, %v2463
        %v2465 = vrot.slane %v2451, %v2464
        %v2466 = vcombine.high %v2458, %v2458
        %v2467 = vcombine.high %v2465, %v2465
        %v2468 = vcombine.high %v1972, %v1972
        %v2470 = vunpack.c.l.s4 1983009808
        %v2471 = vunpack.c.0.s8 %v2470
        %v2472 = vlaneseq
        %v2473 = vshrl.u32 %v2472, 7
        %v2474 = vsub.s32 %v2471, %v2473
        %v2475 = vrot.slane %v1972, %v2474
        %v2477 = vunpack.c.l.s4 1983009808
        %v2478 = vunpack.c.0.s8 %v2477
        %v2479 = vlaneseq
        %v2480 = vshrl.u32 %v2479, 7
        %v2481 = vsub.s32 %v2478, %v2480
        %v2482 = vrot.slane %v2468, %v2481
        %v2483 = vcombine.high %v2475, %v2475
        %v2484 = vcombine.high %v2482, %v2482
        %v2485 = vcombine.high %v1973, %v1973
        %v2487 = vunpack.c.l.s4 1983009808
        %v2488 = vunpack.c.0.s8 %v2487
        %v2489 = vlaneseq
        %v2490 = vshrl.u32 %v2489, 7
        %v2491 = vsub.s32 %v2488, %v2490
        %v2492 = vrot.slane %v1973, %v2491
        %v2494 = vunpack.c.l.s4 1983009808
        %v2495 = vunpack.c.0.s8 %v2494
        %v2496 = vlaneseq
        %v2497 = vshrl.u32 %v2496, 7
        %v2498 = vsub.s32 %v2495, %v2497
        %v2499 = vrot.slane %v2485, %v2498
        %v2500 = vcombine.high %v2492, %v2492
        %v2501 = vcombine.high %v2499, %v2499
        %v2502 = vcombine.high %v1974, %v1974
        %v2504 = vunpack.c.l.s4 1983009808
        %v2505 = vunpack.c.0.s8 %v2504
        %v2506 = vlaneseq
        %v2507 = vshrl.u32 %v2506, 7
        %v2508 = vsub.s32 %v2505, %v2507
        %v2509 = vrot.slane %v1974, %v2508
        %v2511 = vunpack.c.l.s4 1983009808
        %v2512 = vunpack.c.0.s8 %v2511
        %v2513 = vlaneseq
        %v2514 = vshrl.u32 %v2513, 7
        %v2515 = vsub.s32 %v2512, %v2514
        %v2516 = vrot.slane %v2502, %v2515
        %v2517 = vcombine.high %v2509, %v2509
        %v2518 = vcombine.high %v2516, %v2516
        %v2519 = vcombine.high %v1975, %v1975
        %v2521 = vunpack.c.l.s4 1983009808
        %v2522 = vunpack.c.0.s8 %v2521
        %v2523 = vlaneseq
        %v2524 = vshrl.u32 %v2523, 7
        %v2525 = vsub.s32 %v2522, %v2524
        %v2526 = vrot.slane %v1975, %v2525
        %v2528 = vunpack.c.l.s4 1983009808
        %v2529 = vunpack.c.0.s8 %v2528
        %v2530 = vlaneseq
        %v2531 = vshrl.u32 %v2530, 7
        %v2532 = vsub.s32 %v2529, %v2531
        %v2533 = vrot.slane %v2519, %v2532
        %v2534 = vcombine.high %v2526, %v2526
        %v2535 = vcombine.high %v2533, %v2533
        %v2536 = vcombine.high %v1976, %v1976
        %v2538 = vunpack.c.l.s4 1983009808
        %v2539 = vunpack.c.0.s8 %v2538
        %v2540 = vlaneseq
        %v2541 = vshrl.u32 %v2540, 7
        %v2542 = vsub.s32 %v2539, %v2541
        %v2543 = vrot.slane %v1976, %v2542
        %v2545 = vunpack.c.l.s4 1983009808
        %v2546 = vunpack.c.0.s8 %v2545
        %v2547 = vlaneseq
        %v2548 = vshrl.u32 %v2547, 7
        %v2549 = vsub.s32 %v2546, %v2548
        %v2550 = vrot.slane %v2536, %v2549
        %v2551 = vcombine.high %v2543, %v2543
        %v2552 = vcombine.high %v2550, %v2550
        %vm2681 = vcmask 1041920
        %v2682 = vsel %vm2681, %v2016, -inf
        %v2683 = vrot.slane %v2682, 4
        %v2684 = vmax.f32 %v2682, %v2683
        %v2685 = vrot.slane %v2684, 2
        %v2686 = vmax.f32 %v2684, %v2685
        %v2687 = vrot.slane %v2686, 1
        %v2688 = vmax.f32 %v2686, %v2687
        %v2689 = vsel %vm2681, %v2024, -inf
        %v2690 = vrot.slane %v2689, 4
        %v2691 = vmax.f32 %v2689, %v2690
        %v2692 = vrot.slane %v2691, 2
        %v2693 = vmax.f32 %v2691, %v2692
        %v2694 = vrot.slane %v2693, 1
        %v2695 = vmax.f32 %v2693, %v2694
        %v2696 = vsel %vm2681, %v2023, -inf
        %v2697 = vrot.slane %v2696, 4
        %v2698 = vmax.f32 %v2696, %v2697
        %v2699 = vrot.slane %v2698, 2
        %v2700 = vmax.f32 %v2698, %v2699
        %v2701 = vrot.slane %v2700, 1
        %v2702 = vmax.f32 %v2700, %v2701
        %v2703 = vsel %vm2681, %v2025, -inf
        %v2704 = vrot.slane %v2703, 4
        %v2705 = vmax.f32 %v2703, %v2704
        %v2706 = vrot.slane %v2705, 2
        %v2707 = vmax.f32 %v2705, %v2706
        %v2708 = vrot.slane %v2707, 1
        %v2709 = vmax.f32 %v2707, %v2708
        %v2710 = vsel %vm2681, %v2033, -inf
        %v2711 = vrot.slane %v2710, 4
        %v2712 = vmax.f32 %v2710, %v2711
        %v2713 = vrot.slane %v2712, 2
        %v2714 = vmax.f32 %v2712, %v2713
        %v2715 = vrot.slane %v2714, 1
        %v2716 = vmax.f32 %v2714, %v2715
        %v2717 = vsel %vm2681, %v2041, -inf
        %v2718 = vrot.slane %v2717, 4
        %v2719 = vmax.f32 %v2717, %v2718
        %v2720 = vrot.slane %v2719, 2
        %v2721 = vmax.f32 %v2719, %v2720
        %v2722 = vrot.slane %v2721, 1
        %v2723 = vmax.f32 %v2721, %v2722
        %v2724 = vsel %vm2681, %v2040, -inf
        %v2725 = vrot.slane %v2724, 4
        %v2726 = vmax.f32 %v2724, %v2725
        %v2727 = vrot.slane %v2726, 2
        %v2728 = vmax.f32 %v2726, %v2727
        %v2729 = vrot.slane %v2728, 1
        %v2730 = vmax.f32 %v2728, %v2729
        %v2731 = vsel %vm2681, %v2042, -inf
        %v2732 = vrot.slane %v2731, 4
        %v2733 = vmax.f32 %v2731, %v2732
        %v2734 = vrot.slane %v2733, 2
        %v2735 = vmax.f32 %v2733, %v2734
        %v2736 = vrot.slane %v2735, 1
        %v2737 = vmax.f32 %v2735, %v2736
        %v2738 = vsel %vm2681, %v2050, -inf
        %v2739 = vrot.slane %v2738, 4
        %v2740 = vmax.f32 %v2738, %v2739
        %v2741 = vrot.slane %v2740, 2
        %v2742 = vmax.f32 %v2740, %v2741
        %v2743 = vrot.slane %v2742, 1
        %v2744 = vmax.f32 %v2742, %v2743
        %v2745 = vsel %vm2681, %v2058, -inf
        %v2746 = vrot.slane %v2745, 4
        %v2747 = vmax.f32 %v2745, %v2746
        %v2748 = vrot.slane %v2747, 2
        %v2749 = vmax.f32 %v2747, %v2748
        %v2750 = vrot.slane %v2749, 1
        %v2751 = vmax.f32 %v2749, %v2750
        %v2752 = vsel %vm2681, %v2057, -inf
        %v2753 = vrot.slane %v2752, 4
        %v2754 = vmax.f32 %v2752, %v2753
        %v2755 = vrot.slane %v2754, 2
        %v2756 = vmax.f32 %v2754, %v2755
        %v2757 = vrot.slane %v2756, 1
        %v2758 = vmax.f32 %v2756, %v2757
        %v2759 = vsel %vm2681, %v2059, -inf
        %v2760 = vrot.slane %v2759, 4
        %v2761 = vmax.f32 %v2759, %v2760
        %v2762 = vrot.slane %v2761, 2
        %v2763 = vmax.f32 %v2761, %v2762
        %v2764 = vrot.slane %v2763, 1
        %v2765 = vmax.f32 %v2763, %v2764
        %v2766 = vsel %vm2681, %v2067, -inf
        %v2767 = vrot.slane %v2766, 4
        %v2768 = vmax.f32 %v2766, %v2767
        %v2769 = vrot.slane %v2768, 2
        %v2770 = vmax.f32 %v2768, %v2769
        %v2771 = vrot.slane %v2770, 1
        %v2772 = vmax.f32 %v2770, %v2771
        %v2773 = vsel %vm2681, %v2075, -inf
        %v2774 = vrot.slane %v2773, 4
        %v2775 = vmax.f32 %v2773, %v2774
        %v2776 = vrot.slane %v2775, 2
        %v2777 = vmax.f32 %v2775, %v2776
        %v2778 = vrot.slane %v2777, 1
        %v2779 = vmax.f32 %v2777, %v2778
        %v2780 = vsel %vm2681, %v2074, -inf
        %v2781 = vrot.slane %v2780, 4
        %v2782 = vmax.f32 %v2780, %v2781
        %v2783 = vrot.slane %v2782, 2
        %v2784 = vmax.f32 %v2782, %v2783
        %v2785 = vrot.slane %v2784, 1
        %v2786 = vmax.f32 %v2784, %v2785
        %v2787 = vsel %vm2681, %v2076, -inf
        %v2788 = vrot.slane %v2787, 4
        %v2789 = vmax.f32 %v2787, %v2788
        %v2790 = vrot.slane %v2789, 2
        %v2791 = vmax.f32 %v2789, %v2790
        %v2792 = vrot.slane %v2791, 1
        %v2793 = vmax.f32 %v2791, %v2792
        %v2794 = vsel %vm2681, %v2084, -inf
        %v2795 = vrot.slane %v2794, 4
        %v2796 = vmax.f32 %v2794, %v2795
        %v2797 = vrot.slane %v2796, 2
        %v2798 = vmax.f32 %v2796, %v2797
        %v2799 = vrot.slane %v2798, 1
        %v2800 = vmax.f32 %v2798, %v2799
        %v2801 = vsel %vm2681, %v2092, -inf
        %v2802 = vrot.slane %v2801, 4
        %v2803 = vmax.f32 %v2801, %v2802
        %v2804 = vrot.slane %v2803, 2
        %v2805 = vmax.f32 %v2803, %v2804
        %v2806 = vrot.slane %v2805, 1
        %v2807 = vmax.f32 %v2805, %v2806
        %v2808 = vsel %vm2681, %v2091, -inf
        %v2809 = vrot.slane %v2808, 4
        %v2810 = vmax.f32 %v2808, %v2809
        %v2811 = vrot.slane %v2810, 2
        %v2812 = vmax.f32 %v2810, %v2811
        %v2813 = vrot.slane %v2812, 1
        %v2814 = vmax.f32 %v2812, %v2813
        %v2815 = vsel %vm2681, %v2093, -inf
        %v2816 = vrot.slane %v2815, 4
        %v2817 = vmax.f32 %v2815, %v2816
        %v2818 = vrot.slane %v2817, 2
        %v2819 = vmax.f32 %v2817, %v2818
        %v2820 = vrot.slane %v2819, 1
        %v2821 = vmax.f32 %v2819, %v2820
        %v2822 = vsel %vm2681, %v2101, -inf
        %v2823 = vrot.slane %v2822, 4
        %v2824 = vmax.f32 %v2822, %v2823
        %v2825 = vrot.slane %v2824, 2
        %v2826 = vmax.f32 %v2824, %v2825
        %v2827 = vrot.slane %v2826, 1
        %v2828 = vmax.f32 %v2826, %v2827
        %v2829 = vsel %vm2681, %v2109, -inf
        %v2830 = vrot.slane %v2829, 4
        %v2831 = vmax.f32 %v2829, %v2830
        %v2832 = vrot.slane %v2831, 2
        %v2833 = vmax.f32 %v2831, %v2832
        %v2834 = vrot.slane %v2833, 1
        %v2835 = vmax.f32 %v2833, %v2834
        %v2836 = vsel %vm2681, %v2108, -inf
        %v2837 = vrot.slane %v2836, 4
        %v2838 = vmax.f32 %v2836, %v2837
        %v2839 = vrot.slane %v2838, 2
        %v2840 = vmax.f32 %v2838, %v2839
        %v2841 = vrot.slane %v2840, 1
        %v2842 = vmax.f32 %v2840, %v2841
        %v2843 = vsel %vm2681, %v2110, -inf
        %v2844 = vrot.slane %v2843, 4
        %v2845 = vmax.f32 %v2843, %v2844
        %v2846 = vrot.slane %v2845, 2
        %v2847 = vmax.f32 %v2845, %v2846
        %v2848 = vrot.slane %v2847, 1
        %v2849 = vmax.f32 %v2847, %v2848
        %v2850 = vsel %vm2681, %v2118, -inf
        %v2851 = vrot.slane %v2850, 4
        %v2852 = vmax.f32 %v2850, %v2851
        %v2853 = vrot.slane %v2852, 2
        %v2854 = vmax.f32 %v2852, %v2853
        %v2855 = vrot.slane %v2854, 1
        %v2856 = vmax.f32 %v2854, %v2855
        %v2857 = vsel %vm2681, %v2126, -inf
        %v2858 = vrot.slane %v2857, 4
        %v2859 = vmax.f32 %v2857, %v2858
        %v2860 = vrot.slane %v2859, 2
        %v2861 = vmax.f32 %v2859, %v2860
        %v2862 = vrot.slane %v2861, 1
        %v2863 = vmax.f32 %v2861, %v2862
        %v2864 = vsel %vm2681, %v2125, -inf
        %v2865 = vrot.slane %v2864, 4
        %v2866 = vmax.f32 %v2864, %v2865
        %v2867 = vrot.slane %v2866, 2
        %v2868 = vmax.f32 %v2866, %v2867
        %v2869 = vrot.slane %v2868, 1
        %v2870 = vmax.f32 %v2868, %v2869
        %v2871 = vsel %vm2681, %v2127, -inf
        %v2872 = vrot.slane %v2871, 4
        %v2873 = vmax.f32 %v2871, %v2872
        %v2874 = vrot.slane %v2873, 2
        %v2875 = vmax.f32 %v2873, %v2874
        %v2876 = vrot.slane %v2875, 1
        %v2877 = vmax.f32 %v2875, %v2876
        %v2878 = vsel %vm2681, %v2135, -inf
        %v2879 = vrot.slane %v2878, 4
        %v2880 = vmax.f32 %v2878, %v2879
        %v2881 = vrot.slane %v2880, 2
        %v2882 = vmax.f32 %v2880, %v2881
        %v2883 = vrot.slane %v2882, 1
        %v2884 = vmax.f32 %v2882, %v2883
        %v2885 = vsel %vm2681, %v2143, -inf
        %v2886 = vrot.slane %v2885, 4
        %v2887 = vmax.f32 %v2885, %v2886
        %v2888 = vrot.slane %v2887, 2
        %v2889 = vmax.f32 %v2887, %v2888
        %v2890 = vrot.slane %v2889, 1
        %v2891 = vmax.f32 %v2889, %v2890
        %v2892 = vsel %vm2681, %v2142, -inf
        %v2893 = vrot.slane %v2892, 4
        %v2894 = vmax.f32 %v2892, %v2893
        %v2895 = vrot.slane %v2894, 2
        %v2896 = vmax.f32 %v2894, %v2895
        %v2897 = vrot.slane %v2896, 1
        %v2898 = vmax.f32 %v2896, %v2897
        %v2899 = vsel %vm2681, %v2144, -inf
        %v2900 = vrot.slane %v2899, 4
        %v2901 = vmax.f32 %v2899, %v2900
        %v2902 = vrot.slane %v2901, 2
        %v2903 = vmax.f32 %v2901, %v2902
        %v2904 = vrot.slane %v2903, 1
        %v2905 = vmax.f32 %v2903, %v2904
        %v2906 = vsel %vm2681, %v2152, -inf
        %v2907 = vrot.slane %v2906, 4
        %v2908 = vmax.f32 %v2906, %v2907
        %v2909 = vrot.slane %v2908, 2
        %v2910 = vmax.f32 %v2908, %v2909
        %v2911 = vrot.slane %v2910, 1
        %v2912 = vmax.f32 %v2910, %v2911
        %v2913 = vsel %vm2681, %v2160, -inf
        %v2914 = vrot.slane %v2913, 4
        %v2915 = vmax.f32 %v2913, %v2914
        %v2916 = vrot.slane %v2915, 2
        %v2917 = vmax.f32 %v2915, %v2916
        %v2918 = vrot.slane %v2917, 1
        %v2919 = vmax.f32 %v2917, %v2918
        %v2920 = vsel %vm2681, %v2159, -inf
        %v2921 = vrot.slane %v2920, 4
        %v2922 = vmax.f32 %v2920, %v2921
        %v2923 = vrot.slane %v2922, 2
        %v2924 = vmax.f32 %v2922, %v2923
        %v2925 = vrot.slane %v2924, 1
        %v2926 = vmax.f32 %v2924, %v2925
        %v2927 = vsel %vm2681, %v2161, -inf
        %v2928 = vrot.slane %v2927, 4
        %v2929 = vmax.f32 %v2927, %v2928
        %v2930 = vrot.slane %v2929, 2
        %v2931 = vmax.f32 %v2929, %v2930
        %v2932 = vrot.slane %v2931, 1
        %v2933 = vmax.f32 %v2931, %v2932
        %v2934 = vsel %vm2681, %v2169, -inf
        %v2935 = vrot.slane %v2934, 4
        %v2936 = vmax.f32 %v2934, %v2935
        %v2937 = vrot.slane %v2936, 2
        %v2938 = vmax.f32 %v2936, %v2937
        %v2939 = vrot.slane %v2938, 1
        %v2940 = vmax.f32 %v2938, %v2939
        %v2941 = vsel %vm2681, %v2177, -inf
        %v2942 = vrot.slane %v2941, 4
        %v2943 = vmax.f32 %v2941, %v2942
        %v2944 = vrot.slane %v2943, 2
        %v2945 = vmax.f32 %v2943, %v2944
        %v2946 = vrot.slane %v2945, 1
        %v2947 = vmax.f32 %v2945, %v2946
        %v2948 = vsel %vm2681, %v2176, -inf
        %v2949 = vrot.slane %v2948, 4
        %v2950 = vmax.f32 %v2948, %v2949
        %v2951 = vrot.slane %v2950, 2
        %v2952 = vmax.f32 %v2950, %v2951
        %v2953 = vrot.slane %v2952, 1
        %v2954 = vmax.f32 %v2952, %v2953
        %v2955 = vsel %vm2681, %v2178, -inf
        %v2956 = vrot.slane %v2955, 4
        %v2957 = vmax.f32 %v2955, %v2956
        %v2958 = vrot.slane %v2957, 2
        %v2959 = vmax.f32 %v2957, %v2958
        %v2960 = vrot.slane %v2959, 1
        %v2961 = vmax.f32 %v2959, %v2960
        %v2962 = vsel %vm2681, %v2186, -inf
        %v2963 = vrot.slane %v2962, 4
        %v2964 = vmax.f32 %v2962, %v2963
        %v2965 = vrot.slane %v2964, 2
        %v2966 = vmax.f32 %v2964, %v2965
        %v2967 = vrot.slane %v2966, 1
        %v2968 = vmax.f32 %v2966, %v2967
        %v2969 = vsel %vm2681, %v2194, -inf
        %v2970 = vrot.slane %v2969, 4
        %v2971 = vmax.f32 %v2969, %v2970
        %v2972 = vrot.slane %v2971, 2
        %v2973 = vmax.f32 %v2971, %v2972
        %v2974 = vrot.slane %v2973, 1
        %v2975 = vmax.f32 %v2973, %v2974
        %v2976 = vsel %vm2681, %v2193, -inf
        %v2977 = vrot.slane %v2976, 4
        %v2978 = vmax.f32 %v2976, %v2977
        %v2979 = vrot.slane %v2978, 2
        %v2980 = vmax.f32 %v2978, %v2979
        %v2981 = vrot.slane %v2980, 1
        %v2982 = vmax.f32 %v2980, %v2981
        %v2983 = vsel %vm2681, %v2195, -inf
        %v2984 = vrot.slane %v2983, 4
        %v2985 = vmax.f32 %v2983, %v2984
        %v2986 = vrot.slane %v2985, 2
        %v2987 = vmax.f32 %v2985, %v2986
        %v2988 = vrot.slane %v2987, 1
        %v2989 = vmax.f32 %v2987, %v2988
        %v2990 = vsel %vm2681, %v2203, -inf
        %v2991 = vrot.slane %v2990, 4
        %v2992 = vmax.f32 %v2990, %v2991
        %v2993 = vrot.slane %v2992, 2
        %v2994 = vmax.f32 %v2992, %v2993
        %v2995 = vrot.slane %v2994, 1
        %v2996 = vmax.f32 %v2994, %v2995
        %v2997 = vsel %vm2681, %v2211, -inf
        %v2998 = vrot.slane %v2997, 4
        %v2999 = vmax.f32 %v2997, %v2998
        %v3000 = vrot.slane %v2999, 2
        %v3001 = vmax.f32 %v2999, %v3000
        %v3002 = vrot.slane %v3001, 1
        %v3003 = vmax.f32 %v3001, %v3002
        %v3004 = vsel %vm2681, %v2210, -inf
        %v3005 = vrot.slane %v3004, 4
        %v3006 = vmax.f32 %v3004, %v3005
        %v3007 = vrot.slane %v3006, 2
        %v3008 = vmax.f32 %v3006, %v3007
        %v3009 = vrot.slane %v3008, 1
        %v3010 = vmax.f32 %v3008, %v3009
        %v3011 = vsel %vm2681, %v2212, -inf
        %v3012 = vrot.slane %v3011, 4
        %v3013 = vmax.f32 %v3011, %v3012
        %v3014 = vrot.slane %v3013, 2
        %v3015 = vmax.f32 %v3013, %v3014
        %v3016 = vrot.slane %v3015, 1
        %v3017 = vmax.f32 %v3015, %v3016
        %v3018 = vsel %vm2681, %v2220, -inf
        %v3019 = vrot.slane %v3018, 4
        %v3020 = vmax.f32 %v3018, %v3019
        %v3021 = vrot.slane %v3020, 2
        %v3022 = vmax.f32 %v3020, %v3021
        %v3023 = vrot.slane %v3022, 1
        %v3024 = vmax.f32 %v3022, %v3023
        %v3025 = vsel %vm2681, %v2228, -inf
        %v3026 = vrot.slane %v3025, 4
        %v3027 = vmax.f32 %v3025, %v3026
        %v3028 = vrot.slane %v3027, 2
        %v3029 = vmax.f32 %v3027, %v3028
        %v3030 = vrot.slane %v3029, 1
        %v3031 = vmax.f32 %v3029, %v3030
        %v3032 = vsel %vm2681, %v2227, -inf
        %v3033 = vrot.slane %v3032, 4
        %v3034 = vmax.f32 %v3032, %v3033
        %v3035 = vrot.slane %v3034, 2
        %v3036 = vmax.f32 %v3034, %v3035
        %v3037 = vrot.slane %v3036, 1
        %v3038 = vmax.f32 %v3036, %v3037
        %v3039 = vsel %vm2681, %v2229, -inf
        %v3040 = vrot.slane %v3039, 4
        %v3041 = vmax.f32 %v3039, %v3040
        %v3042 = vrot.slane %v3041, 2
        %v3043 = vmax.f32 %v3041, %v3042
        %v3044 = vrot.slane %v3043, 1
        %v3045 = vmax.f32 %v3043, %v3044
        %v3046 = vsel %vm2681, %v2237, -inf
        %v3047 = vrot.slane %v3046, 4
        %v3048 = vmax.f32 %v3046, %v3047
        %v3049 = vrot.slane %v3048, 2
        %v3050 = vmax.f32 %v3048, %v3049
        %v3051 = vrot.slane %v3050, 1
        %v3052 = vmax.f32 %v3050, %v3051
        %v3053 = vsel %vm2681, %v2245, -inf
        %v3054 = vrot.slane %v3053, 4
        %v3055 = vmax.f32 %v3053, %v3054
        %v3056 = vrot.slane %v3055, 2
        %v3057 = vmax.f32 %v3055, %v3056
        %v3058 = vrot.slane %v3057, 1
        %v3059 = vmax.f32 %v3057, %v3058
        %v3060 = vsel %vm2681, %v2244, -inf
        %v3061 = vrot.slane %v3060, 4
        %v3062 = vmax.f32 %v3060, %v3061
        %v3063 = vrot.slane %v3062, 2
        %v3064 = vmax.f32 %v3062, %v3063
        %v3065 = vrot.slane %v3064, 1
        %v3066 = vmax.f32 %v3064, %v3065
        %v3067 = vsel %vm2681, %v2246, -inf
        %v3068 = vrot.slane %v3067, 4
        %v3069 = vmax.f32 %v3067, %v3068
        %v3070 = vrot.slane %v3069, 2
        %v3071 = vmax.f32 %v3069, %v3070
        %v3072 = vrot.slane %v3071, 1
        %v3073 = vmax.f32 %v3071, %v3072
        %v3074 = vsel %vm2681, %v2254, -inf
        %v3075 = vrot.slane %v3074, 4
        %v3076 = vmax.f32 %v3074, %v3075
        %v3077 = vrot.slane %v3076, 2
        %v3078 = vmax.f32 %v3076, %v3077
        %v3079 = vrot.slane %v3078, 1
        %v3080 = vmax.f32 %v3078, %v3079
        %v3081 = vsel %vm2681, %v2262, -inf
        %v3082 = vrot.slane %v3081, 4
        %v3083 = vmax.f32 %v3081, %v3082
        %v3084 = vrot.slane %v3083, 2
        %v3085 = vmax.f32 %v3083, %v3084
        %v3086 = vrot.slane %v3085, 1
        %v3087 = vmax.f32 %v3085, %v3086
        %v3088 = vsel %vm2681, %v2261, -inf
        %v3089 = vrot.slane %v3088, 4
        %v3090 = vmax.f32 %v3088, %v3089
        %v3091 = vrot.slane %v3090, 2
        %v3092 = vmax.f32 %v3090, %v3091
        %v3093 = vrot.slane %v3092, 1
        %v3094 = vmax.f32 %v3092, %v3093
        %v3095 = vsel %vm2681, %v2263, -inf
        %v3096 = vrot.slane %v3095, 4
        %v3097 = vmax.f32 %v3095, %v3096
        %v3098 = vrot.slane %v3097, 2
        %v3099 = vmax.f32 %v3097, %v3098
        %v3100 = vrot.slane %v3099, 1
        %v3101 = vmax.f32 %v3099, %v3100
        %v3102 = vsel %vm2681, %v2271, -inf
        %v3103 = vrot.slane %v3102, 4
        %v3104 = vmax.f32 %v3102, %v3103
        %v3105 = vrot.slane %v3104, 2
        %v3106 = vmax.f32 %v3104, %v3105
        %v3107 = vrot.slane %v3106, 1
        %v3108 = vmax.f32 %v3106, %v3107
        %v3109 = vsel %vm2681, %v2279, -inf
        %v3110 = vrot.slane %v3109, 4
        %v3111 = vmax.f32 %v3109, %v3110
        %v3112 = vrot.slane %v3111, 2
        %v3113 = vmax.f32 %v3111, %v3112
        %v3114 = vrot.slane %v3113, 1
        %v3115 = vmax.f32 %v3113, %v3114
        %v3116 = vsel %vm2681, %v2278, -inf
        %v3117 = vrot.slane %v3116, 4
        %v3118 = vmax.f32 %v3116, %v3117
        %v3119 = vrot.slane %v3118, 2
        %v3120 = vmax.f32 %v3118, %v3119
        %v3121 = vrot.slane %v3120, 1
        %v3122 = vmax.f32 %v3120, %v3121
        %v3123 = vsel %vm2681, %v2280, -inf
        %v3124 = vrot.slane %v3123, 4
        %v3125 = vmax.f32 %v3123, %v3124
        %v3126 = vrot.slane %v3125, 2
        %v3127 = vmax.f32 %v3125, %v3126
        %v3128 = vrot.slane %v3127, 1
        %v3129 = vmax.f32 %v3127, %v3128
        %v3130 = vsel %vm2681, %v2288, -inf
        %v3131 = vrot.slane %v3130, 4
        %v3132 = vmax.f32 %v3130, %v3131
        %v3133 = vrot.slane %v3132, 2
        %v3134 = vmax.f32 %v3132, %v3133
        %v3135 = vrot.slane %v3134, 1
        %v3136 = vmax.f32 %v3134, %v3135
        %v3137 = vsel %vm2681, %v2296, -inf
        %v3138 = vrot.slane %v3137, 4
        %v3139 = vmax.f32 %v3137, %v3138
        %v3140 = vrot.slane %v3139, 2
        %v3141 = vmax.f32 %v3139, %v3140
        %v3142 = vrot.slane %v3141, 1
        %v3143 = vmax.f32 %v3141, %v3142
        %v3144 = vsel %vm2681, %v2295, -inf
        %v3145 = vrot.slane %v3144, 4
        %v3146 = vmax.f32 %v3144, %v3145
        %v3147 = vrot.slane %v3146, 2
        %v3148 = vmax.f32 %v3146, %v3147
        %v3149 = vrot.slane %v3148, 1
        %v3150 = vmax.f32 %v3148, %v3149
        %v3151 = vsel %vm2681, %v2297, -inf
        %v3152 = vrot.slane %v3151, 4
        %v3153 = vmax.f32 %v3151, %v3152
        %v3154 = vrot.slane %v3153, 2
        %v3155 = vmax.f32 %v3153, %v3154
        %v3156 = vrot.slane %v3155, 1
        %v3157 = vmax.f32 %v3155, %v3156
        %v3158 = vsel %vm2681, %v2305, -inf
        %v3159 = vrot.slane %v3158, 4
        %v3160 = vmax.f32 %v3158, %v3159
        %v3161 = vrot.slane %v3160, 2
        %v3162 = vmax.f32 %v3160, %v3161
        %v3163 = vrot.slane %v3162, 1
        %v3164 = vmax.f32 %v3162, %v3163
        %v3165 = vsel %vm2681, %v2313, -inf
        %v3166 = vrot.slane %v3165, 4
        %v3167 = vmax.f32 %v3165, %v3166
        %v3168 = vrot.slane %v3167, 2
        %v3169 = vmax.f32 %v3167, %v3168
        %v3170 = vrot.slane %v3169, 1
        %v3171 = vmax.f32 %v3169, %v3170
        %v3172 = vsel %vm2681, %v2312, -inf
        %v3173 = vrot.slane %v3172, 4
        %v3174 = vmax.f32 %v3172, %v3173
        %v3175 = vrot.slane %v3174, 2
        %v3176 = vmax.f32 %v3174, %v3175
        %v3177 = vrot.slane %v3176, 1
        %v3178 = vmax.f32 %v3176, %v3177
        %v3179 = vsel %vm2681, %v2314, -inf
        %v3180 = vrot.slane %v3179, 4
        %v3181 = vmax.f32 %v3179, %v3180
        %v3182 = vrot.slane %v3181, 2
        %v3183 = vmax.f32 %v3181, %v3182
        %v3184 = vrot.slane %v3183, 1
        %v3185 = vmax.f32 %v3183, %v3184
        %v3186 = vsel %vm2681, %v2322, -inf
        %v3187 = vrot.slane %v3186, 4
        %v3188 = vmax.f32 %v3186, %v3187
        %v3189 = vrot.slane %v3188, 2
        %v3190 = vmax.f32 %v3188, %v3189
        %v3191 = vrot.slane %v3190, 1
        %v3192 = vmax.f32 %v3190, %v3191
        %v3193 = vsel %vm2681, %v2330, -inf
        %v3194 = vrot.slane %v3193, 4
        %v3195 = vmax.f32 %v3193, %v3194
        %v3196 = vrot.slane %v3195, 2
        %v3197 = vmax.f32 %v3195, %v3196
        %v3198 = vrot.slane %v3197, 1
        %v3199 = vmax.f32 %v3197, %v3198
        %v3200 = vsel %vm2681, %v2329, -inf
        %v3201 = vrot.slane %v3200, 4
        %v3202 = vmax.f32 %v3200, %v3201
        %v3203 = vrot.slane %v3202, 2
        %v3204 = vmax.f32 %v3202, %v3203
        %v3205 = vrot.slane %v3204, 1
        %v3206 = vmax.f32 %v3204, %v3205
        %v3207 = vsel %vm2681, %v2331, -inf
        %v3208 = vrot.slane %v3207, 4
        %v3209 = vmax.f32 %v3207, %v3208
        %v3210 = vrot.slane %v3209, 2
        %v3211 = vmax.f32 %v3209, %v3210
        %v3212 = vrot.slane %v3211, 1
        %v3213 = vmax.f32 %v3211, %v3212
        %v3214 = vsel %vm2681, %v2339, -inf
        %v3215 = vrot.slane %v3214, 4
        %v3216 = vmax.f32 %v3214, %v3215
        %v3217 = vrot.slane %v3216, 2
        %v3218 = vmax.f32 %v3216, %v3217
        %v3219 = vrot.slane %v3218, 1
        %v3220 = vmax.f32 %v3218, %v3219
        %v3221 = vsel %vm2681, %v2347, -inf
        %v3222 = vrot.slane %v3221, 4
        %v3223 = vmax.f32 %v3221, %v3222
        %v3224 = vrot.slane %v3223, 2
        %v3225 = vmax.f32 %v3223, %v3224
        %v3226 = vrot.slane %v3225, 1
        %v3227 = vmax.f32 %v3225, %v3226
        %v3228 = vsel %vm2681, %v2346, -inf
        %v3229 = vrot.slane %v3228, 4
        %v3230 = vmax.f32 %v3228, %v3229
        %v3231 = vrot.slane %v3230, 2
        %v3232 = vmax.f32 %v3230, %v3231
        %v3233 = vrot.slane %v3232, 1
        %v3234 = vmax.f32 %v3232, %v3233
        %v3235 = vsel %vm2681, %v2348, -inf
        %v3236 = vrot.slane %v3235, 4
        %v3237 = vmax.f32 %v3235, %v3236
        %v3238 = vrot.slane %v3237, 2
        %v3239 = vmax.f32 %v3237, %v3238
        %v3240 = vrot.slane %v3239, 1
        %v3241 = vmax.f32 %v3239, %v3240
        %v3242 = vsel %vm2681, %v2356, -inf
        %v3243 = vrot.slane %v3242, 4
        %v3244 = vmax.f32 %v3242, %v3243
        %v3245 = vrot.slane %v3244, 2
        %v3246 = vmax.f32 %v3244, %v3245
        %v3247 = vrot.slane %v3246, 1
        %v3248 = vmax.f32 %v3246, %v3247
        %v3249 = vsel %vm2681, %v2364, -inf
        %v3250 = vrot.slane %v3249, 4
        %v3251 = vmax.f32 %v3249, %v3250
        %v3252 = vrot.slane %v3251, 2
        %v3253 = vmax.f32 %v3251, %v3252
        %v3254 = vrot.slane %v3253, 1
        %v3255 = vmax.f32 %v3253, %v3254
        %v3256 = vsel %vm2681, %v2363, -inf
        %v3257 = vrot.slane %v3256, 4
        %v3258 = vmax.f32 %v3256, %v3257
        %v3259 = vrot.slane %v3258, 2
        %v3260 = vmax.f32 %v3258, %v3259
        %v3261 = vrot.slane %v3260, 1
        %v3262 = vmax.f32 %v3260, %v3261
        %v3263 = vsel %vm2681, %v2365, -inf
        %v3264 = vrot.slane %v3263, 4
        %v3265 = vmax.f32 %v3263, %v3264
        %v3266 = vrot.slane %v3265, 2
        %v3267 = vmax.f32 %v3265, %v3266
        %v3268 = vrot.slane %v3267, 1
        %v3269 = vmax.f32 %v3267, %v3268
        %v3270 = vsel %vm2681, %v2373, -inf
        %v3271 = vrot.slane %v3270, 4
        %v3272 = vmax.f32 %v3270, %v3271
        %v3273 = vrot.slane %v3272, 2
        %v3274 = vmax.f32 %v3272, %v3273
        %v3275 = vrot.slane %v3274, 1
        %v3276 = vmax.f32 %v3274, %v3275
        %v3277 = vsel %vm2681, %v2381, -inf
        %v3278 = vrot.slane %v3277, 4
        %v3279 = vmax.f32 %v3277, %v3278
        %v3280 = vrot.slane %v3279, 2
        %v3281 = vmax.f32 %v3279, %v3280
        %v3282 = vrot.slane %v3281, 1
        %v3283 = vmax.f32 %v3281, %v3282
        %v3284 = vsel %vm2681, %v2380, -inf
        %v3285 = vrot.slane %v3284, 4
        %v3286 = vmax.f32 %v3284, %v3285
        %v3287 = vrot.slane %v3286, 2
        %v3288 = vmax.f32 %v3286, %v3287
        %v3289 = vrot.slane %v3288, 1
        %v3290 = vmax.f32 %v3288, %v3289
        %v3291 = vsel %vm2681, %v2382, -inf
        %v3292 = vrot.slane %v3291, 4
        %v3293 = vmax.f32 %v3291, %v3292
        %v3294 = vrot.slane %v3293, 2
        %v3295 = vmax.f32 %v3293, %v3294
        %v3296 = vrot.slane %v3295, 1
        %v3297 = vmax.f32 %v3295, %v3296
        %v3298 = vsel %vm2681, %v2390, -inf
        %v3299 = vrot.slane %v3298, 4
        %v3300 = vmax.f32 %v3298, %v3299
        %v3301 = vrot.slane %v3300, 2
        %v3302 = vmax.f32 %v3300, %v3301
        %v3303 = vrot.slane %v3302, 1
        %v3304 = vmax.f32 %v3302, %v3303
        %v3305 = vsel %vm2681, %v2398, -inf
        %v3306 = vrot.slane %v3305, 4
        %v3307 = vmax.f32 %v3305, %v3306
        %v3308 = vrot.slane %v3307, 2
        %v3309 = vmax.f32 %v3307, %v3308
        %v3310 = vrot.slane %v3309, 1
        %v3311 = vmax.f32 %v3309, %v3310
        %v3312 = vsel %vm2681, %v2397, -inf
        %v3313 = vrot.slane %v3312, 4
        %v3314 = vmax.f32 %v3312, %v3313
        %v3315 = vrot.slane %v3314, 2
        %v3316 = vmax.f32 %v3314, %v3315
        %v3317 = vrot.slane %v3316, 1
        %v3318 = vmax.f32 %v3316, %v3317
        %v3319 = vsel %vm2681, %v2399, -inf
        %v3320 = vrot.slane %v3319, 4
        %v3321 = vmax.f32 %v3319, %v3320
        %v3322 = vrot.slane %v3321, 2
        %v3323 = vmax.f32 %v3321, %v3322
        %v3324 = vrot.slane %v3323, 1
        %v3325 = vmax.f32 %v3323, %v3324
        %v3326 = vsel %vm2681, %v2407, -inf
        %v3327 = vrot.slane %v3326, 4
        %v3328 = vmax.f32 %v3326, %v3327
        %v3329 = vrot.slane %v3328, 2
        %v3330 = vmax.f32 %v3328, %v3329
        %v3331 = vrot.slane %v3330, 1
        %v3332 = vmax.f32 %v3330, %v3331
        %v3333 = vsel %vm2681, %v2415, -inf
        %v3334 = vrot.slane %v3333, 4
        %v3335 = vmax.f32 %v3333, %v3334
        %v3336 = vrot.slane %v3335, 2
        %v3337 = vmax.f32 %v3335, %v3336
        %v3338 = vrot.slane %v3337, 1
        %v3339 = vmax.f32 %v3337, %v3338
        %v3340 = vsel %vm2681, %v2414, -inf
        %v3341 = vrot.slane %v3340, 4
        %v3342 = vmax.f32 %v3340, %v3341
        %v3343 = vrot.slane %v3342, 2
        %v3344 = vmax.f32 %v3342, %v3343
        %v3345 = vrot.slane %v3344, 1
        %v3346 = vmax.f32 %v3344, %v3345
        %v3347 = vsel %vm2681, %v2416, -inf
        %v3348 = vrot.slane %v3347, 4
        %v3349 = vmax.f32 %v3347, %v3348
        %v3350 = vrot.slane %v3349, 2
        %v3351 = vmax.f32 %v3349, %v3350
        %v3352 = vrot.slane %v3351, 1
        %v3353 = vmax.f32 %v3351, %v3352
        %v3354 = vsel %vm2681, %v2424, -inf
        %v3355 = vrot.slane %v3354, 4
        %v3356 = vmax.f32 %v3354, %v3355
        %v3357 = vrot.slane %v3356, 2
        %v3358 = vmax.f32 %v3356, %v3357
        %v3359 = vrot.slane %v3358, 1
        %v3360 = vmax.f32 %v3358, %v3359
        %v3361 = vsel %vm2681, %v2432, -inf
        %v3362 = vrot.slane %v3361, 4
        %v3363 = vmax.f32 %v3361, %v3362
        %v3364 = vrot.slane %v3363, 2
        %v3365 = vmax.f32 %v3363, %v3364
        %v3366 = vrot.slane %v3365, 1
        %v3367 = vmax.f32 %v3365, %v3366
        %v3368 = vsel %vm2681, %v2431, -inf
        %v3369 = vrot.slane %v3368, 4
        %v3370 = vmax.f32 %v3368, %v3369
        %v3371 = vrot.slane %v3370, 2
        %v3372 = vmax.f32 %v3370, %v3371
        %v3373 = vrot.slane %v3372, 1
        %v3374 = vmax.f32 %v3372, %v3373
        %v3375 = vsel %vm2681, %v2433, -inf
        %v3376 = vrot.slane %v3375, 4
        %v3377 = vmax.f32 %v3375, %v3376
        %v3378 = vrot.slane %v3377, 2
        %v3379 = vmax.f32 %v3377, %v3378
        %v3380 = vrot.slane %v3379, 1
        %v3381 = vmax.f32 %v3379, %v3380
        %v3382 = vsel %vm2681, %v2441, -inf
        %v3383 = vrot.slane %v3382, 4
        %v3384 = vmax.f32 %v3382, %v3383
        %v3385 = vrot.slane %v3384, 2
        %v3386 = vmax.f32 %v3384, %v3385
        %v3387 = vrot.slane %v3386, 1
        %v3388 = vmax.f32 %v3386, %v3387
        %v3389 = vsel %vm2681, %v2449, -inf
        %v3390 = vrot.slane %v3389, 4
        %v3391 = vmax.f32 %v3389, %v3390
        %v3392 = vrot.slane %v3391, 2
        %v3393 = vmax.f32 %v3391, %v3392
        %v3394 = vrot.slane %v3393, 1
        %v3395 = vmax.f32 %v3393, %v3394
        %v3396 = vsel %vm2681, %v2448, -inf
        %v3397 = vrot.slane %v3396, 4
        %v3398 = vmax.f32 %v3396, %v3397
        %v3399 = vrot.slane %v3398, 2
        %v3400 = vmax.f32 %v3398, %v3399
        %v3401 = vrot.slane %v3400, 1
        %v3402 = vmax.f32 %v3400, %v3401
        %v3403 = vsel %vm2681, %v2450, -inf
        %v3404 = vrot.slane %v3403, 4
        %v3405 = vmax.f32 %v3403, %v3404
        %v3406 = vrot.slane %v3405, 2
        %v3407 = vmax.f32 %v3405, %v3406
        %v3408 = vrot.slane %v3407, 1
        %v3409 = vmax.f32 %v3407, %v3408
        %v3410 = vsel %vm2681, %v2458, -inf
        %v3411 = vrot.slane %v3410, 4
        %v3412 = vmax.f32 %v3410, %v3411
        %v3413 = vrot.slane %v3412, 2
        %v3414 = vmax.f32 %v3412, %v3413
        %v3415 = vrot.slane %v3414, 1
        %v3416 = vmax.f32 %v3414, %v3415
        %v3417 = vsel %vm2681, %v2466, -inf
        %v3418 = vrot.slane %v3417, 4
        %v3419 = vmax.f32 %v3417, %v3418
        %v3420 = vrot.slane %v3419, 2
        %v3421 = vmax.f32 %v3419, %v3420
        %v3422 = vrot.slane %v3421, 1
        %v3423 = vmax.f32 %v3421, %v3422
        %v3424 = vsel %vm2681, %v2465, -inf
        %v3425 = vrot.slane %v3424, 4
        %v3426 = vmax.f32 %v3424, %v3425
        %v3427 = vrot.slane %v3426, 2
        %v3428 = vmax.f32 %v3426, %v3427
        %v3429 = vrot.slane %v3428, 1
        %v3430 = vmax.f32 %v3428, %v3429
        %v3431 = vsel %vm2681, %v2467, -inf
        %v3432 = vrot.slane %v3431, 4
        %v3433 = vmax.f32 %v3431, %v3432
        %v3434 = vrot.slane %v3433, 2
        %v3435 = vmax.f32 %v3433, %v3434
        %v3436 = vrot.slane %v3435, 1
        %v3437 = vmax.f32 %v3435, %v3436
        %v3438 = vsel %vm2681, %v2475, -inf
        %v3439 = vrot.slane %v3438, 4
        %v3440 = vmax.f32 %v3438, %v3439
        %v3441 = vrot.slane %v3440, 2
        %v3442 = vmax.f32 %v3440, %v3441
        %v3443 = vrot.slane %v3442, 1
        %v3444 = vmax.f32 %v3442, %v3443
        %v3445 = vsel %vm2681, %v2483, -inf
        %v3446 = vrot.slane %v3445, 4
        %v3447 = vmax.f32 %v3445, %v3446
        %v3448 = vrot.slane %v3447, 2
        %v3449 = vmax.f32 %v3447, %v3448
        %v3450 = vrot.slane %v3449, 1
        %v3451 = vmax.f32 %v3449, %v3450
        %v3452 = vsel %vm2681, %v2482, -inf
        %v3453 = vrot.slane %v3452, 4
        %v3454 = vmax.f32 %v3452, %v3453
        %v3455 = vrot.slane %v3454, 2
        %v3456 = vmax.f32 %v3454, %v3455
        %v3457 = vrot.slane %v3456, 1
        %v3458 = vmax.f32 %v3456, %v3457
        %v3459 = vsel %vm2681, %v2484, -inf
        %v3460 = vrot.slane %v3459, 4
        %v3461 = vmax.f32 %v3459, %v3460
        %v3462 = vrot.slane %v3461, 2
        %v3463 = vmax.f32 %v3461, %v3462
        %v3464 = vrot.slane %v3463, 1
        %v3465 = vmax.f32 %v3463, %v3464
        %v3466 = vsel %vm2681, %v2492, -inf
        %v3467 = vrot.slane %v3466, 4
        %v3468 = vmax.f32 %v3466, %v3467
        %v3469 = vrot.slane %v3468, 2
        %v3470 = vmax.f32 %v3468, %v3469
        %v3471 = vrot.slane %v3470, 1
        %v3472 = vmax.f32 %v3470, %v3471
        %v3473 = vsel %vm2681, %v2500, -inf
        %v3474 = vrot.slane %v3473, 4
        %v3475 = vmax.f32 %v3473, %v3474
        %v3476 = vrot.slane %v3475, 2
        %v3477 = vmax.f32 %v3475, %v3476
        %v3478 = vrot.slane %v3477, 1
        %v3479 = vmax.f32 %v3477, %v3478
        %v3480 = vsel %vm2681, %v2499, -inf
        %v3481 = vrot.slane %v3480, 4
        %v3482 = vmax.f32 %v3480, %v3481
        %v3483 = vrot.slane %v3482, 2
        %v3484 = vmax.f32 %v3482, %v3483
        %v3485 = vrot.slane %v3484, 1
        %v3486 = vmax.f32 %v3484, %v3485
        %v3487 = vsel %vm2681, %v2501, -inf
        %v3488 = vrot.slane %v3487, 4
        %v3489 = vmax.f32 %v3487, %v3488
        %v3490 = vrot.slane %v3489, 2
        %v3491 = vmax.f32 %v3489, %v3490
        %v3492 = vrot.slane %v3491, 1
        %v3493 = vmax.f32 %v3491, %v3492
        %v3494 = vsel %vm2681, %v2509, -inf
        %v3495 = vrot.slane %v3494, 4
        %v3496 = vmax.f32 %v3494, %v3495
        %v3497 = vrot.slane %v3496, 2
        %v3498 = vmax.f32 %v3496, %v3497
        %v3499 = vrot.slane %v3498, 1
        %v3500 = vmax.f32 %v3498, %v3499
        %v3501 = vsel %vm2681, %v2517, -inf
        %v3502 = vrot.slane %v3501, 4
        %v3503 = vmax.f32 %v3501, %v3502
        %v3504 = vrot.slane %v3503, 2
        %v3505 = vmax.f32 %v3503, %v3504
        %v3506 = vrot.slane %v3505, 1
        %v3507 = vmax.f32 %v3505, %v3506
        %v3508 = vsel %vm2681, %v2516, -inf
        %v3509 = vrot.slane %v3508, 4
        %v3510 = vmax.f32 %v3508, %v3509
        %v3511 = vrot.slane %v3510, 2
        %v3512 = vmax.f32 %v3510, %v3511
        %v3513 = vrot.slane %v3512, 1
        %v3514 = vmax.f32 %v3512, %v3513
        %v3515 = vsel %vm2681, %v2518, -inf
        %v3516 = vrot.slane %v3515, 4
        %v3517 = vmax.f32 %v3515, %v3516
        %v3518 = vrot.slane %v3517, 2
        %v3519 = vmax.f32 %v3517, %v3518
        %v3520 = vrot.slane %v3519, 1
        %v3521 = vmax.f32 %v3519, %v3520
        %v3522 = vsel %vm2681, %v2526, -inf
        %v3523 = vrot.slane %v3522, 4
        %v3524 = vmax.f32 %v3522, %v3523
        %v3525 = vrot.slane %v3524, 2
        %v3526 = vmax.f32 %v3524, %v3525
        %v3527 = vrot.slane %v3526, 1
        %v3528 = vmax.f32 %v3526, %v3527
        %v3529 = vsel %vm2681, %v2534, -inf
        %v3530 = vrot.slane %v3529, 4
        %v3531 = vmax.f32 %v3529, %v3530
        %v3532 = vrot.slane %v3531, 2
        %v3533 = vmax.f32 %v3531, %v3532
        %v3534 = vrot.slane %v3533, 1
        %v3535 = vmax.f32 %v3533, %v3534
        %v3536 = vsel %vm2681, %v2533, -inf
        %v3537 = vrot.slane %v3536, 4
        %v3538 = vmax.f32 %v3536, %v3537
        %v3539 = vrot.slane %v3538, 2
        %v3540 = vmax.f32 %v3538, %v3539
        %v3541 = vrot.slane %v3540, 1
        %v3542 = vmax.f32 %v3540, %v3541
        %v3543 = vsel %vm2681, %v2535, -inf
        %v3544 = vrot.slane %v3543, 4
        %v3545 = vmax.f32 %v3543, %v3544
        %v3546 = vrot.slane %v3545, 2
        %v3547 = vmax.f32 %v3545, %v3546
        %v3548 = vrot.slane %v3547, 1
        %v3549 = vmax.f32 %v3547, %v3548
        %v3550 = vsel %vm2681, %v2543, -inf
        %v3551 = vrot.slane %v3550, 4
        %v3552 = vmax.f32 %v3550, %v3551
        %v3553 = vrot.slane %v3552, 2
        %v3554 = vmax.f32 %v3552, %v3553
        %v3555 = vrot.slane %v3554, 1
        %v3556 = vmax.f32 %v3554, %v3555
        %v3557 = vsel %vm2681, %v2551, -inf
        %v3558 = vrot.slane %v3557, 4
        %v3559 = vmax.f32 %v3557, %v3558
        %v3560 = vrot.slane %v3559, 2
        %v3561 = vmax.f32 %v3559, %v3560
        %v3562 = vrot.slane %v3561, 1
        %v3563 = vmax.f32 %v3561, %v3562
        %v3564 = vsel %vm2681, %v2550, -inf
        %v3565 = vrot.slane %v3564, 4
        %v3566 = vmax.f32 %v3564, %v3565
        %v3567 = vrot.slane %v3566, 2
        %v3568 = vmax.f32 %v3566, %v3567
        %v3569 = vrot.slane %v3568, 1
        %v3570 = vmax.f32 %v3568, %v3569
        %v3571 = vsel %vm2681, %v2552, -inf
        %v3572 = vrot.slane %v3571, 4
        %v3573 = vmax.f32 %v3571, %v3572
        %v3574 = vrot.slane %v3573, 2
        %v3575 = vmax.f32 %v3573, %v3574
        %v3576 = vrot.slane %v3575, 1
        %v3577 = vmax.f32 %v3575, %v3576
        %vm3578 = vcmask 1048064
        %v3579 = vsel %vm3578, %v2688, -inf
        %v3580 = vsel %vm3578, %v2744, -inf
        %v3581 = vmax.f32 %v3579, %v3580
        %v3582 = vsel %vm3578, %v2695, -inf
        %v3583 = vsel %vm3578, %v2751, -inf
        %v3584 = vmax.f32 %v3582, %v3583
        %v3585 = vsel %vm3578, %v2702, -inf
        %v3586 = vsel %vm3578, %v2758, -inf
        %v3587 = vmax.f32 %v3585, %v3586
        %v3588 = vsel %vm3578, %v2709, -inf
        %v3589 = vsel %vm3578, %v2765, -inf
        %v3590 = vmax.f32 %v3588, %v3589
        %v3591 = vsel %vm3578, %v2716, -inf
        %v3592 = vsel %vm3578, %v2772, -inf
        %v3593 = vmax.f32 %v3591, %v3592
        %v3594 = vsel %vm3578, %v2723, -inf
        %v3595 = vsel %vm3578, %v2779, -inf
        %v3596 = vmax.f32 %v3594, %v3595
        %v3597 = vsel %vm3578, %v2730, -inf
        %v3598 = vsel %vm3578, %v2786, -inf
        %v3599 = vmax.f32 %v3597, %v3598
        %v3600 = vsel %vm3578, %v2737, -inf
        %v3601 = vsel %vm3578, %v2793, -inf
        %v3602 = vmax.f32 %v3600, %v3601
        %v3603 = vsel %vm3578, %v2800, -inf
        %v3604 = vsel %vm3578, %v2856, -inf
        %v3605 = vmax.f32 %v3603, %v3604
        %v3606 = vsel %vm3578, %v2807, -inf
        %v3607 = vsel %vm3578, %v2863, -inf
        %v3608 = vmax.f32 %v3606, %v3607
        %v3609 = vsel %vm3578, %v2814, -inf
        %v3610 = vsel %vm3578, %v2870, -inf
        %v3611 = vmax.f32 %v3609, %v3610
        %v3612 = vsel %vm3578, %v2821, -inf
        %v3613 = vsel %vm3578, %v2877, -inf
        %v3614 = vmax.f32 %v3612, %v3613
        %v3615 = vsel %vm3578, %v2828, -inf
        %v3616 = vsel %vm3578, %v2884, -inf
        %v3617 = vmax.f32 %v3615, %v3616
        %v3618 = vsel %vm3578, %v2835, -inf
        %v3619 = vsel %vm3578, %v2891, -inf
        %v3620 = vmax.f32 %v3618, %v3619
        %v3621 = vsel %vm3578, %v2842, -inf
        %v3622 = vsel %vm3578, %v2898, -inf
        %v3623 = vmax.f32 %v3621, %v3622
        %v3624 = vsel %vm3578, %v2849, -inf
        %v3625 = vsel %vm3578, %v2905, -inf
        %v3626 = vmax.f32 %v3624, %v3625
        %v3627 = vsel %vm3578, %v2912, -inf
        %v3628 = vsel %vm3578, %v2968, -inf
        %v3629 = vmax.f32 %v3627, %v3628
        %v3630 = vsel %vm3578, %v2919, -inf
        %v3631 = vsel %vm3578, %v2975, -inf
        %v3632 = vmax.f32 %v3630, %v3631
        %v3633 = vsel %vm3578, %v2926, -inf
        %v3634 = vsel %vm3578, %v2982, -inf
        %v3635 = vmax.f32 %v3633, %v3634
        %v3636 = vsel %vm3578, %v2933, -inf
        %v3637 = vsel %vm3578, %v2989, -inf
        %v3638 = vmax.f32 %v3636, %v3637
        %v3639 = vsel %vm3578, %v2940, -inf
        %v3640 = vsel %vm3578, %v2996, -inf
        %v3641 = vmax.f32 %v3639, %v3640
        %v3642 = vsel %vm3578, %v2947, -inf
        %v3643 = vsel %vm3578, %v3003, -inf
        %v3644 = vmax.f32 %v3642, %v3643
        %v3645 = vsel %vm3578, %v2954, -inf
        %v3646 = vsel %vm3578, %v3010, -inf
        %v3647 = vmax.f32 %v3645, %v3646
        %v3648 = vsel %vm3578, %v2961, -inf
        %v3649 = vsel %vm3578, %v3017, -inf
        %v3650 = vmax.f32 %v3648, %v3649
        %v3651 = vsel %vm3578, %v3024, -inf
        %v3652 = vsel %vm3578, %v3080, -inf
        %v3653 = vmax.f32 %v3651, %v3652
        %v3654 = vsel %vm3578, %v3031, -inf
        %v3655 = vsel %vm3578, %v3087, -inf
        %v3656 = vmax.f32 %v3654, %v3655
        %v3657 = vsel %vm3578, %v3038, -inf
        %v3658 = vsel %vm3578, %v3094, -inf
        %v3659 = vmax.f32 %v3657, %v3658
        %v3660 = vsel %vm3578, %v3045, -inf
        %v3661 = vsel %vm3578, %v3101, -inf
        %v3662 = vmax.f32 %v3660, %v3661
        %v3663 = vsel %vm3578, %v3052, -inf
        %v3664 = vsel %vm3578, %v3108, -inf
        %v3665 = vmax.f32 %v3663, %v3664
        %v3666 = vsel %vm3578, %v3059, -inf
        %v3667 = vsel %vm3578, %v3115, -inf
        %v3668 = vmax.f32 %v3666, %v3667
        %v3669 = vsel %vm3578, %v3066, -inf
        %v3670 = vsel %vm3578, %v3122, -inf
        %v3671 = vmax.f32 %v3669, %v3670
        %v3672 = vsel %vm3578, %v3073, -inf
        %v3673 = vsel %vm3578, %v3129, -inf
        %v3674 = vmax.f32 %v3672, %v3673
        %v3675 = vsel %vm3578, %v3136, -inf
        %v3676 = vsel %vm3578, %v3192, -inf
        %v3677 = vmax.f32 %v3675, %v3676
        %v3678 = vsel %vm3578, %v3143, -inf
        %v3679 = vsel %vm3578, %v3199, -inf
        %v3680 = vmax.f32 %v3678, %v3679
        %v3681 = vsel %vm3578, %v3150, -inf
        %v3682 = vsel %vm3578, %v3206, -inf
        %v3683 = vmax.f32 %v3681, %v3682
        %v3684 = vsel %vm3578, %v3157, -inf
        %v3685 = vsel %vm3578, %v3213, -inf
        %v3686 = vmax.f32 %v3684, %v3685
        %v3687 = vsel %vm3578, %v3164, -inf
        %v3688 = vsel %vm3578, %v3220, -inf
        %v3689 = vmax.f32 %v3687, %v3688
        %v3690 = vsel %vm3578, %v3171, -inf
        %v3691 = vsel %vm3578, %v3227, -inf
        %v3692 = vmax.f32 %v3690, %v3691
        %v3693 = vsel %vm3578, %v3178, -inf
        %v3694 = vsel %vm3578, %v3234, -inf
        %v3695 = vmax.f32 %v3693, %v3694
        %v3696 = vsel %vm3578, %v3185, -inf
        %v3697 = vsel %vm3578, %v3241, -inf
        %v3698 = vmax.f32 %v3696, %v3697
        %v3699 = vsel %vm3578, %v3248, -inf
        %v3700 = vsel %vm3578, %v3304, -inf
        %v3701 = vmax.f32 %v3699, %v3700
        %v3702 = vsel %vm3578, %v3255, -inf
        %v3703 = vsel %vm3578, %v3311, -inf
        %v3704 = vmax.f32 %v3702, %v3703
        %v3705 = vsel %vm3578, %v3262, -inf
        %v3706 = vsel %vm3578, %v3318, -inf
        %v3707 = vmax.f32 %v3705, %v3706
        %v3708 = vsel %vm3578, %v3269, -inf
        %v3709 = vsel %vm3578, %v3325, -inf
        %v3710 = vmax.f32 %v3708, %v3709
        %v3711 = vsel %vm3578, %v3276, -inf
        %v3712 = vsel %vm3578, %v3332, -inf
        %v3713 = vmax.f32 %v3711, %v3712
        %v3714 = vsel %vm3578, %v3283, -inf
        %v3715 = vsel %vm3578, %v3339, -inf
        %v3716 = vmax.f32 %v3714, %v3715
        %v3717 = vsel %vm3578, %v3290, -inf
        %v3718 = vsel %vm3578, %v3346, -inf
        %v3719 = vmax.f32 %v3717, %v3718
        %v3720 = vsel %vm3578, %v3297, -inf
        %v3721 = vsel %vm3578, %v3353, -inf
        %v3722 = vmax.f32 %v3720, %v3721
        %v3723 = vsel %vm3578, %v3360, -inf
        %v3724 = vsel %vm3578, %v3416, -inf
        %v3725 = vmax.f32 %v3723, %v3724
        %v3726 = vsel %vm3578, %v3367, -inf
        %v3727 = vsel %vm3578, %v3423, -inf
        %v3728 = vmax.f32 %v3726, %v3727
        %v3729 = vsel %vm3578, %v3374, -inf
        %v3730 = vsel %vm3578, %v3430, -inf
        %v3731 = vmax.f32 %v3729, %v3730
        %v3732 = vsel %vm3578, %v3381, -inf
        %v3733 = vsel %vm3578, %v3437, -inf
        %v3734 = vmax.f32 %v3732, %v3733
        %v3735 = vsel %vm3578, %v3388, -inf
        %v3736 = vsel %vm3578, %v3444, -inf
        %v3737 = vmax.f32 %v3735, %v3736
        %v3738 = vsel %vm3578, %v3395, -inf
        %v3739 = vsel %vm3578, %v3451, -inf
        %v3740 = vmax.f32 %v3738, %v3739
        %v3741 = vsel %vm3578, %v3402, -inf
        %v3742 = vsel %vm3578, %v3458, -inf
        %v3743 = vmax.f32 %v3741, %v3742
        %v3744 = vsel %vm3578, %v3409, -inf
        %v3745 = vsel %vm3578, %v3465, -inf
        %v3746 = vmax.f32 %v3744, %v3745
        %v3747 = vsel %vm3578, %v3472, -inf
        %v3748 = vsel %vm3578, %v3528, -inf
        %v3749 = vmax.f32 %v3747, %v3748
        %v3750 = vsel %vm3578, %v3479, -inf
        %v3751 = vsel %vm3578, %v3535, -inf
        %v3752 = vmax.f32 %v3750, %v3751
        %v3753 = vsel %vm3578, %v3486, -inf
        %v3754 = vsel %vm3578, %v3542, -inf
        %v3755 = vmax.f32 %v3753, %v3754
        %v3756 = vsel %vm3578, %v3493, -inf
        %v3757 = vsel %vm3578, %v3549, -inf
        %v3758 = vmax.f32 %v3756, %v3757
        %v3759 = vsel %vm3578, %v3500, -inf
        %v3760 = vsel %vm3578, %v3556, -inf
        %v3761 = vmax.f32 %v3759, %v3760
        %v3762 = vsel %vm3578, %v3507, -inf
        %v3763 = vsel %vm3578, %v3563, -inf
        %v3764 = vmax.f32 %v3762, %v3763
        %v3765 = vsel %vm3578, %v3514, -inf
        %v3766 = vsel %vm3578, %v3570, -inf
        %v3767 = vmax.f32 %v3765, %v3766
        %v3768 = vsel %vm3578, %v3521, -inf
        %v3769 = vsel %vm3578, %v3577, -inf
        %v3770 = vmax.f32 %v3768, %v3769
        %vm3835 = vcmask 1041409
        %v3836 = vsel %vm3835, %v3584, %v3581
        %vm3837 = vcmask 1042434
        %v3838 = vsel %vm3837, %v3587, %v3836
        %vm3839 = vcmask 1043459
        %v3840 = vsel %vm3839, %v3590, %v3838
        %vm3841 = vcmask 1044484
        %v3842 = vsel %vm3841, %v3593, %v3840
        %vm3843 = vcmask 1045509
        %v3844 = vsel %vm3843, %v3596, %v3842
        %vm3845 = vcmask 1046534
        %v3846 = vsel %vm3845, %v3599, %v3844
        %vm3847 = vcmask 1047559
        %v3848 = vsel %vm3847, %v3602, %v3846
        %v3849 = vsel %vm3835, %v3608, %v3605
        %v3850 = vsel %vm3837, %v3611, %v3849
        %v3851 = vsel %vm3839, %v3614, %v3850
        %v3852 = vsel %vm3841, %v3617, %v3851
        %v3853 = vsel %vm3843, %v3620, %v3852
        %v3854 = vsel %vm3845, %v3623, %v3853
        %v3855 = vsel %vm3847, %v3626, %v3854
        %v3856 = vsel %vm3835, %v3632, %v3629
        %v3857 = vsel %vm3837, %v3635, %v3856
        %v3858 = vsel %vm3839, %v3638, %v3857
        %v3859 = vsel %vm3841, %v3641, %v3858
        %v3860 = vsel %vm3843, %v3644, %v3859
        %v3861 = vsel %vm3845, %v3647, %v3860
        %v3862 = vsel %vm3847, %v3650, %v3861
        %v3863 = vsel %vm3835, %v3656, %v3653
        %v3864 = vsel %vm3837, %v3659, %v3863
        %v3865 = vsel %vm3839, %v3662, %v3864
        %v3866 = vsel %vm3841, %v3665, %v3865
        %v3867 = vsel %vm3843, %v3668, %v3866
        %v3868 = vsel %vm3845, %v3671, %v3867
        %v3869 = vsel %vm3847, %v3674, %v3868
        %v3870 = vsel %vm3835, %v3680, %v3677
        %v3871 = vsel %vm3837, %v3683, %v3870
        %v3872 = vsel %vm3839, %v3686, %v3871
        %v3873 = vsel %vm3841, %v3689, %v3872
        %v3874 = vsel %vm3843, %v3692, %v3873
        %v3875 = vsel %vm3845, %v3695, %v3874
        %v3876 = vsel %vm3847, %v3698, %v3875
        %v3877 = vsel %vm3835, %v3704, %v3701
        %v3878 = vsel %vm3837, %v3707, %v3877
        %v3879 = vsel %vm3839, %v3710, %v3878
        %v3880 = vsel %vm3841, %v3713, %v3879
        %v3881 = vsel %vm3843, %v3716, %v3880
        %v3882 = vsel %vm3845, %v3719, %v3881
        %v3883 = vsel %vm3847, %v3722, %v3882
        %v3884 = vsel %vm3835, %v3728, %v3725
        %v3885 = vsel %vm3837, %v3731, %v3884
        %v3886 = vsel %vm3839, %v3734, %v3885
        %v3887 = vsel %vm3841, %v3737, %v3886
        %v3888 = vsel %vm3843, %v3740, %v3887
        %v3889 = vsel %vm3845, %v3743, %v3888
        %v3890 = vsel %vm3847, %v3746, %v3889
        %v3891 = vsel %vm3835, %v3752, %v3749
        %v3892 = vsel %vm3837, %v3755, %v3891
        %v3893 = vsel %vm3839, %v3758, %v3892
        %v3894 = vsel %vm3841, %v3761, %v3893
        %v3895 = vsel %vm3843, %v3764, %v3894
        %v3896 = vsel %vm3845, %v3767, %v3895
        %v3897 = vsel %vm3847, %v3770, %v3896
        %3898 = vrot.lane.b32.xlu0 %v3848, 64
        %v3899 = vpop.permute.xlu0 %3898
        %3900 = vrot.lane.b32.xlu0 %v3855, 64
        %v3901 = vpop.permute.xlu0 %3900
        %3902 = vrot.lane.b32.xlu0 %v3862, 64
        %v3903 = vpop.permute.xlu0 %3902
        %3904 = vrot.lane.b32.xlu0 %v3869, 64
        %v3905 = vpop.permute.xlu0 %3904
        %3906 = vrot.lane.b32.xlu0 %v3876, 64
        %v3907 = vpop.permute.xlu0 %3906
        %3908 = vrot.lane.b32.xlu0 %v3883, 64
        %v3909 = vpop.permute.xlu0 %3908
        %3910 = vrot.lane.b32.xlu0 %v3890, 64
        %v3911 = vpop.permute.xlu0 %3910
        %3912 = vrot.lane.b32.xlu0 %v3897, 64
        %v3913 = vpop.permute.xlu0 %3912
        %3922 = vst.msk [vmem:[%s334] sm:$0xff] %vm593, %v3899
        %3923 = vst.msk [vmem:[%s334 + $0x8] sm:$0xff] %vm593, %v3901
        %3924 = vst.msk [vmem:[%s334 + $0x10] sm:$0xff] %vm593, %v3903
        %3925 = vst.msk [vmem:[%s334 + $0x18] sm:$0xff] %vm593, %v3905
        %3926 = vst.msk [vmem:[%s334 + $0x20] sm:$0xff] %vm593, %v3907
        %3927 = vst.msk [vmem:[%s334 + $0x28] sm:$0xff] %vm593, %v3909
        %3928 = vst.msk [vmem:[%s334 + $0x30] sm:$0xff] %vm593, %v3911
        %3929 = vst.msk [vmem:[%s334 + $0x38] sm:$0xff] %vm593, %v3913
        %s3930 = sand.u32 %s183, 1
        %s3931 = scalar_lea.sflag [#allocation3], %s3930
        %s3932 = sand.u32 %s183, 1
        %s3933 = smul.addr %s3932, 64
        %s3934 = scalar_lea.vmem [#allocation2], %s3933
        // Predicated region
        $region41: #{truncated_vgg16_forward.3} parent=39 // pred_check
          %p3935 = pneg %p193
        $region42: #{truncated_vgg16_forward.3} parent=39 // pred_check_branch
          %3937 = sbr.rel (%p3935) target = $region44
        $region43: #{truncated_vgg16_forward.3} parent=39 // pred_region
          %s3938 = smul.u32 8, %s24
          %s3940 = ssub.s32 1024, 1024
          %3941 = vsyncadd %s3931, %s3940
          %s3942 = smul.addr %s23, 8
          %s3943 = sadd.s32 %s3938, %s3942
          %s3944 = smul.addr %s3943, 128
          %s3945 = scalar_lea.hbm %s5, %s3944
          %s3946 = sshll.u32 %s3934, 4
          %s3947 = int_to_ptr.vmem [resolvable:$true] %s3946
          %3952 = dma.vmem_to_hbm [thread:$0]  %s3947, 1024, %s3945, %s3931, 128, 128, 8
        $region44: #{truncated_vgg16_forward.3} parent=39 // pred_fallthru
          _
      $region40: #{truncated_vgg16_forward.3} parent=5 // pred_fallthru
        _
      %p3953 = scmp.le.s32.totalorder 2, %s14
      // Predicated region
      $region45: #{truncated_vgg16_forward.3} parent=5 // pred_check
        %p3954 = pneg %p3953
      $region46: #{truncated_vgg16_forward.3} parent=5 // pred_check_branch
        %3956 = sbr.rel (%p3954) target = $region48
      $region47: #{truncated_vgg16_forward.3} parent=5 // pred_region
        %s3957 = ssub.s32 %s14, 2
        // Predicated region
        $region49: #{truncated_vgg16_forward.3} parent=47 // pred_check
          %p3958 = pneg %p199
        $region50: #{truncated_vgg16_forward.3} parent=47 // pred_check_branch
          %3960 = sbr.rel (%p3958) target = $region52
        $region51: #{truncated_vgg16_forward.3} parent=47 // pred_region
          %s3961 = sand.u32 %s184, 1
          %s3962 = scalar_lea.sflag [#allocation3], %s3961
          %s3963 = sand.u32 %s184, 1
          %s3964 = smul.addr %s3963, 64
          %s3965 = scalar_lea.vmem [#allocation2], %s3964
          %3966 = dma.done %s3962, 1024
        $region52: #{truncated_vgg16_forward.3} parent=47 // pred_fallthru
          _
      $region48: #{truncated_vgg16_forward.3} parent=5 // pred_fallthru
        _
    $region6: #{truncated_vgg16_forward.3} parent=1 // loop_footer
      %s18 = sadd.s32 1, %s14
    $region7: #{truncated_vgg16_forward.3} parent=1 // loop_footer_branch
      %13 = sbr.rel target = $region3
    $region8: #{truncated_vgg16_forward.3} parent=1 // loop_exit
      _
    %3967 = vsyncpa [#allocation3], 1
    %s3968 = scalar_lea.sflag [#allocation3], 1
    %3969 = vsyncpa %s3968, 1

</llo_original>
